<compile_context>
chip_gen: v7x
topology: tpu7x:2x2x1
jax: 0.10.0
libtpu: 0.0.40
codegen_flags: <defaults>
</compile_context>

<pallas_src>
import math
import functools

import jax
import jax.numpy as jnp
from jax.experimental import pallas as pl
from jax.experimental.pallas import tpu as pltpu


def graphormer_layer_kernel(
    x_ref, bias_ref,
    wqkv_ref, bqkv_ref, wo_ref, bo_ref,
    ln1_g_ref, ln1_b_ref,
    w1_ref, b1_ref, w2_ref, b2_ref,
    ln2_g_ref, ln2_b_ref,
    o_ref,
    *, num_heads, head_dim, eps, approx_recip,
):
    f32 = jnp.float32
    H, Dh = num_heads, head_dim
    C = H * Dh

    x = x_ref[0]                               # (T, C)  compute dtype
    bias = bias_ref[0]                         # (H, T, T) f32
    cd = x.dtype

    wqkv = wqkv_ref[...]                       # (C, 3C) compute dtype
    wo = wo_ref[...]                           # (C, C)
    w1 = w1_ref[...]; w2 = w2_ref[...]         # (C, F), (F, C)
    bqkv = bqkv_ref[...]                       # (1, 3C) f32
    bo = bo_ref[...]; b1 = b1_ref[...]; b2 = b2_ref[...]
    g1 = ln1_g_ref[...]; be1 = ln1_b_ref[...]
    g2 = ln2_g_ref[...]; be2 = ln2_b_ref[...]

    # ---- fused lane-dense QKV projection: one (T,C)@(C,3C) MXU pass ----
    # (q scaling and its bias scaling are already folded host-side.)
    qkv = (jnp.dot(x, wqkv, preferred_element_type=f32) + bqkv).astype(cd)   # (T, 3C)

    # ---- head split relayout: (T, C) column blocks -> (H, T, Dh). ----
    # Static lane slices + stack: Mosaic-safe, avoids a minor-dim-splitting reshape.
    def split_heads(base):
        return jnp.stack(
            [qkv[:, base + h * Dh: base + (h + 1) * Dh] for h in range(H)], axis=0)

    q = split_heads(0)          # (H, T, Dh)
    k = split_heads(C)
    v = split_heads(2 * C)

    # ---- attention core (per-head small Dh is inherent to MHA); softmax in f32 ----
    s = jnp.einsum("htd,hsd->hts", q, k, preferred_element_type=f32) + bias
    s = s - jnp.max(s, axis=-1, keepdims=True)
    e = jnp.exp(s)
    denom = jnp.sum(e, axis=-1, keepdims=True)
    if approx_recip:
        p = e * pl.reciprocal(denom, approx=True)      # EUP slot, ~1e-3 relative err
    else:
        p = e / denom                                  # exact division for f32 path
    ctx = jnp.einsum("hts,hsd->htd", p.astype(cd), v, preferred_element_type=f32)

    # ---- merge heads back to a lane-dense (T, C) slab, then ONE (T,C)@(C,C) ----
    # out-projection with K = C (no (H,T,C) f32 intermediate, no sum over heads).
    ctx_tc = jnp.concatenate([ctx[h] for h in range(H)], axis=-1).astype(cd)
    attn_out = jnp.dot(ctx_tc, wo, preferred_element_type=f32) + bo          # (T, C)

    # ---- residual + post-LayerNorm (dropout = identity at inference) ----
    y = x.astype(f32) + attn_out
    mu = jnp.mean(y, axis=-1, keepdims=True)
    var = jnp.mean(jnp.square(y - mu), axis=-1, keepdims=True)
    y = (y - mu) * jax.lax.rsqrt(var + eps) * g1 + be1

    # ---- FFN: fc1 -> relu -> fc2, residual + post-LayerNorm ----
    h1 = jnp.maximum(jnp.dot(y.astype(cd), w1, preferred_element_type=f32) + b1, 0.0)
    h2 = jnp.dot(h1.astype(cd), w2, preferred_element_type=f32) + b2
    z = y + h2
    mu2 = jnp.mean(z, axis=-1, keepdims=True)
    var2 = jnp.mean(jnp.square(z - mu2), axis=-1, keepdims=True)
    z = (z - mu2) * jax.lax.rsqrt(var2 + eps) * g2 + be2

    o_ref[0] = z.astype(o_ref.dtype)


def graphormer_encoder_layer(x_tbc, attn_bias, params, *, num_heads,
                             compute_dtype=jnp.bfloat16, eps=1e-5):
    """x_tbc: (T, B, C); attn_bias: (B, H, T, T). Returns (out (T, B, C), None)."""
    T, B, C = x_tbc.shape
    H = num_heads
    if C % H != 0:
        raise ValueError("embedding_dim must be divisible by num_heads")
    Dh = C // H
    F = params["w1"].shape[0]

    f32 = jnp.float32
    cd = jnp.dtype(compute_dtype)
    out_dtype = x_tbc.dtype

    # Lane/sublane-dense shapes (bf16 packs 16 sublanes per vreg).
    sublane = 16 if cd.itemsize < 4 else 8
    if C % 128 != 0 or F % 128 != 0 or T % sublane != 0:
        raise ValueError(
            f"expect C, F multiples of 128 and T a multiple of {sublane} "
            f"(got T={T}, C={C}, F={F}, compute_dtype={cd})")

    scaling = 1.0 / math.sqrt(Dh)

    # ---- host-side static weight re-layouts: no transposes/reshapes in the kernel ----
    wqkv = jnp.concatenate(
        [params["wq"].T * scaling, params["wk"].T, params["wv"].T], axis=1).astype(cd)  # (C, 3C)
    bqkv = jnp.concatenate(
        [params["bq"] * scaling, params["bk"], params["bv"]], axis=1).astype(f32)       # (1, 3C)
    wo_t = params["wo"].T.astype(cd)        # (C, C): ctx(T,C) @ wo_t == ctx @ Wo.T
    bo = params["bo"].astype(f32)
    w1_t = params["w1"].T.astype(cd)        # (C, F)
    b1 = params["b1"].astype(f32)
    w2_t = params["w2"].T.astype(cd)        # (F, C)
    b2 = params["b2"].astype(f32)
    ln1_g = params["ln1_g"].astype(f32); ln1_b = params["ln1_b"].astype(f32)
    ln2_g = params["ln2_g"].astype(f32); ln2_b = params["ln2_b"].astype(f32)

    # NOTE(perf): the (T,B,C)<->(B,T,C) transposes cost extra HBM passes; they are kept
    # because a (T, 1, C) block on the original layout would put a size-1 tile on the
    # sublane axis.  At real Graphormer shapes the f32 attn_bias stream dominates HBM
    # traffic, so this is a minor term.
    x_btc = jnp.transpose(x_tbc, (1, 0, 2)).astype(cd)    # (B, T, C) compute dtype
    bias_f32 = attn_bias.astype(f32)                      # bias never feeds the MXU

    weight_args = (wqkv, bqkv, wo_t, bo, ln1_g, ln1_b, w1_t, b1, w2_t, b2, ln2_g, ln2_b)

    kernel = functools.partial(
        graphormer_layer_kernel, num_heads=H, head_dim=Dh, eps=eps,
        approx_recip=(cd != jnp.dtype(jnp.float32)))

    # ---- cost estimate: lets XLA schedule neighbouring ops around the custom call ----
    flops_per_b = (2 * T * C * 3 * C            # fused QKV projection
                   + 2 * H * T * T * Dh * 2     # QK^T + PV
                   + 2 * T * C * C              # out-projection
                   + 2 * T * C * F * 2)         # fc1 + fc2
    bytes_accessed = int(x_btc.size * x_btc.dtype.itemsize
                         + bias_f32.size * bias_f32.dtype.itemsize
                         + B * T * C * jnp.dtype(out_dtype).itemsize
                         + sum(a.size * a.dtype.itemsize for a in weight_args))
    cost = pl.CostEstimate(flops=int(B * flops_per_b),
                           transcendentals=int(B * H * T * T),
                           bytes_accessed=bytes_accessed)

    # ---- explicit VMEM budget: resident weights + double-buffered IO blocks +
    #      f32 intermediates (default scoped limit is only 16/32 MiB) ----
    w_bytes = int(sum(a.size * a.dtype.itemsize for a in weight_args))
    io_bytes = (T * C * cd.itemsize + H * T * T * 4
                + T * C * jnp.dtype(out_dtype).itemsize)
    inter_bytes = 4 * (3 * H * T * T + 3 * T * C + T * F + 6 * T * C)
    need = 2 * w_bytes + 2 * io_bytes + inter_bytes
    vmem_limit = min(max(int(1.25 * need) + (2 << 20), 32 << 20), 64 << 20)  # <= v7x VMEM

    def _run(single_buffer_weights):
        def rep_spec(a):      # grid-invariant full-array block, resident across steps
            zeros = (0,) * a.ndim
            if single_buffer_weights:
                return pl.BlockSpec(a.shape, lambda i, z=zeros: z,
                                    pipeline_mode=pl.Buffered(1))
            return pl.BlockSpec(a.shape, lambda i, z=zeros: z)

        call = pl.pallas_call(
            kernel,
            out_shape=jax.ShapeDtypeStruct((B, T, C), out_dtype),
            grid=(B,),
            in_specs=[pl.BlockSpec((1, T, C), lambda b: (b, 0, 0)),
                      pl.BlockSpec((1, H, T, T), lambda b: (b, 0, 0, 0))]
                     + [rep_spec(a) for a in weight_args],
            out_specs=pl.BlockSpec((1, T, C), lambda b: (b, 0, 0)),
            compiler_params=pltpu.CompilerParams(
                dimension_semantics=("parallel",),
                vmem_limit_bytes=vmem_limit),
            cost_estimate=cost,
        )
        return call(x_btc, bias_f32, *weight_args)

    try:
        # Grid-invariant weights never change: single-buffer them (halves their VMEM).
        out_btc = _run(True)
    except Exception:
        # Fallback for jax builds that reject pipeline_mode on pallas_call BlockSpecs;
        # only costs extra VMEM for the duplicated weight buffers.
        out_btc = _run(False)

    return jnp.transpose(out_btc, (1, 0, 2)), None    # (x, attn) with need_weights=False


# ---------------- pure-JAX f32 reference for sanity checking ----------------
def _layer_norm(x, g, b, eps=1e-5):
    mu = jnp.mean(x, axis=-1, keepdims=True)
    var = jnp.mean((x - mu) ** 2, axis=-1, keepdims=True)
    return (x - mu) * jax.lax.rsqrt(var + eps) * g + b


def reference(x_tbc, attn_bias, params, num_heads):
    T, B, C = x_tbc.shape
    H = num_heads
    Dh = C // H
    x = jnp.transpose(x_tbc, (1, 0, 2))          # (B, T, C)
    q = (x @ params["wq"].T + params["bq"]) / math.sqrt(Dh)
    k = x @ params["wk"].T + params["bk"]
    v = x @ params["wv"].T + params["bv"]
    qh = q.reshape(B, T, H, Dh).transpose(0, 2, 1, 3)
    kh = k.reshape(B, T, H, Dh).transpose(0, 2, 1, 3)
    vh = v.reshape(B, T, H, Dh).transpose(0, 2, 1, 3)
    s = jnp.einsum("bhtd,bhsd->bhts", qh, kh) + attn_bias
    p = jax.nn.softmax(s, axis=-1)
    ctx = jnp.einsum("bhts,bhsd->bhtd", p, vh).transpose(0, 2, 1, 3).reshape(B, T, C)
    attn_out = ctx @ params["wo"].T + params["bo"]
    y = _layer_norm(x + attn_out, params["ln1_g"], params["ln1_b"])
    h = jnp.maximum(y @ params["w1"].T + params["b1"], 0.0)
    h = h @ params["w2"].T + params["b2"]
    z = _layer_norm(y + h, params["ln2_g"], params["ln2_b"])
    return jnp.transpose(z, (1, 0, 2))


if __name__ == "__main__":
    # Small but lane-dense shapes consistent with the module (C % 128 == 0, F = 4*C).
    T, B, C, H, F = 16, 4, 128, 4, 512
    key = jax.random.PRNGKey(0)
    ks = jax.random.split(key, 16)

    def w(k, shape):
        return jax.random.normal(k, shape, jnp.float32) * 0.02

    params = {
        "wq": w(ks[0], (C, C)), "bq": w(ks[1], (1, C)),
        "wk": w(ks[2], (C, C)), "bk": w(ks[3], (1, C)),
        "wv": w(ks[4], (C, C)), "bv": w(ks[5], (1, C)),
        "wo": w(ks[6], (C, C)), "bo": w(ks[7], (1, C)),
        "ln1_g": jnp.ones((1, C), jnp.float32), "ln1_b": jnp.zeros((1, C), jnp.float32),
        "w1": w(ks[8], (F, C)), "b1": w(ks[9], (1, F)),
        "w2": w(ks[10], (C, F)), "b2": w(ks[11], (1, C)),
        "ln2_g": jnp.ones((1, C), jnp.float32), "ln2_b": jnp.zeros((1, C), jnp.float32),
    }

    x = jax.random.normal(ks[12], (T, B, C), jnp.float32)
    attn_bias = jax.random.normal(ks[13], (B, H, T, T), jnp.float32) * 0.1

    ref = jax.block_until_ready(reference(x, attn_bias, params, H))

    # f32 compute path: tight check of the kernel structure itself (exact softmax div).
    out32, _ = graphormer_encoder_layer(x, attn_bias, params, num_heads=H,
                                        compute_dtype=jnp.float32)
    out32 = jax.block_until_ready(out32)
    assert out32.shape == (T, B, C)
    assert jnp.allclose(out32, ref, atol=2e-3, rtol=2e-3), \
        float(jnp.max(jnp.abs(out32 - ref)))

    # Default bf16 (MXU-rate) path: loose tolerance for bf16 operands + approx recip.
    out16, attn = graphormer_encoder_layer(x, attn_bias, params, num_heads=H)
    out16 = jax.block_until_ready(out16)
    assert out16.shape == (T, B, C)
    assert attn is None
    assert jnp.allclose(out16, ref, atol=5e-2, rtol=5e-2), \
        float(jnp.max(jnp.abs(out16 - ref)))

    print("KERNEL_OK")
</pallas_src>

<mosaic_0001>
module attributes {stable_mosaic.version = 11 : i64} {
  func.func @graphormer_layer_kernel(%arg0: i32, %arg1: memref<1x16x128xf32, #tpu.memory_space<vmem>>, %arg2: memref<1x4x16x16xf32, #tpu.memory_space<vmem>>, %arg3: memref<128x384xf32, #tpu.memory_space<vmem>>, %arg4: memref<1x384xf32, #tpu.memory_space<vmem>>, %arg5: memref<128x128xf32, #tpu.memory_space<vmem>>, %arg6: memref<1x128xf32, #tpu.memory_space<vmem>>, %arg7: memref<1x128xf32, #tpu.memory_space<vmem>>, %arg8: memref<1x128xf32, #tpu.memory_space<vmem>>, %arg9: memref<128x512xf32, #tpu.memory_space<vmem>>, %arg10: memref<1x512xf32, #tpu.memory_space<vmem>>, %arg11: memref<512x128xf32, #tpu.memory_space<vmem>>, %arg12: memref<1x128xf32, #tpu.memory_space<vmem>>, %arg13: memref<1x128xf32, #tpu.memory_space<vmem>>, %arg14: memref<1x128xf32, #tpu.memory_space<vmem>>, %arg15: memref<1x16x128xf32, #tpu.memory_space<vmem>>) attributes {dimension_semantics = [#tpu.dimension_semantics<parallel>], iteration_bounds = array<i64: 4>, scalar_prefetch = 0 : i64, scratch_operands = 0 : i64, tpu.core_type = #tpu.core_type<tc>, window_params = [{transform_indices = @transform_0, window_bounds = array<i64: 1, 16, 128>}, {transform_indices = @transform_1, window_bounds = array<i64: 1, 4, 16, 16>}, {pipeline_mode = #tpu.pipeline_mode<synchronous>, transform_indices = @transform_2, window_bounds = array<i64: 128, 384>}, {pipeline_mode = #tpu.pipeline_mode<synchronous>, transform_indices = @transform_3, window_bounds = array<i64: 1, 384>}, {pipeline_mode = #tpu.pipeline_mode<synchronous>, transform_indices = @transform_4, window_bounds = array<i64: 128, 128>}, {pipeline_mode = #tpu.pipeline_mode<synchronous>, transform_indices = @transform_5, window_bounds = array<i64: 1, 128>}, {pipeline_mode = #tpu.pipeline_mode<synchronous>, transform_indices = @transform_6, window_bounds = array<i64: 1, 128>}, {pipeline_mode = #tpu.pipeline_mode<synchronous>, transform_indices = @transform_7, window_bounds = array<i64: 1, 128>}, {pipeline_mode = #tpu.pipeline_mode<synchronous>, transform_indices = @transform_8, window_bounds = array<i64: 128, 512>}, {pipeline_mode = #tpu.pipeline_mode<synchronous>, transform_indices = @transform_9, window_bounds = array<i64: 1, 512>}, {pipeline_mode = #tpu.pipeline_mode<synchronous>, transform_indices = @transform_10, window_bounds = array<i64: 512, 128>}, {pipeline_mode = #tpu.pipeline_mode<synchronous>, transform_indices = @transform_11, window_bounds = array<i64: 1, 128>}, {pipeline_mode = #tpu.pipeline_mode<synchronous>, transform_indices = @transform_12, window_bounds = array<i64: 1, 128>}, {pipeline_mode = #tpu.pipeline_mode<synchronous>, transform_indices = @transform_13, window_bounds = array<i64: 1, 128>}, {transform_indices = @transform_14, window_bounds = array<i64: 1, 16, 128>}]} {
    %c0 = arith.constant 0 : index
    %c0_0 = arith.constant 0 : index
    %c0_1 = arith.constant 0 : index
    %0 = vector.load %arg1[%c0, %c0_0, %c0_1] : memref<1x16x128xf32, #tpu.memory_space<vmem>>, vector<1x16x128xf32>
    %1 = vector.shape_cast %0 : vector<1x16x128xf32> to vector<16x128xf32>
    %c0_2 = arith.constant 0 : index
    %c0_3 = arith.constant 0 : index
    %c0_4 = arith.constant 0 : index
    %c0_5 = arith.constant 0 : index
    %2 = vector.load %arg2[%c0_2, %c0_3, %c0_4, %c0_5] : memref<1x4x16x16xf32, #tpu.memory_space<vmem>>, vector<1x4x16x16xf32>
    %3 = vector.shape_cast %2 : vector<1x4x16x16xf32> to vector<4x16x16xf32>
    %c0_6 = arith.constant 0 : index
    %c0_7 = arith.constant 0 : index
    %4 = vector.load %arg3[%c0_6, %c0_7] : memref<128x384xf32, #tpu.memory_space<vmem>>, vector<128x384xf32>
    %c0_8 = arith.constant 0 : index
    %c0_9 = arith.constant 0 : index
    %5 = vector.load %arg5[%c0_8, %c0_9] : memref<128x128xf32, #tpu.memory_space<vmem>>, vector<128x128xf32>
    %c0_10 = arith.constant 0 : index
    %c0_11 = arith.constant 0 : index
    %6 = vector.load %arg9[%c0_10, %c0_11] : memref<128x512xf32, #tpu.memory_space<vmem>>, vector<128x512xf32>
    %c0_12 = arith.constant 0 : index
    %c0_13 = arith.constant 0 : index
    %7 = vector.load %arg11[%c0_12, %c0_13] : memref<512x128xf32, #tpu.memory_space<vmem>>, vector<512x128xf32>
    %c0_14 = arith.constant 0 : index
    %c0_15 = arith.constant 0 : index
    %8 = vector.load %arg4[%c0_14, %c0_15] : memref<1x384xf32, #tpu.memory_space<vmem>>, vector<1x384xf32>
    %c0_16 = arith.constant 0 : index
    %c0_17 = arith.constant 0 : index
    %9 = vector.load %arg6[%c0_16, %c0_17] : memref<1x128xf32, #tpu.memory_space<vmem>>, vector<1x128xf32>
    %c0_18 = arith.constant 0 : index
    %c0_19 = arith.constant 0 : index
    %10 = vector.load %arg10[%c0_18, %c0_19] : memref<1x512xf32, #tpu.memory_space<vmem>>, vector<1x512xf32>
    %c0_20 = arith.constant 0 : index
    %c0_21 = arith.constant 0 : index
    %11 = vector.load %arg12[%c0_20, %c0_21] : memref<1x128xf32, #tpu.memory_space<vmem>>, vector<1x128xf32>
    %c0_22 = arith.constant 0 : index
    %c0_23 = arith.constant 0 : index
    %12 = vector.load %arg7[%c0_22, %c0_23] : memref<1x128xf32, #tpu.memory_space<vmem>>, vector<1x128xf32>
    %c0_24 = arith.constant 0 : index
    %c0_25 = arith.constant 0 : index
    %13 = vector.load %arg8[%c0_24, %c0_25] : memref<1x128xf32, #tpu.memory_space<vmem>>, vector<1x128xf32>
    %c0_26 = arith.constant 0 : index
    %c0_27 = arith.constant 0 : index
    %14 = vector.load %arg13[%c0_26, %c0_27] : memref<1x128xf32, #tpu.memory_space<vmem>>, vector<1x128xf32>
    %c0_28 = arith.constant 0 : index
    %c0_29 = arith.constant 0 : index
    %15 = vector.load %arg14[%c0_28, %c0_29] : memref<1x128xf32, #tpu.memory_space<vmem>>, vector<1x128xf32>
    %cst = arith.constant dense<0.000000e+00> : vector<16x384xf32>
    %16 = tpu.matmul %1, %4, %cst {dimension_numbers = #tpu.dot_dimension_numbers<[1], [0], [0], [1], [0, 0, 1, 1], [], []>} : vector<16x128xf32>, vector<128x384xf32>, vector<16x384xf32> -> vector<16x384xf32>
    %17 = vector.broadcast %8 : vector<1x384xf32> to vector<16x384xf32>
    %18 = arith.addf %16, %17 : vector<16x384xf32>
    %19 = vector.extract_strided_slice %18 {offsets = [0, 0], sizes = [16, 32], strides = [1, 1]} : vector<16x384xf32> to vector<16x32xf32>
    %20 = vector.extract_strided_slice %18 {offsets = [0, 32], sizes = [16, 32], strides = [1, 1]} : vector<16x384xf32> to vector<16x32xf32>
    %21 = vector.extract_strided_slice %18 {offsets = [0, 64], sizes = [16, 32], strides = [1, 1]} : vector<16x384xf32> to vector<16x32xf32>
    %22 = vector.extract_strided_slice %18 {offsets = [0, 96], sizes = [16, 32], strides = [1, 1]} : vector<16x384xf32> to vector<16x32xf32>
    %23 = vector.shape_cast %19 : vector<16x32xf32> to vector<1x16x32xf32>
    %24 = vector.shape_cast %20 : vector<16x32xf32> to vector<1x16x32xf32>
    %25 = vector.shape_cast %21 : vector<16x32xf32> to vector<1x16x32xf32>
    %26 = vector.shape_cast %22 : vector<16x32xf32> to vector<1x16x32xf32>
    %27 = tpu.concatenate %23, %24, %25, %26 in 0 : vector<1x16x32xf32>, vector<1x16x32xf32>, vector<1x16x32xf32>, vector<1x16x32xf32> -> vector<4x16x32xf32>
    %28 = vector.extract_strided_slice %18 {offsets = [0, 128], sizes = [16, 32], strides = [1, 1]} : vector<16x384xf32> to vector<16x32xf32>
    %29 = vector.extract_strided_slice %18 {offsets = [0, 160], sizes = [16, 32], strides = [1, 1]} : vector<16x384xf32> to vector<16x32xf32>
    %30 = vector.extract_strided_slice %18 {offsets = [0, 192], sizes = [16, 32], strides = [1, 1]} : vector<16x384xf32> to vector<16x32xf32>
    %31 = vector.extract_strided_slice %18 {offsets = [0, 224], sizes = [16, 32], strides = [1, 1]} : vector<16x384xf32> to vector<16x32xf32>
    %32 = vector.shape_cast %28 : vector<16x32xf32> to vector<1x16x32xf32>
    %33 = vector.shape_cast %29 : vector<16x32xf32> to vector<1x16x32xf32>
    %34 = vector.shape_cast %30 : vector<16x32xf32> to vector<1x16x32xf32>
    %35 = vector.shape_cast %31 : vector<16x32xf32> to vector<1x16x32xf32>
    %36 = tpu.concatenate %32, %33, %34, %35 in 0 : vector<1x16x32xf32>, vector<1x16x32xf32>, vector<1x16x32xf32>, vector<1x16x32xf32> -> vector<4x16x32xf32>
    %37 = vector.extract_strided_slice %18 {offsets = [0, 256], sizes = [16, 32], strides = [1, 1]} : vector<16x384xf32> to vector<16x32xf32>
    %38 = vector.extract_strided_slice %18 {offsets = [0, 288], sizes = [16, 32], strides = [1, 1]} : vector<16x384xf32> to vector<16x32xf32>
    %39 = vector.extract_strided_slice %18 {offsets = [0, 320], sizes = [16, 32], strides = [1, 1]} : vector<16x384xf32> to vector<16x32xf32>
    %40 = vector.extract_strided_slice %18 {offsets = [0, 352], sizes = [16, 32], strides = [1, 1]} : vector<16x384xf32> to vector<16x32xf32>
    %41 = vector.shape_cast %37 : vector<16x32xf32> to vector<1x16x32xf32>
    %42 = vector.shape_cast %38 : vector<16x32xf32> to vector<1x16x32xf32>
    %43 = vector.shape_cast %39 : vector<16x32xf32> to vector<1x16x32xf32>
    %44 = vector.shape_cast %40 : vector<16x32xf32> to vector<1x16x32xf32>
    %45 = tpu.concatenate %41, %42, %43, %44 in 0 : vector<1x16x32xf32>, vector<1x16x32xf32>, vector<1x16x32xf32>, vector<1x16x32xf32> -> vector<4x16x32xf32>
    "tpu.trace_start"() <{level = 10 : i32, message = "htd,hsd->hts"}> : () -> ()
    %cst_30 = arith.constant dense<0.000000e+00> : vector<4x16x16xf32>
    %46 = tpu.matmul %27, %36, %cst_30 {dimension_numbers = #tpu.dot_dimension_numbers<[2], [2], [1], [1], [0, 0, 0, 1, 1, 1], [0], [0]>} : vector<4x16x32xf32>, vector<4x16x32xf32>, vector<4x16x16xf32> -> vector<4x16x16xf32>
    "tpu.trace_stop"() : () -> ()
    %47 = arith.addf %46, %3 : vector<4x16x16xf32>
    %cst_31 = arith.constant dense<0xFF800000> : vector<4x16xf32>
    %48 = vector.multi_reduction <maximumf>, %47, %cst_31 [2] : vector<4x16x16xf32> to vector<4x16xf32>
    %49 = vector.shape_cast %48 : vector<4x16xf32> to vector<4x16x1xf32>
    %50 = vector.broadcast %49 : vector<4x16x1xf32> to vector<4x16x16xf32>
    %51 = arith.subf %47, %50 : vector<4x16x16xf32>
    %52 = math.exp %51 : vector<4x16x16xf32>
    %cst_32 = arith.constant dense<0.000000e+00> : vector<4x16xf32>
    %53 = vector.multi_reduction <add>, %52, %cst_32 [2] : vector<4x16x16xf32> to vector<4x16xf32>
    %54 = vector.shape_cast %53 : vector<4x16xf32> to vector<4x16x1xf32>
    %55 = vector.broadcast %54 : vector<4x16x1xf32> to vector<4x16x16xf32>
    %56 = arith.divf %52, %55 : vector<4x16x16xf32>
    "tpu.trace_start"() <{level = 10 : i32, message = "hts,hsd->htd"}> : () -> ()
    %cst_33 = arith.constant dense<0.000000e+00> : vector<4x16x32xf32>
    %57 = tpu.matmul %56, %45, %cst_33 {dimension_numbers = #tpu.dot_dimension_numbers<[2], [1], [1], [2], [0, 0, 0, 1, 1, 2], [0], [0]>} : vector<4x16x16xf32>, vector<4x16x32xf32>, vector<4x16x32xf32> -> vector<4x16x32xf32>
    "tpu.trace_stop"() : () -> ()
    %58 = vector.extract_strided_slice %57 {offsets = [0, 0, 0], sizes = [1, 16, 32], strides = [1, 1, 1]} : vector<4x16x32xf32> to vector<1x16x32xf32>
    %59 = vector.shape_cast %58 : vector<1x16x32xf32> to vector<16x32xf32>
    %60 = vector.extract_strided_slice %57 {offsets = [1, 0, 0], sizes = [1, 16, 32], strides = [1, 1, 1]} : vector<4x16x32xf32> to vector<1x16x32xf32>
    %61 = vector.shape_cast %60 : vector<1x16x32xf32> to vector<16x32xf32>
    %62 = vector.extract_strided_slice %57 {offsets = [2, 0, 0], sizes = [1, 16, 32], strides = [1, 1, 1]} : vector<4x16x32xf32> to vector<1x16x32xf32>
    %63 = vector.shape_cast %62 : vector<1x16x32xf32> to vector<16x32xf32>
    %64 = vector.extract_strided_slice %57 {offsets = [3, 0, 0], sizes = [1, 16, 32], strides = [1, 1, 1]} : vector<4x16x32xf32> to vector<1x16x32xf32>
    %65 = vector.shape_cast %64 : vector<1x16x32xf32> to vector<16x32xf32>
    %66 = tpu.concatenate %59, %61, %63, %65 in 1 : vector<16x32xf32>, vector<16x32xf32>, vector<16x32xf32>, vector<16x32xf32> -> vector<16x128xf32>
    %cst_34 = arith.constant dense<0.000000e+00> : vector<16x128xf32>
    %67 = tpu.matmul %66, %5, %cst_34 {dimension_numbers = #tpu.dot_dimension_numbers<[1], [0], [0], [1], [0, 0, 1, 1], [], []>} : vector<16x128xf32>, vector<128x128xf32>, vector<16x128xf32> -> vector<16x128xf32>
    %68 = vector.broadcast %9 : vector<1x128xf32> to vector<16x128xf32>
    %69 = arith.addf %67, %68 : vector<16x128xf32>
    %70 = arith.addf %1, %69 : vector<16x128xf32>
    %cst_35 = arith.constant dense<0.000000e+00> : vector<16xf32>
    %71 = vector.multi_reduction <add>, %70, %cst_35 [1] : vector<16x128xf32> to vector<16xf32>
    %72 = vector.shape_cast %71 : vector<16xf32> to vector<16x1xf32>
    %cst_36 = arith.constant 1.280000e+02 : f32
    %73 = vector.broadcast %cst_36 : f32 to vector<16x1xf32>
    %74 = arith.divf %72, %73 : vector<16x1xf32>
    %75 = vector.broadcast %74 : vector<16x1xf32> to vector<16x128xf32>
    %76 = arith.subf %70, %75 : vector<16x128xf32>
    %77 = arith.mulf %76, %76 : vector<16x128xf32>
    %cst_37 = arith.constant dense<0.000000e+00> : vector<16xf32>
    %78 = vector.multi_reduction <add>, %77, %cst_37 [1] : vector<16x128xf32> to vector<16xf32>
    %79 = vector.shape_cast %78 : vector<16xf32> to vector<16x1xf32>
    %cst_38 = arith.constant 1.280000e+02 : f32
    %80 = vector.broadcast %cst_38 : f32 to vector<16x1xf32>
    %81 = arith.divf %79, %80 : vector<16x1xf32>
    %82 = vector.broadcast %74 : vector<16x1xf32> to vector<16x128xf32>
    %83 = arith.subf %70, %82 : vector<16x128xf32>
    %cst_39 = arith.constant 9.99999974E-6 : f32
    %84 = vector.broadcast %cst_39 : f32 to vector<16x1xf32>
    %85 = arith.addf %81, %84 : vector<16x1xf32>
    %86 = math.rsqrt %85 : vector<16x1xf32>
    %87 = vector.broadcast %86 : vector<16x1xf32> to vector<16x128xf32>
    %88 = arith.mulf %83, %87 : vector<16x128xf32>
    %89 = vector.broadcast %12 : vector<1x128xf32> to vector<16x128xf32>
    %90 = arith.mulf %88, %89 : vector<16x128xf32>
    %91 = vector.broadcast %13 : vector<1x128xf32> to vector<16x128xf32>
    %92 = arith.addf %90, %91 : vector<16x128xf32>
    %cst_40 = arith.constant dense<0.000000e+00> : vector<16x512xf32>
    %93 = tpu.matmul %92, %6, %cst_40 {dimension_numbers = #tpu.dot_dimension_numbers<[1], [0], [0], [1], [0, 0, 1, 1], [], []>} : vector<16x128xf32>, vector<128x512xf32>, vector<16x512xf32> -> vector<16x512xf32>
    %94 = vector.broadcast %10 : vector<1x512xf32> to vector<16x512xf32>
    %95 = arith.addf %93, %94 : vector<16x512xf32>
    %cst_41 = arith.constant 0.000000e+00 : f32
    %96 = vector.broadcast %cst_41 : f32 to vector<16x512xf32>
    %97 = arith.maximumf %95, %96 : vector<16x512xf32>
    %cst_42 = arith.constant dense<0.000000e+00> : vector<16x128xf32>
    %98 = tpu.matmul %97, %7, %cst_42 {dimension_numbers = #tpu.dot_dimension_numbers<[1], [0], [0], [1], [0, 0, 1, 1], [], []>} : vector<16x512xf32>, vector<512x128xf32>, vector<16x128xf32> -> vector<16x128xf32>
    %99 = vector.broadcast %11 : vector<1x128xf32> to vector<16x128xf32>
    %100 = arith.addf %98, %99 : vector<16x128xf32>
    %101 = arith.addf %92, %100 : vector<16x128xf32>
    %cst_43 = arith.constant dense<0.000000e+00> : vector<16xf32>
    %102 = vector.multi_reduction <add>, %101, %cst_43 [1] : vector<16x128xf32> to vector<16xf32>
    %103 = vector.shape_cast %102 : vector<16xf32> to vector<16x1xf32>
    %cst_44 = arith.constant 1.280000e+02 : f32
    %104 = vector.broadcast %cst_44 : f32 to vector<16x1xf32>
    %105 = arith.divf %103, %104 : vector<16x1xf32>
    %106 = vector.broadcast %105 : vector<16x1xf32> to vector<16x128xf32>
    %107 = arith.subf %101, %106 : vector<16x128xf32>
    %108 = arith.mulf %107, %107 : vector<16x128xf32>
    %cst_45 = arith.constant dense<0.000000e+00> : vector<16xf32>
    %109 = vector.multi_reduction <add>, %108, %cst_45 [1] : vector<16x128xf32> to vector<16xf32>
    %110 = vector.shape_cast %109 : vector<16xf32> to vector<16x1xf32>
    %cst_46 = arith.constant 1.280000e+02 : f32
    %111 = vector.broadcast %cst_46 : f32 to vector<16x1xf32>
    %112 = arith.divf %110, %111 : vector<16x1xf32>
    %113 = vector.broadcast %105 : vector<16x1xf32> to vector<16x128xf32>
    %114 = arith.subf %101, %113 : vector<16x128xf32>
    %cst_47 = arith.constant 9.99999974E-6 : f32
    %115 = vector.broadcast %cst_47 : f32 to vector<16x1xf32>
    %116 = arith.addf %112, %115 : vector<16x1xf32>
    %117 = math.rsqrt %116 : vector<16x1xf32>
    %118 = vector.broadcast %117 : vector<16x1xf32> to vector<16x128xf32>
    %119 = arith.mulf %114, %118 : vector<16x128xf32>
    %120 = vector.broadcast %14 : vector<1x128xf32> to vector<16x128xf32>
    %121 = arith.mulf %119, %120 : vector<16x128xf32>
    %122 = vector.broadcast %15 : vector<1x128xf32> to vector<16x128xf32>
    %123 = arith.addf %121, %122 : vector<16x128xf32>
    %c0_48 = arith.constant 0 : index
    %c0_49 = arith.constant 0 : index
    %c0_50 = arith.constant 0 : index
    %124 = vector.load %arg15[%c0_48, %c0_49, %c0_50] : memref<1x16x128xf32, #tpu.memory_space<vmem>>, vector<1x16x128xf32>
    %125 = vector.shape_cast %124 : vector<1x16x128xf32> to vector<16x128xf32>
    %126 = vector.shape_cast %123 : vector<16x128xf32> to vector<1x16x128xf32>
    tpu.vector_store %arg15[%c0_48, %c0_49, %c0_50], %126 {strides = array<i32>} : memref<1x16x128xf32, #tpu.memory_space<vmem>>, vector<1x16x128xf32>,
    return
  }
  func.func @transform_0(%arg0: i32) -> (i32, i32, i32) {
    %c0_i32 = arith.constant 0 : i32
    %c0_i32_0 = arith.constant 0 : i32
    %c0_i32_1 = arith.constant 0 : i32
    return %arg0, %c0_i32, %c0_i32_0 : i32, i32, i32
  }
  func.func @transform_1(%arg0: i32) -> (i32, i32, i32, i32) {
    %c0_i32 = arith.constant 0 : i32
    %c0_i32_0 = arith.constant 0 : i32
    %c0_i32_1 = arith.constant 0 : i32
    %c0_i32_2 = arith.constant 0 : i32
    return %arg0, %c0_i32, %c0_i32_0, %c0_i32_1 : i32, i32, i32, i32
  }
  func.func @transform_2(%arg0: i32) -> (i32, i32) {
    %c0_i32 = arith.constant 0 : i32
    %c0_i32_0 = arith.constant 0 : i32
    %c0_i32_1 = arith.constant 0 : i32
    return %c0_i32, %c0_i32_0 : i32, i32
  }
  func.func @transform_3(%arg0: i32) -> (i32, i32) {
    %c0_i32 = arith.constant 0 : i32
    %c0_i32_0 = arith.constant 0 : i32
    %c0_i32_1 = arith.constant 0 : i32
    return %c0_i32, %c0_i32_0 : i32, i32
  }
  func.func @transform_4(%arg0: i32) -> (i32, i32) {
    %c0_i32 = arith.constant 0 : i32
    %c0_i32_0 = arith.constant 0 : i32
    %c0_i32_1 = arith.constant 0 : i32
    return %c0_i32, %c0_i32_0 : i32, i32
  }
  func.func @transform_5(%arg0: i32) -> (i32, i32) {
    %c0_i32 = arith.constant 0 : i32
    %c0_i32_0 = arith.constant 0 : i32
    %c0_i32_1 = arith.constant 0 : i32
    return %c0_i32, %c0_i32_0 : i32, i32
  }
  func.func @transform_6(%arg0: i32) -> (i32, i32) {
    %c0_i32 = arith.constant 0 : i32
    %c0_i32_0 = arith.constant 0 : i32
    %c0_i32_1 = arith.constant 0 : i32
    return %c0_i32, %c0_i32_0 : i32, i32
  }
  func.func @transform_7(%arg0: i32) -> (i32, i32) {
    %c0_i32 = arith.constant 0 : i32
    %c0_i32_0 = arith.constant 0 : i32
    %c0_i32_1 = arith.constant 0 : i32
    return %c0_i32, %c0_i32_0 : i32, i32
  }
  func.func @transform_8(%arg0: i32) -> (i32, i32) {
    %c0_i32 = arith.constant 0 : i32
    %c0_i32_0 = arith.constant 0 : i32
    %c0_i32_1 = arith.constant 0 : i32
    return %c0_i32, %c0_i32_0 : i32, i32
  }
  func.func @transform_9(%arg0: i32) -> (i32, i32) {
    %c0_i32 = arith.constant 0 : i32
    %c0_i32_0 = arith.constant 0 : i32
    %c0_i32_1 = arith.constant 0 : i32
    return %c0_i32, %c0_i32_0 : i32, i32
  }
  func.func @transform_10(%arg0: i32) -> (i32, i32) {
    %c0_i32 = arith.constant 0 : i32
    %c0_i32_0 = arith.constant 0 : i32
    %c0_i32_1 = arith.constant 0 : i32
    return %c0_i32, %c0_i32_0 : i32, i32
  }
  func.func @transform_11(%arg0: i32) -> (i32, i32) {
    %c0_i32 = arith.constant 0 : i32
    %c0_i32_0 = arith.constant 0 : i32
    %c0_i32_1 = arith.constant 0 : i32
    return %c0_i32, %c0_i32_0 : i32, i32
  }
  func.func @transform_12(%arg0: i32) -> (i32, i32) {
    %c0_i32 = arith.constant 0 : i32
    %c0_i32_0 = arith.constant 0 : i32
    %c0_i32_1 = arith.constant 0 : i32
    return %c0_i32, %c0_i32_0 : i32, i32
  }
  func.func @transform_13(%arg0: i32) -> (i32, i32) {
    %c0_i32 = arith.constant 0 : i32
    %c0_i32_0 = arith.constant 0 : i32
    %c0_i32_1 = arith.constant 0 : i32
    return %c0_i32, %c0_i32_0 : i32, i32
  }
  func.func @transform_14(%arg0: i32) -> (i32, i32, i32) {
    %c0_i32 = arith.constant 0 : i32
    %c0_i32_0 = arith.constant 0 : i32
    %c0_i32_1 = arith.constant 0 : i32
    return %arg0, %c0_i32, %c0_i32_0 : i32, i32, i32
  }
}

module attributes {stable_mosaic.version = 11 : i64} {
  func.func @graphormer_layer_kernel(%arg0: i32, %arg1: memref<1x16x128xf32, #tpu.memory_space<vmem>>, %arg2: memref<1x4x16x16xf32, #tpu.memory_space<vmem>>, %arg3: memref<128x384xf32, #tpu.memory_space<vmem>>, %arg4: memref<1x384xf32, #tpu.memory_space<vmem>>, %arg5: memref<128x128xf32, #tpu.memory_space<vmem>>, %arg6: memref<1x128xf32, #tpu.memory_space<vmem>>, %arg7: memref<1x128xf32, #tpu.memory_space<vmem>>, %arg8: memref<1x128xf32, #tpu.memory_space<vmem>>, %arg9: memref<128x512xf32, #tpu.memory_space<vmem>>, %arg10: memref<1x512xf32, #tpu.memory_space<vmem>>, %arg11: memref<512x128xf32, #tpu.memory_space<vmem>>, %arg12: memref<1x128xf32, #tpu.memory_space<vmem>>, %arg13: memref<1x128xf32, #tpu.memory_space<vmem>>, %arg14: memref<1x128xf32, #tpu.memory_space<vmem>>, %arg15: memref<1x16x128xf32, #tpu.memory_space<vmem>>) attributes {dimension_semantics = [#tpu.dimension_semantics<parallel>], iteration_bounds = array<i64: 4>, scalar_prefetch = 0 : i64, scratch_operands = 0 : i64, tpu.core_type = #tpu.core_type<tc>, window_params = [{transform_indices = @transform_0, window_bounds = array<i64: 1, 16, 128>}, {transform_indices = @transform_1, window_bounds = array<i64: 1, 4, 16, 16>}, {pipeline_mode = #tpu.pipeline_mode<synchronous>, transform_indices = @transform_2, window_bounds = array<i64: 128, 384>}, {pipeline_mode = #tpu.pipeline_mode<synchronous>, transform_indices = @transform_3, window_bounds = array<i64: 1, 384>}, {pipeline_mode = #tpu.pipeline_mode<synchronous>, transform_indices = @transform_4, window_bounds = array<i64: 128, 128>}, {pipeline_mode = #tpu.pipeline_mode<synchronous>, transform_indices = @transform_5, window_bounds = array<i64: 1, 128>}, {pipeline_mode = #tpu.pipeline_mode<synchronous>, transform_indices = @transform_6, window_bounds = array<i64: 1, 128>}, {pipeline_mode = #tpu.pipeline_mode<synchronous>, transform_indices = @transform_7, window_bounds = array<i64: 1, 128>}, {pipeline_mode = #tpu.pipeline_mode<synchronous>, transform_indices = @transform_8, window_bounds = array<i64: 128, 512>}, {pipeline_mode = #tpu.pipeline_mode<synchronous>, transform_indices = @transform_9, window_bounds = array<i64: 1, 512>}, {pipeline_mode = #tpu.pipeline_mode<synchronous>, transform_indices = @transform_10, window_bounds = array<i64: 512, 128>}, {pipeline_mode = #tpu.pipeline_mode<synchronous>, transform_indices = @transform_11, window_bounds = array<i64: 1, 128>}, {pipeline_mode = #tpu.pipeline_mode<synchronous>, transform_indices = @transform_12, window_bounds = array<i64: 1, 128>}, {pipeline_mode = #tpu.pipeline_mode<synchronous>, transform_indices = @transform_13, window_bounds = array<i64: 1, 128>}, {transform_indices = @transform_14, window_bounds = array<i64: 1, 16, 128>}]} {
    %c0 = arith.constant 0 : index
    %c0_0 = arith.constant 0 : index
    %c0_1 = arith.constant 0 : index
    %0 = vector.load %arg1[%c0, %c0_0, %c0_1] : memref<1x16x128xf32, #tpu.memory_space<vmem>>, vector<1x16x128xf32>
    %1 = vector.shape_cast %0 : vector<1x16x128xf32> to vector<16x128xf32>
    %c0_2 = arith.constant 0 : index
    %c0_3 = arith.constant 0 : index
    %c0_4 = arith.constant 0 : index
    %c0_5 = arith.constant 0 : index
    %2 = vector.load %arg2[%c0_2, %c0_3, %c0_4, %c0_5] : memref<1x4x16x16xf32, #tpu.memory_space<vmem>>, vector<1x4x16x16xf32>
    %3 = vector.shape_cast %2 : vector<1x4x16x16xf32> to vector<4x16x16xf32>
    %c0_6 = arith.constant 0 : index
    %c0_7 = arith.constant 0 : index
    %4 = vector.load %arg3[%c0_6, %c0_7] : memref<128x384xf32, #tpu.memory_space<vmem>>, vector<128x384xf32>
    %c0_8 = arith.constant 0 : index
    %c0_9 = arith.constant 0 : index
    %5 = vector.load %arg5[%c0_8, %c0_9] : memref<128x128xf32, #tpu.memory_space<vmem>>, vector<128x128xf32>
    %c0_10 = arith.constant 0 : index
    %c0_11 = arith.constant 0 : index
    %6 = vector.load %arg9[%c0_10, %c0_11] : memref<128x512xf32, #tpu.memory_space<vmem>>, vector<128x512xf32>
    %c0_12 = arith.constant 0 : index
    %c0_13 = arith.constant 0 : index
    %7 = vector.load %arg11[%c0_12, %c0_13] : memref<512x128xf32, #tpu.memory_space<vmem>>, vector<512x128xf32>
    %c0_14 = arith.constant 0 : index
    %c0_15 = arith.constant 0 : index
    %8 = vector.load %arg4[%c0_14, %c0_15] : memref<1x384xf32, #tpu.memory_space<vmem>>, vector<1x384xf32>
    %c0_16 = arith.constant 0 : index
    %c0_17 = arith.constant 0 : index
    %9 = vector.load %arg6[%c0_16, %c0_17] : memref<1x128xf32, #tpu.memory_space<vmem>>, vector<1x128xf32>
    %c0_18 = arith.constant 0 : index
    %c0_19 = arith.constant 0 : index
    %10 = vector.load %arg10[%c0_18, %c0_19] : memref<1x512xf32, #tpu.memory_space<vmem>>, vector<1x512xf32>
    %c0_20 = arith.constant 0 : index
    %c0_21 = arith.constant 0 : index
    %11 = vector.load %arg12[%c0_20, %c0_21] : memref<1x128xf32, #tpu.memory_space<vmem>>, vector<1x128xf32>
    %c0_22 = arith.constant 0 : index
    %c0_23 = arith.constant 0 : index
    %12 = vector.load %arg7[%c0_22, %c0_23] : memref<1x128xf32, #tpu.memory_space<vmem>>, vector<1x128xf32>
    %c0_24 = arith.constant 0 : index
    %c0_25 = arith.constant 0 : index
    %13 = vector.load %arg8[%c0_24, %c0_25] : memref<1x128xf32, #tpu.memory_space<vmem>>, vector<1x128xf32>
    %c0_26 = arith.constant 0 : index
    %c0_27 = arith.constant 0 : index
    %14 = vector.load %arg13[%c0_26, %c0_27] : memref<1x128xf32, #tpu.memory_space<vmem>>, vector<1x128xf32>
    %c0_28 = arith.constant 0 : index
    %c0_29 = arith.constant 0 : index
    %15 = vector.load %arg14[%c0_28, %c0_29] : memref<1x128xf32, #tpu.memory_space<vmem>>, vector<1x128xf32>
    %cst = arith.constant dense<0.000000e+00> : vector<16x384xf32>
    %16 = tpu.matmul %1, %4, %cst {dimension_numbers = #tpu.dot_dimension_numbers<[1], [0], [0], [1], [0, 0, 1, 1], [], []>} : vector<16x128xf32>, vector<128x384xf32>, vector<16x384xf32> -> vector<16x384xf32>
    %17 = vector.broadcast %8 : vector<1x384xf32> to vector<16x384xf32>
    %18 = arith.addf %16, %17 : vector<16x384xf32>
    %19 = vector.extract_strided_slice %18 {offsets = [0, 0], sizes = [16, 32], strides = [1, 1]} : vector<16x384xf32> to vector<16x32xf32>
    %20 = vector.extract_strided_slice %18 {offsets = [0, 32], sizes = [16, 32], strides = [1, 1]} : vector<16x384xf32> to vector<16x32xf32>
    %21 = vector.extract_strided_slice %18 {offsets = [0, 64], sizes = [16, 32], strides = [1, 1]} : vector<16x384xf32> to vector<16x32xf32>
    %22 = vector.extract_strided_slice %18 {offsets = [0, 96], sizes = [16, 32], strides = [1, 1]} : vector<16x384xf32> to vector<16x32xf32>
    %23 = vector.shape_cast %19 : vector<16x32xf32> to vector<1x16x32xf32>
    %24 = vector.shape_cast %20 : vector<16x32xf32> to vector<1x16x32xf32>
    %25 = vector.shape_cast %21 : vector<16x32xf32> to vector<1x16x32xf32>
    %26 = vector.shape_cast %22 : vector<16x32xf32> to vector<1x16x32xf32>
    %27 = tpu.concatenate %23, %24, %25, %26 in 0 : vector<1x16x32xf32>, vector<1x16x32xf32>, vector<1x16x32xf32>, vector<1x16x32xf32> -> vector<4x16x32xf32>
    %28 = vector.extract_strided_slice %18 {offsets = [0, 128], sizes = [16, 32], strides = [1, 1]} : vector<16x384xf32> to vector<16x32xf32>
    %29 = vector.extract_strided_slice %18 {offsets = [0, 160], sizes = [16, 32], strides = [1, 1]} : vector<16x384xf32> to vector<16x32xf32>
    %30 = vector.extract_strided_slice %18 {offsets = [0, 192], sizes = [16, 32], strides = [1, 1]} : vector<16x384xf32> to vector<16x32xf32>
    %31 = vector.extract_strided_slice %18 {offsets = [0, 224], sizes = [16, 32], strides = [1, 1]} : vector<16x384xf32> to vector<16x32xf32>
    %32 = vector.shape_cast %28 : vector<16x32xf32> to vector<1x16x32xf32>
    %33 = vector.shape_cast %29 : vector<16x32xf32> to vector<1x16x32xf32>
    %34 = vector.shape_cast %30 : vector<16x32xf32> to vector<1x16x32xf32>
    %35 = vector.shape_cast %31 : vector<16x32xf32> to vector<1x16x32xf32>
    %36 = tpu.concatenate %32, %33, %34, %35 in 0 : vector<1x16x32xf32>, vector<1x16x32xf32>, vector<1x16x32xf32>, vector<1x16x32xf32> -> vector<4x16x32xf32>
    %37 = vector.extract_strided_slice %18 {offsets = [0, 256], sizes = [16, 32], strides = [1, 1]} : vector<16x384xf32> to vector<16x32xf32>
    %38 = vector.extract_strided_slice %18 {offsets = [0, 288], sizes = [16, 32], strides = [1, 1]} : vector<16x384xf32> to vector<16x32xf32>
    %39 = vector.extract_strided_slice %18 {offsets = [0, 320], sizes = [16, 32], strides = [1, 1]} : vector<16x384xf32> to vector<16x32xf32>
    %40 = vector.extract_strided_slice %18 {offsets = [0, 352], sizes = [16, 32], strides = [1, 1]} : vector<16x384xf32> to vector<16x32xf32>
    %41 = vector.shape_cast %37 : vector<16x32xf32> to vector<1x16x32xf32>
    %42 = vector.shape_cast %38 : vector<16x32xf32> to vector<1x16x32xf32>
    %43 = vector.shape_cast %39 : vector<16x32xf32> to vector<1x16x32xf32>
    %44 = vector.shape_cast %40 : vector<16x32xf32> to vector<1x16x32xf32>
    %45 = tpu.concatenate %41, %42, %43, %44 in 0 : vector<1x16x32xf32>, vector<1x16x32xf32>, vector<1x16x32xf32>, vector<1x16x32xf32> -> vector<4x16x32xf32>
    "tpu.trace_start"() <{level = 10 : i32, message = "htd,hsd->hts"}> : () -> ()
    %cst_30 = arith.constant dense<0.000000e+00> : vector<4x16x16xf32>
    %46 = tpu.matmul %27, %36, %cst_30 {dimension_numbers = #tpu.dot_dimension_numbers<[2], [2], [1], [1], [0, 0, 0, 1, 1, 1], [0], [0]>} : vector<4x16x32xf32>, vector<4x16x32xf32>, vector<4x16x16xf32> -> vector<4x16x16xf32>
    "tpu.trace_stop"() : () -> ()
    %47 = arith.addf %46, %3 : vector<4x16x16xf32>
    %cst_31 = arith.constant dense<0xFF800000> : vector<4x16xf32>
    %48 = vector.multi_reduction <maximumf>, %47, %cst_31 [2] : vector<4x16x16xf32> to vector<4x16xf32>
    %49 = vector.shape_cast %48 : vector<4x16xf32> to vector<4x16x1xf32>
    %50 = vector.broadcast %49 : vector<4x16x1xf32> to vector<4x16x16xf32>
    %51 = arith.subf %47, %50 : vector<4x16x16xf32>
    %52 = math.exp %51 : vector<4x16x16xf32>
    %cst_32 = arith.constant dense<0.000000e+00> : vector<4x16xf32>
    %53 = vector.multi_reduction <add>, %52, %cst_32 [2] : vector<4x16x16xf32> to vector<4x16xf32>
    %54 = vector.shape_cast %53 : vector<4x16xf32> to vector<4x16x1xf32>
    %55 = vector.broadcast %54 : vector<4x16x1xf32> to vector<4x16x16xf32>
    %56 = arith.divf %52, %55 : vector<4x16x16xf32>
    "tpu.trace_start"() <{level = 10 : i32, message = "hts,hsd->htd"}> : () -> ()
    %cst_33 = arith.constant dense<0.000000e+00> : vector<4x16x32xf32>
    %57 = tpu.matmul %56, %45, %cst_33 {dimension_numbers = #tpu.dot_dimension_numbers<[2], [1], [1], [2], [0, 0, 0, 1, 1, 2], [0], [0]>} : vector<4x16x16xf32>, vector<4x16x32xf32>, vector<4x16x32xf32> -> vector<4x16x32xf32>
    "tpu.trace_stop"() : () -> ()
    %58 = vector.extract_strided_slice %57 {offsets = [0, 0, 0], sizes = [1, 16, 32], strides = [1, 1, 1]} : vector<4x16x32xf32> to vector<1x16x32xf32>
    %59 = vector.shape_cast %58 : vector<1x16x32xf32> to vector<16x32xf32>
    %60 = vector.extract_strided_slice %57 {offsets = [1, 0, 0], sizes = [1, 16, 32], strides = [1, 1, 1]} : vector<4x16x32xf32> to vector<1x16x32xf32>
    %61 = vector.shape_cast %60 : vector<1x16x32xf32> to vector<16x32xf32>
    %62 = vector.extract_strided_slice %57 {offsets = [2, 0, 0], sizes = [1, 16, 32], strides = [1, 1, 1]} : vector<4x16x32xf32> to vector<1x16x32xf32>
    %63 = vector.shape_cast %62 : vector<1x16x32xf32> to vector<16x32xf32>
    %64 = vector.extract_strided_slice %57 {offsets = [3, 0, 0], sizes = [1, 16, 32], strides = [1, 1, 1]} : vector<4x16x32xf32> to vector<1x16x32xf32>
    %65 = vector.shape_cast %64 : vector<1x16x32xf32> to vector<16x32xf32>
    %66 = tpu.concatenate %59, %61, %63, %65 in 1 : vector<16x32xf32>, vector<16x32xf32>, vector<16x32xf32>, vector<16x32xf32> -> vector<16x128xf32>
    %cst_34 = arith.constant dense<0.000000e+00> : vector<16x128xf32>
    %67 = tpu.matmul %66, %5, %cst_34 {dimension_numbers = #tpu.dot_dimension_numbers<[1], [0], [0], [1], [0, 0, 1, 1], [], []>} : vector<16x128xf32>, vector<128x128xf32>, vector<16x128xf32> -> vector<16x128xf32>
    %68 = vector.broadcast %9 : vector<1x128xf32> to vector<16x128xf32>
    %69 = arith.addf %67, %68 : vector<16x128xf32>
    %70 = arith.addf %1, %69 : vector<16x128xf32>
    %cst_35 = arith.constant dense<0.000000e+00> : vector<16xf32>
    %71 = vector.multi_reduction <add>, %70, %cst_35 [1] : vector<16x128xf32> to vector<16xf32>
    %72 = vector.shape_cast %71 : vector<16xf32> to vector<16x1xf32>
    %cst_36 = arith.constant 1.280000e+02 : f32
    %73 = vector.broadcast %cst_36 : f32 to vector<16x1xf32>
    %74 = arith.divf %72, %73 : vector<16x1xf32>
    %75 = vector.broadcast %74 : vector<16x1xf32> to vector<16x128xf32>
    %76 = arith.subf %70, %75 : vector<16x128xf32>
    %77 = arith.mulf %76, %76 : vector<16x128xf32>
    %cst_37 = arith.constant dense<0.000000e+00> : vector<16xf32>
    %78 = vector.multi_reduction <add>, %77, %cst_37 [1] : vector<16x128xf32> to vector<16xf32>
    %79 = vector.shape_cast %78 : vector<16xf32> to vector<16x1xf32>
    %cst_38 = arith.constant 1.280000e+02 : f32
    %80 = vector.broadcast %cst_38 : f32 to vector<16x1xf32>
    %81 = arith.divf %79, %80 : vector<16x1xf32>
    %82 = vector.broadcast %74 : vector<16x1xf32> to vector<16x128xf32>
    %83 = arith.subf %70, %82 : vector<16x128xf32>
    %cst_39 = arith.constant 9.99999974E-6 : f32
    %84 = vector.broadcast %cst_39 : f32 to vector<16x1xf32>
    %85 = arith.addf %81, %84 : vector<16x1xf32>
    %86 = math.rsqrt %85 : vector<16x1xf32>
    %87 = vector.broadcast %86 : vector<16x1xf32> to vector<16x128xf32>
    %88 = arith.mulf %83, %87 : vector<16x128xf32>
    %89 = vector.broadcast %12 : vector<1x128xf32> to vector<16x128xf32>
    %90 = arith.mulf %88, %89 : vector<16x128xf32>
    %91 = vector.broadcast %13 : vector<1x128xf32> to vector<16x128xf32>
    %92 = arith.addf %90, %91 : vector<16x128xf32>
    %cst_40 = arith.constant dense<0.000000e+00> : vector<16x512xf32>
    %93 = tpu.matmul %92, %6, %cst_40 {dimension_numbers = #tpu.dot_dimension_numbers<[1], [0], [0], [1], [0, 0, 1, 1], [], []>} : vector<16x128xf32>, vector<128x512xf32>, vector<16x512xf32> -> vector<16x512xf32>
    %94 = vector.broadcast %10 : vector<1x512xf32> to vector<16x512xf32>
    %95 = arith.addf %93, %94 : vector<16x512xf32>
    %cst_41 = arith.constant 0.000000e+00 : f32
    %96 = vector.broadcast %cst_41 : f32 to vector<16x512xf32>
    %97 = arith.maximumf %95, %96 : vector<16x512xf32>
    %cst_42 = arith.constant dense<0.000000e+00> : vector<16x128xf32>
    %98 = tpu.matmul %97, %7, %cst_42 {dimension_numbers = #tpu.dot_dimension_numbers<[1], [0], [0], [1], [0, 0, 1, 1], [], []>} : vector<16x512xf32>, vector<512x128xf32>, vector<16x128xf32> -> vector<16x128xf32>
    %99 = vector.broadcast %11 : vector<1x128xf32> to vector<16x128xf32>
    %100 = arith.addf %98, %99 : vector<16x128xf32>
    %101 = arith.addf %92, %100 : vector<16x128xf32>
    %cst_43 = arith.constant dense<0.000000e+00> : vector<16xf32>
    %102 = vector.multi_reduction <add>, %101, %cst_43 [1] : vector<16x128xf32> to vector<16xf32>
    %103 = vector.shape_cast %102 : vector<16xf32> to vector<16x1xf32>
    %cst_44 = arith.constant 1.280000e+02 : f32
    %104 = vector.broadcast %cst_44 : f32 to vector<16x1xf32>
    %105 = arith.divf %103, %104 : vector<16x1xf32>
    %106 = vector.broadcast %105 : vector<16x1xf32> to vector<16x128xf32>
    %107 = arith.subf %101, %106 : vector<16x128xf32>
    %108 = arith.mulf %107, %107 : vector<16x128xf32>
    %cst_45 = arith.constant dense<0.000000e+00> : vector<16xf32>
    %109 = vector.multi_reduction <add>, %108, %cst_45 [1] : vector<16x128xf32> to vector<16xf32>
    %110 = vector.shape_cast %109 : vector<16xf32> to vector<16x1xf32>
    %cst_46 = arith.constant 1.280000e+02 : f32
    %111 = vector.broadcast %cst_46 : f32 to vector<16x1xf32>
    %112 = arith.divf %110, %111 : vector<16x1xf32>
    %113 = vector.broadcast %105 : vector<16x1xf32> to vector<16x128xf32>
    %114 = arith.subf %101, %113 : vector<16x128xf32>
    %cst_47 = arith.constant 9.99999974E-6 : f32
    %115 = vector.broadcast %cst_47 : f32 to vector<16x1xf32>
    %116 = arith.addf %112, %115 : vector<16x1xf32>
    %117 = math.rsqrt %116 : vector<16x1xf32>
    %118 = vector.broadcast %117 : vector<16x1xf32> to vector<16x128xf32>
    %119 = arith.mulf %114, %118 : vector<16x128xf32>
    %120 = vector.broadcast %14 : vector<1x128xf32> to vector<16x128xf32>
    %121 = arith.mulf %119, %120 : vector<16x128xf32>
    %122 = vector.broadcast %15 : vector<1x128xf32> to vector<16x128xf32>
    %123 = arith.addf %121, %122 : vector<16x128xf32>
    %c0_48 = arith.constant 0 : index
    %c0_49 = arith.constant 0 : index
    %c0_50 = arith.constant 0 : index
    %124 = vector.load %arg15[%c0_48, %c0_49, %c0_50] : memref<1x16x128xf32, #tpu.memory_space<vmem>>, vector<1x16x128xf32>
    %125 = vector.shape_cast %124 : vector<1x16x128xf32> to vector<16x128xf32>
    %126 = vector.shape_cast %123 : vector<16x128xf32> to vector<1x16x128xf32>
    tpu.vector_store %arg15[%c0_48, %c0_49, %c0_50], %126 {strides = array<i32>} : memref<1x16x128xf32, #tpu.memory_space<vmem>>, vector<1x16x128xf32>,
    return
  }
  func.func @transform_0(%arg0: i32) -> (i32, i32, i32) {
    %c0_i32 = arith.constant 0 : i32
    %c0_i32_0 = arith.constant 0 : i32
    %c0_i32_1 = arith.constant 0 : i32
    return %arg0, %c0_i32, %c0_i32_0 : i32, i32, i32
  }
  func.func @transform_1(%arg0: i32) -> (i32, i32, i32, i32) {
    %c0_i32 = arith.constant 0 : i32
    %c0_i32_0 = arith.constant 0 : i32
    %c0_i32_1 = arith.constant 0 : i32
    %c0_i32_2 = arith.constant 0 : i32
    return %arg0, %c0_i32, %c0_i32_0, %c0_i32_1 : i32, i32, i32, i32
  }
  func.func @transform_2(%arg0: i32) -> (i32, i32) {
    %c0_i32 = arith.constant 0 : i32
    %c0_i32_0 = arith.constant 0 : i32
    %c0_i32_1 = arith.constant 0 : i32
    return %c0_i32, %c0_i32_0 : i32, i32
  }
  func.func @transform_3(%arg0: i32) -> (i32, i32) {
    %c0_i32 = arith.constant 0 : i32
    %c0_i32_0 = arith.constant 0 : i32
    %c0_i32_1 = arith.constant 0 : i32
    return %c0_i32, %c0_i32_0 : i32, i32
  }
  func.func @transform_4(%arg0: i32) -> (i32, i32) {
    %c0_i32 = arith.constant 0 : i32
    %c0_i32_0 = arith.constant 0 : i32
    %c0_i32_1 = arith.constant 0 : i32
    return %c0_i32, %c0_i32_0 : i32, i32
  }
  func.func @transform_5(%arg0: i32) -> (i32, i32) {
    %c0_i32 = arith.constant 0 : i32
    %c0_i32_0 = arith.constant 0 : i32
    %c0_i32_1 = arith.constant 0 : i32
    return %c0_i32, %c0_i32_0 : i32, i32
  }
  func.func @transform_6(%arg0: i32) -> (i32, i32) {
    %c0_i32 = arith.constant 0 : i32
    %c0_i32_0 = arith.constant 0 : i32
    %c0_i32_1 = arith.constant 0 : i32
    return %c0_i32, %c0_i32_0 : i32, i32
  }
  func.func @transform_7(%arg0: i32) -> (i32, i32) {
    %c0_i32 = arith.constant 0 : i32
    %c0_i32_0 = arith.constant 0 : i32
    %c0_i32_1 = arith.constant 0 : i32
    return %c0_i32, %c0_i32_0 : i32, i32
  }
  func.func @transform_8(%arg0: i32) -> (i32, i32) {
    %c0_i32 = arith.constant 0 : i32
    %c0_i32_0 = arith.constant 0 : i32
    %c0_i32_1 = arith.constant 0 : i32
    return %c0_i32, %c0_i32_0 : i32, i32
  }
  func.func @transform_9(%arg0: i32) -> (i32, i32) {
    %c0_i32 = arith.constant 0 : i32
    %c0_i32_0 = arith.constant 0 : i32
    %c0_i32_1 = arith.constant 0 : i32
    return %c0_i32, %c0_i32_0 : i32, i32
  }
  func.func @transform_10(%arg0: i32) -> (i32, i32) {
    %c0_i32 = arith.constant 0 : i32
    %c0_i32_0 = arith.constant 0 : i32
    %c0_i32_1 = arith.constant 0 : i32
    return %c0_i32, %c0_i32_0 : i32, i32
  }
  func.func @transform_11(%arg0: i32) -> (i32, i32) {
    %c0_i32 = arith.constant 0 : i32
    %c0_i32_0 = arith.constant 0 : i32
    %c0_i32_1 = arith.constant 0 : i32
    return %c0_i32, %c0_i32_0 : i32, i32
  }
  func.func @transform_12(%arg0: i32) -> (i32, i32) {
    %c0_i32 = arith.constant 0 : i32
    %c0_i32_0 = arith.constant 0 : i32
    %c0_i32_1 = arith.constant 0 : i32
    return %c0_i32, %c0_i32_0 : i32, i32
  }
  func.func @transform_13(%arg0: i32) -> (i32, i32) {
    %c0_i32 = arith.constant 0 : i32
    %c0_i32_0 = arith.constant 0 : i32
    %c0_i32_1 = arith.constant 0 : i32
    return %c0_i32, %c0_i32_0 : i32, i32
  }
  func.func @transform_14(%arg0: i32) -> (i32, i32, i32) {
    %c0_i32 = arith.constant 0 : i32
    %c0_i32_0 = arith.constant 0 : i32
    %c0_i32_1 = arith.constant 0 : i32
    return %arg0, %c0_i32, %c0_i32_0 : i32, i32, i32
  }
}

</mosaic_0001>

<llo_original>
// kernel: tpu_custom_call.1
$region0: #{tpu_custom_call.1}
  #allocation0 [shape = 'u32[]', space=smem, size = 0x4, offset = 0x4, fixed_abs, tag = 'smem constant byte address 0x4 - core index']
  #allocation1 [shape = 'u32[144,128]{1,0:T(1,128)}', space=vmem, size = 0x12000, scoped, tag = 'internal scratch']
  %s0 = inlined_call_operand.hbm [shape: f32[4,16,128], index: 0, kind: input, shape index: {}]
  %s1 = inlined_call_operand.hbm [shape: f32[4,4,16,16], index: 1, kind: input, shape index: {}]
  %s2 = inlined_call_operand.hbm [shape: f32[128,384], index: 2, kind: input, shape index: {}]
  %s3 = inlined_call_operand.vmem [shape: f32[1,384], index: 3, kind: input, shape index: {}]
  %s4 = inlined_call_operand.hbm [shape: f32[128,128], index: 4, kind: input, shape index: {}]
  %s5 = inlined_call_operand.vmem [shape: f32[1,128], index: 5, kind: input, shape index: {}]
  %s6 = inlined_call_operand.vmem [shape: f32[1,128], index: 6, kind: input, shape index: {}]
  %s7 = inlined_call_operand.vmem [shape: f32[1,128], index: 7, kind: input, shape index: {}]
  %s8 = inlined_call_operand.hbm [shape: f32[128,512], index: 8, kind: input, shape index: {}]
  %s9 = inlined_call_operand.vmem [shape: f32[1,512], index: 9, kind: input, shape index: {}]
  %s10 = inlined_call_operand.hbm [shape: f32[512,128], index: 10, kind: input, shape index: {}]
  %s11 = inlined_call_operand.vmem [shape: f32[1,128], index: 11, kind: input, shape index: {}]
  %s12 = inlined_call_operand.vmem [shape: f32[1,128], index: 12, kind: input, shape index: {}]
  %s13 = inlined_call_operand.vmem [shape: f32[1,128], index: 13, kind: input, shape index: {}]
  %s14 = inlined_call_operand.hbm [shape: f32[4,16,128], index: 14, kind: output, shape index: {}]
  %s15 = sld [smem:[#allocation0]]
  $region113: #{tpu_custom_call.1} parent=0
    _
  %s17 = ssub.s32 1, %s15
  %s18 = scalar_select 0, %s17, %s15
  $region1: #{tpu_custom_call.1} parent=0
    #allocation2 [shape = 'u8[16384]{0}', space=vmem, size = 0x4000, scoped, tag = 'input window, operand 0']
    #allocation3 [shape = 's32[2]{0}', space=sflag, size = 0x8, scoped, tag = 'scoped memory for tpu_custom_call.1']
    #allocation4 [shape = 's32[2]{0}', space=sflag, size = 0x8, scoped, tag = 'scoped memory for tpu_custom_call.1']
    #allocation5 [shape = 'u8[65536]{0}', space=vmem, size = 0x10000, scoped, tag = 'input window, operand 1']
    #allocation6 [shape = 's32[2]{0}', space=sflag, size = 0x8, scoped, tag = 'scoped memory for tpu_custom_call.1']
    #allocation7 [shape = 'u8[196608]{0}', space=vmem, size = 0x30000, scoped, tag = 'input window, operand 2, single buffered']
    #allocation8 [shape = 'u8[65536]{0}', space=vmem, size = 0x10000, scoped, tag = 'input window, operand 4, single buffered']
    #allocation9 [shape = 's32[1]{0}', space=sflag, size = 0x4, scoped, tag = 'scoped memory for tpu_custom_call.1']
    #allocation10 [shape = 'u8[262144]{0}', space=vmem, size = 0x40000, scoped, tag = 'input window, operand 8, single buffered']
    #allocation11 [shape = 'u8[262144]{0}', space=vmem, size = 0x40000, scoped, tag = 'input window, operand 10, single buffered']
    #allocation12 [shape = 's32[1]{0}', space=sflag, size = 0x4, scoped, tag = 'scoped memory for tpu_custom_call.1']
    #allocation13 [shape = 'u8[16384]{0}', space=vmem, size = 0x4000, scoped, tag = 'output window, operand 0']
    %19 = vsyncpa [#allocation3], 0
    %s20 = scalar_lea.sflag [#allocation3], 1
    %21 = vsyncpa %s20, 0
    %22 = vsyncpa [#allocation6], 0
    %s23 = scalar_lea.sflag [#allocation6], 1
    %24 = vsyncpa %s23, 0
    %25 = vsyncpa [#allocation9], 0
    %26 = vsyncpa [#allocation12], 0
    %27 = vsyncpa [#allocation4], 0
    %s28 = scalar_lea.sflag [#allocation4], 1
    %29 = vsyncpa %s28, 0
    loop: start=0, step=1, limit=6
    $region2: #{tpu_custom_call.1} parent=1 // loop_pre_header
      _
    $region3: #{tpu_custom_call.1} parent=1 // loop_header
      %s31 = sphi 0, %s35
      %p32 = scmp.ge.s32.totalorder %s31, 6
      %s41 = sphi 0, %s43
      %s44 = sphi 0, %s41
      %s45 = sphi 0, %s44
      %s61 = sphi 0, %s45
      %s67 = sphi 0, %s69
      %s70 = sphi 0, %s67
      %s71 = sphi 0, %s70
      %s87 = sphi 0, %s71
      %s91 = sphi 0, %s91
      %s93 = sphi 0, %s91
      %s94 = sphi 0, %s93
      %s108 = sphi 0, %s94
      %s112 = sphi 0, %s112
      %s114 = sphi 0, %s112
      %s115 = sphi 0, %s114
      %s129 = sphi 0, %s115
      %s133 = sphi 0, %s133
      %s135 = sphi 0, %s133
      %s136 = sphi 0, %s135
      %s150 = sphi 0, %s136
      %s154 = sphi 0, %s154
      %s156 = sphi 0, %s154
      %s157 = sphi 0, %s156
      %s171 = sphi 0, %s157
      %s175 = sphi 0, %s175
      %s177 = sphi 0, %s175
      %s178 = sphi 0, %s177
      %s192 = sphi 0, %s178
      %s196 = sphi 0, %s196
      %s198 = sphi 0, %s196
      %s199 = sphi 0, %s198
      %s213 = sphi 0, %s199
      %s217 = sphi 0, %s217
      %s219 = sphi 0, %s217
      %s220 = sphi 0, %s219
      %s234 = sphi 0, %s220
      %s238 = sphi 0, %s238
      %s240 = sphi 0, %s238
      %s241 = sphi 0, %s240
      %s255 = sphi 0, %s241
      %s259 = sphi 0, %s259
      %s261 = sphi 0, %s259
      %s262 = sphi 0, %s261
      %s276 = sphi 0, %s262
      %s280 = sphi 0, %s280
      %s282 = sphi 0, %s280
      %s283 = sphi 0, %s282
      %s297 = sphi 0, %s283
      %s301 = sphi 0, %s301
      %s303 = sphi 0, %s301
      %s304 = sphi 0, %s303
      %s318 = sphi 0, %s304
      %s322 = sphi 0, %s322
      %s324 = sphi 0, %s322
      %s325 = sphi 0, %s324
      %s339 = sphi 0, %s325
      %s345 = sphi 0, %s347
      %s348 = sphi 0, %s345
      %s349 = sphi 0, %s348
      %s365 = sphi 0, %s349
    $region4: #{tpu_custom_call.1} parent=1 // loop_header_branch
      %34 = sbr.rel (%p32) target = $region8
    $region5: #{tpu_custom_call.1} parent=1 // loop_body
      %s36 = ssub.s32 %s31, 1
      %s37 = ssub.s32 %s31, 2
      %s38 = sadd.s32 %s31, 1
      %s39 = ssub.s32 %s31, %s38
      %p40 = scmp.eq.s32.totalorder %s39, 0
      %s42 = sadd.s32 %s41, 1
      %s43 = scalar_select %p40, %s41, %s42
      %p46 = pneg %p40
      %p47 = scmp.eq.s32.totalorder %s31, 3
      %p48 = por %p46, %p47
      %p49 = scmp.ne.s32.totalorder %s41, %s44
      %p50 = scmp.eq.s32.totalorder %s31, 0
      %p51 = por %p49, %p50
      %p52 = scmp.ne.s32.totalorder %s41, %s44
      %p53 = scmp.eq.s32.totalorder %s36, 3
      %p54 = por %p52, %p53
      %p55 = scmp.ne.s32.totalorder %s44, %s45
      %p56 = scmp.eq.s32.totalorder %s36, 0
      %p57 = por %p55, %p56
      %p58 = scmp.ne.s32.totalorder %s44, %s45
      %p59 = scmp.eq.s32.totalorder %s37, 3
      %p60 = por %p58, %p59
      %p62 = scmp.ne.s32.totalorder %s45, %s61
      %p63 = scmp.eq.s32.totalorder %s37, 0
      %p64 = por %p62, %p63
      %s65 = ssub.s32 %s31, %s38
      %p66 = scmp.eq.s32.totalorder %s65, 0
      %s68 = sadd.s32 %s67, 1
      %s69 = scalar_select %p66, %s67, %s68
      %p72 = pneg %p66
      %p73 = scmp.eq.s32.totalorder %s31, 3
      %p74 = por %p72, %p73
      %p75 = scmp.ne.s32.totalorder %s67, %s70
      %p76 = scmp.eq.s32.totalorder %s31, 0
      %p77 = por %p75, %p76
      %p78 = scmp.ne.s32.totalorder %s67, %s70
      %p79 = scmp.eq.s32.totalorder %s36, 3
      %p80 = por %p78, %p79
      %p81 = scmp.ne.s32.totalorder %s70, %s71
      %p82 = scmp.eq.s32.totalorder %s36, 0
      %p83 = por %p81, %p82
      %p84 = scmp.ne.s32.totalorder %s70, %s71
      %p85 = scmp.eq.s32.totalorder %s37, 3
      %p86 = por %p84, %p85
      %p88 = scmp.ne.s32.totalorder %s71, %s87
      %p89 = scmp.eq.s32.totalorder %s37, 0
      %p90 = por %p88, %p89
      %s92 = sadd.s32 %s91, 1
      %p95 = scmp.eq.s32.totalorder %s31, 3
      %p96 = scmp.ne.s32.totalorder %s91, %s93
      %p97 = scmp.eq.s32.totalorder %s31, 0
      %p98 = por %p96, %p97
      %p99 = scmp.ne.s32.totalorder %s91, %s93
      %p100 = scmp.eq.s32.totalorder %s36, 3
      %p101 = por %p99, %p100
      %p102 = scmp.ne.s32.totalorder %s93, %s94
      %p103 = scmp.eq.s32.totalorder %s36, 0
      %p104 = por %p102, %p103
      %p105 = scmp.ne.s32.totalorder %s93, %s94
      %p106 = scmp.eq.s32.totalorder %s37, 3
      %p107 = por %p105, %p106
      %p109 = scmp.ne.s32.totalorder %s94, %s108
      %p110 = scmp.eq.s32.totalorder %s37, 0
      %p111 = por %p109, %p110
      %s113 = sadd.s32 %s112, 1
      %p116 = scmp.eq.s32.totalorder %s31, 3
      %p117 = scmp.ne.s32.totalorder %s112, %s114
      %p118 = scmp.eq.s32.totalorder %s31, 0
      %p119 = por %p117, %p118
      %p120 = scmp.ne.s32.totalorder %s112, %s114
      %p121 = scmp.eq.s32.totalorder %s36, 3
      %p122 = por %p120, %p121
      %p123 = scmp.ne.s32.totalorder %s114, %s115
      %p124 = scmp.eq.s32.totalorder %s36, 0
      %p125 = por %p123, %p124
      %p126 = scmp.ne.s32.totalorder %s114, %s115
      %p127 = scmp.eq.s32.totalorder %s37, 3
      %p128 = por %p126, %p127
      %p130 = scmp.ne.s32.totalorder %s115, %s129
      %p131 = scmp.eq.s32.totalorder %s37, 0
      %p132 = por %p130, %p131
      %s134 = sadd.s32 %s133, 1
      %p137 = scmp.eq.s32.totalorder %s31, 3
      %p138 = scmp.ne.s32.totalorder %s133, %s135
      %p139 = scmp.eq.s32.totalorder %s31, 0
      %p140 = por %p138, %p139
      %p141 = scmp.ne.s32.totalorder %s133, %s135
      %p142 = scmp.eq.s32.totalorder %s36, 3
      %p143 = por %p141, %p142
      %p144 = scmp.ne.s32.totalorder %s135, %s136
      %p145 = scmp.eq.s32.totalorder %s36, 0
      %p146 = por %p144, %p145
      %p147 = scmp.ne.s32.totalorder %s135, %s136
      %p148 = scmp.eq.s32.totalorder %s37, 3
      %p149 = por %p147, %p148
      %p151 = scmp.ne.s32.totalorder %s136, %s150
      %p152 = scmp.eq.s32.totalorder %s37, 0
      %p153 = por %p151, %p152
      %s155 = sadd.s32 %s154, 1
      %p158 = scmp.eq.s32.totalorder %s31, 3
      %p159 = scmp.ne.s32.totalorder %s154, %s156
      %p160 = scmp.eq.s32.totalorder %s31, 0
      %p161 = por %p159, %p160
      %p162 = scmp.ne.s32.totalorder %s154, %s156
      %p163 = scmp.eq.s32.totalorder %s36, 3
      %p164 = por %p162, %p163
      %p165 = scmp.ne.s32.totalorder %s156, %s157
      %p166 = scmp.eq.s32.totalorder %s36, 0
      %p167 = por %p165, %p166
      %p168 = scmp.ne.s32.totalorder %s156, %s157
      %p169 = scmp.eq.s32.totalorder %s37, 3
      %p170 = por %p168, %p169
      %p172 = scmp.ne.s32.totalorder %s157, %s171
      %p173 = scmp.eq.s32.totalorder %s37, 0
      %p174 = por %p172, %p173
      %s176 = sadd.s32 %s175, 1
      %p179 = scmp.eq.s32.totalorder %s31, 3
      %p180 = scmp.ne.s32.totalorder %s175, %s177
      %p181 = scmp.eq.s32.totalorder %s31, 0
      %p182 = por %p180, %p181
      %p183 = scmp.ne.s32.totalorder %s175, %s177
      %p184 = scmp.eq.s32.totalorder %s36, 3
      %p185 = por %p183, %p184
      %p186 = scmp.ne.s32.totalorder %s177, %s178
      %p187 = scmp.eq.s32.totalorder %s36, 0
      %p188 = por %p186, %p187
      %p189 = scmp.ne.s32.totalorder %s177, %s178
      %p190 = scmp.eq.s32.totalorder %s37, 3
      %p191 = por %p189, %p190
      %p193 = scmp.ne.s32.totalorder %s178, %s192
      %p194 = scmp.eq.s32.totalorder %s37, 0
      %p195 = por %p193, %p194
      %s197 = sadd.s32 %s196, 1
      %p200 = scmp.eq.s32.totalorder %s31, 3
      %p201 = scmp.ne.s32.totalorder %s196, %s198
      %p202 = scmp.eq.s32.totalorder %s31, 0
      %p203 = por %p201, %p202
      %p204 = scmp.ne.s32.totalorder %s196, %s198
      %p205 = scmp.eq.s32.totalorder %s36, 3
      %p206 = por %p204, %p205
      %p207 = scmp.ne.s32.totalorder %s198, %s199
      %p208 = scmp.eq.s32.totalorder %s36, 0
      %p209 = por %p207, %p208
      %p210 = scmp.ne.s32.totalorder %s198, %s199
      %p211 = scmp.eq.s32.totalorder %s37, 3
      %p212 = por %p210, %p211
      %p214 = scmp.ne.s32.totalorder %s199, %s213
      %p215 = scmp.eq.s32.totalorder %s37, 0
      %p216 = por %p214, %p215
      %s218 = sadd.s32 %s217, 1
      %p221 = scmp.eq.s32.totalorder %s31, 3
      %p222 = scmp.ne.s32.totalorder %s217, %s219
      %p223 = scmp.eq.s32.totalorder %s31, 0
      %p224 = por %p222, %p223
      %p225 = scmp.ne.s32.totalorder %s217, %s219
      %p226 = scmp.eq.s32.totalorder %s36, 3
      %p227 = por %p225, %p226
      %p228 = scmp.ne.s32.totalorder %s219, %s220
      %p229 = scmp.eq.s32.totalorder %s36, 0
      %p230 = por %p228, %p229
      %p231 = scmp.ne.s32.totalorder %s219, %s220
      %p232 = scmp.eq.s32.totalorder %s37, 3
      %p233 = por %p231, %p232
      %p235 = scmp.ne.s32.totalorder %s220, %s234
      %p236 = scmp.eq.s32.totalorder %s37, 0
      %p237 = por %p235, %p236
      %s239 = sadd.s32 %s238, 1
      %p242 = scmp.eq.s32.totalorder %s31, 3
      %p243 = scmp.ne.s32.totalorder %s238, %s240
      %p244 = scmp.eq.s32.totalorder %s31, 0
      %p245 = por %p243, %p244
      %p246 = scmp.ne.s32.totalorder %s238, %s240
      %p247 = scmp.eq.s32.totalorder %s36, 3
      %p248 = por %p246, %p247
      %p249 = scmp.ne.s32.totalorder %s240, %s241
      %p250 = scmp.eq.s32.totalorder %s36, 0
      %p251 = por %p249, %p250
      %p252 = scmp.ne.s32.totalorder %s240, %s241
      %p253 = scmp.eq.s32.totalorder %s37, 3
      %p254 = por %p252, %p253
      %p256 = scmp.ne.s32.totalorder %s241, %s255
      %p257 = scmp.eq.s32.totalorder %s37, 0
      %p258 = por %p256, %p257
      %s260 = sadd.s32 %s259, 1
      %p263 = scmp.eq.s32.totalorder %s31, 3
      %p264 = scmp.ne.s32.totalorder %s259, %s261
      %p265 = scmp.eq.s32.totalorder %s31, 0
      %p266 = por %p264, %p265
      %p267 = scmp.ne.s32.totalorder %s259, %s261
      %p268 = scmp.eq.s32.totalorder %s36, 3
      %p269 = por %p267, %p268
      %p270 = scmp.ne.s32.totalorder %s261, %s262
      %p271 = scmp.eq.s32.totalorder %s36, 0
      %p272 = por %p270, %p271
      %p273 = scmp.ne.s32.totalorder %s261, %s262
      %p274 = scmp.eq.s32.totalorder %s37, 3
      %p275 = por %p273, %p274
      %p277 = scmp.ne.s32.totalorder %s262, %s276
      %p278 = scmp.eq.s32.totalorder %s37, 0
      %p279 = por %p277, %p278
      %s281 = sadd.s32 %s280, 1
      %p284 = scmp.eq.s32.totalorder %s31, 3
      %p285 = scmp.ne.s32.totalorder %s280, %s282
      %p286 = scmp.eq.s32.totalorder %s31, 0
      %p287 = por %p285, %p286
      %p288 = scmp.ne.s32.totalorder %s280, %s282
      %p289 = scmp.eq.s32.totalorder %s36, 3
      %p290 = por %p288, %p289
      %p291 = scmp.ne.s32.totalorder %s282, %s283
      %p292 = scmp.eq.s32.totalorder %s36, 0
      %p293 = por %p291, %p292
      %p294 = scmp.ne.s32.totalorder %s282, %s283
      %p295 = scmp.eq.s32.totalorder %s37, 3
      %p296 = por %p294, %p295
      %p298 = scmp.ne.s32.totalorder %s283, %s297
      %p299 = scmp.eq.s32.totalorder %s37, 0
      %p300 = por %p298, %p299
      %s302 = sadd.s32 %s301, 1
      %p305 = scmp.eq.s32.totalorder %s31, 3
      %p306 = scmp.ne.s32.totalorder %s301, %s303
      %p307 = scmp.eq.s32.totalorder %s31, 0
      %p308 = por %p306, %p307
      %p309 = scmp.ne.s32.totalorder %s301, %s303
      %p310 = scmp.eq.s32.totalorder %s36, 3
      %p311 = por %p309, %p310
      %p312 = scmp.ne.s32.totalorder %s303, %s304
      %p313 = scmp.eq.s32.totalorder %s36, 0
      %p314 = por %p312, %p313
      %p315 = scmp.ne.s32.totalorder %s303, %s304
      %p316 = scmp.eq.s32.totalorder %s37, 3
      %p317 = por %p315, %p316
      %p319 = scmp.ne.s32.totalorder %s304, %s318
      %p320 = scmp.eq.s32.totalorder %s37, 0
      %p321 = por %p319, %p320
      %s323 = sadd.s32 %s322, 1
      %p326 = scmp.eq.s32.totalorder %s31, 3
      %p327 = scmp.ne.s32.totalorder %s322, %s324
      %p328 = scmp.eq.s32.totalorder %s31, 0
      %p329 = por %p327, %p328
      %p330 = scmp.ne.s32.totalorder %s322, %s324
      %p331 = scmp.eq.s32.totalorder %s36, 3
      %p332 = por %p330, %p331
      %p333 = scmp.ne.s32.totalorder %s324, %s325
      %p334 = scmp.eq.s32.totalorder %s36, 0
      %p335 = por %p333, %p334
      %p336 = scmp.ne.s32.totalorder %s324, %s325
      %p337 = scmp.eq.s32.totalorder %s37, 3
      %p338 = por %p336, %p337
      %p340 = scmp.ne.s32.totalorder %s325, %s339
      %p341 = scmp.eq.s32.totalorder %s37, 0
      %p342 = por %p340, %p341
      %s343 = ssub.s32 %s31, %s38
      %p344 = scmp.eq.s32.totalorder %s343, 0
      %s346 = sadd.s32 %s345, 1
      %s347 = scalar_select %p344, %s345, %s346
      %p350 = pneg %p344
      %p351 = scmp.eq.s32.totalorder %s31, 3
      %p352 = por %p350, %p351
      %p353 = scmp.ne.s32.totalorder %s345, %s348
      %p354 = scmp.eq.s32.totalorder %s31, 0
      %p355 = por %p353, %p354
      %p356 = scmp.ne.s32.totalorder %s345, %s348
      %p357 = scmp.eq.s32.totalorder %s36, 3
      %p358 = por %p356, %p357
      %p359 = scmp.ne.s32.totalorder %s348, %s349
      %p360 = scmp.eq.s32.totalorder %s36, 0
      %p361 = por %p359, %p360
      %p362 = scmp.ne.s32.totalorder %s348, %s349
      %p363 = scmp.eq.s32.totalorder %s37, 3
      %p364 = por %p362, %p363
      %p366 = scmp.ne.s32.totalorder %s349, %s365
      %p367 = scmp.eq.s32.totalorder %s37, 0
      %p368 = por %p366, %p367
      %p369 = scmp.le.s32.totalorder 1, %s31
      %p370 = scmp.lt.s32.totalorder %s31, 5
      %p371 = pnand %p369, %p370
      %p372 = pneg %p371
      // Predicated region
      $region9: #{tpu_custom_call.1} parent=5 // pred_check
        _
      $region10: #{tpu_custom_call.1} parent=5 // pred_check_branch
        %374 = sbr.rel (%p371) target = $region12
      $region11: #{tpu_custom_call.1} parent=5 // pred_region
        %s375 = ssub.s32 %s31, 1
        // Predicated region
        $region13: #{tpu_custom_call.1} parent=11 // pred_check
          %p376 = pneg %p104
        $region14: #{tpu_custom_call.1} parent=11 // pred_check_branch
          %378 = sbr.rel (%p376) target = $region16
        $region15: #{tpu_custom_call.1} parent=11 // pred_region
          %s380 = ssub.s32 6144, 6144
          %381 = vsyncadd [#allocation6], %s380
          %s382 = sshll.u32 [#allocation7], 4
          %s383 = int_to_ptr.vmem [resolvable:$true] %s382
          %388 = dma.hbm_to_vmem [thread:$0]  %s2, 6144, %s383, [#allocation6], 384, 384, 24
        $region16: #{tpu_custom_call.1} parent=11 // pred_fallthru
          _
        // Predicated region
        $region17: #{tpu_custom_call.1} parent=11 // pred_check
          %p389 = pneg %p125
        $region18: #{tpu_custom_call.1} parent=11 // pred_check_branch
          %391 = sbr.rel (%p389) target = $region20
        $region19: #{tpu_custom_call.1} parent=11 // pred_region
          _
        $region20: #{tpu_custom_call.1} parent=11 // pred_fallthru
          _
        // Predicated region
        $region21: #{tpu_custom_call.1} parent=11 // pred_check
          %p392 = pneg %p146
        $region22: #{tpu_custom_call.1} parent=11 // pred_check_branch
          %394 = sbr.rel (%p392) target = $region24
        $region23: #{tpu_custom_call.1} parent=11 // pred_region
          %s396 = ssub.s32 2048, 2048
          %397 = vsyncadd [#allocation9], %s396
          %s398 = sshll.u32 [#allocation8], 4
          %s399 = int_to_ptr.vmem [resolvable:$true] %s398
          %404 = dma.hbm_to_vmem [thread:$0]  %s4, 2048, %s399, [#allocation9], 128, 128, 8
        $region24: #{tpu_custom_call.1} parent=11 // pred_fallthru
          _
        // Predicated region
        $region25: #{tpu_custom_call.1} parent=11 // pred_check
          %p405 = pneg %p167
        $region26: #{tpu_custom_call.1} parent=11 // pred_check_branch
          %407 = sbr.rel (%p405) target = $region28
        $region27: #{tpu_custom_call.1} parent=11 // pred_region
          _
        $region28: #{tpu_custom_call.1} parent=11 // pred_fallthru
          _
        // Predicated region
        $region29: #{tpu_custom_call.1} parent=11 // pred_check
          %p408 = pneg %p188
        $region30: #{tpu_custom_call.1} parent=11 // pred_check_branch
          %410 = sbr.rel (%p408) target = $region32
        $region31: #{tpu_custom_call.1} parent=11 // pred_region
          _
        $region32: #{tpu_custom_call.1} parent=11 // pred_fallthru
          _
        // Predicated region
        $region33: #{tpu_custom_call.1} parent=11 // pred_check
          %p411 = pneg %p209
        $region34: #{tpu_custom_call.1} parent=11 // pred_check_branch
          %413 = sbr.rel (%p411) target = $region36
        $region35: #{tpu_custom_call.1} parent=11 // pred_region
          _
        $region36: #{tpu_custom_call.1} parent=11 // pred_fallthru
          _
        // Predicated region
        $region37: #{tpu_custom_call.1} parent=11 // pred_check
          %p414 = pneg %p230
        $region38: #{tpu_custom_call.1} parent=11 // pred_check_branch
          %416 = sbr.rel (%p414) target = $region40
        $region39: #{tpu_custom_call.1} parent=11 // pred_region
          %s418 = ssub.s32 8192, 8192
          %419 = vsyncadd [#allocation9], %s418
          %s420 = sshll.u32 [#allocation10], 4
          %s421 = int_to_ptr.vmem [resolvable:$true] %s420
          %426 = dma.hbm_to_vmem [thread:$0]  %s8, 8192, %s421, [#allocation9], 512, 512, 32
        $region40: #{tpu_custom_call.1} parent=11 // pred_fallthru
          _
        // Predicated region
        $region41: #{tpu_custom_call.1} parent=11 // pred_check
          %p427 = pneg %p251
        $region42: #{tpu_custom_call.1} parent=11 // pred_check_branch
          %429 = sbr.rel (%p427) target = $region44
        $region43: #{tpu_custom_call.1} parent=11 // pred_region
          _
        $region44: #{tpu_custom_call.1} parent=11 // pred_fallthru
          _
        // Predicated region
        $region45: #{tpu_custom_call.1} parent=11 // pred_check
          %p430 = pneg %p272
        $region46: #{tpu_custom_call.1} parent=11 // pred_check_branch
          %432 = sbr.rel (%p430) target = $region48
        $region47: #{tpu_custom_call.1} parent=11 // pred_region
          %s434 = ssub.s32 8192, 8192
          %435 = vsyncadd [#allocation12], %s434
          %s436 = sshll.u32 [#allocation11], 4
          %s437 = int_to_ptr.vmem [resolvable:$true] %s436
          %442 = dma.hbm_to_vmem [thread:$0]  %s10, 8192, %s437, [#allocation12], 128, 128, 8
        $region48: #{tpu_custom_call.1} parent=11 // pred_fallthru
          _
        // Predicated region
        $region49: #{tpu_custom_call.1} parent=11 // pred_check
          %p443 = pneg %p293
        $region50: #{tpu_custom_call.1} parent=11 // pred_check_branch
          %445 = sbr.rel (%p443) target = $region52
        $region51: #{tpu_custom_call.1} parent=11 // pred_region
          _
        $region52: #{tpu_custom_call.1} parent=11 // pred_fallthru
          _
        // Predicated region
        $region53: #{tpu_custom_call.1} parent=11 // pred_check
          %p446 = pneg %p314
        $region54: #{tpu_custom_call.1} parent=11 // pred_check_branch
          %448 = sbr.rel (%p446) target = $region56
        $region55: #{tpu_custom_call.1} parent=11 // pred_region
          _
        $region56: #{tpu_custom_call.1} parent=11 // pred_fallthru
          _
        // Predicated region
        $region57: #{tpu_custom_call.1} parent=11 // pred_check
          %p449 = pneg %p335
        $region58: #{tpu_custom_call.1} parent=11 // pred_check_branch
          %451 = sbr.rel (%p449) target = $region60
        $region59: #{tpu_custom_call.1} parent=11 // pred_region
          _
        $region60: #{tpu_custom_call.1} parent=11 // pred_fallthru
          _
      $region12: #{tpu_custom_call.1} parent=5 // pred_fallthru
        _
      %p452 = scmp.lt.s32.totalorder %s31, 4
      // Predicated region
      $region61: #{tpu_custom_call.1} parent=5 // pred_check
        %p453 = pneg %p452
      $region62: #{tpu_custom_call.1} parent=5 // pred_check_branch
        %455 = sbr.rel (%p453) target = $region64
      $region63: #{tpu_custom_call.1} parent=5 // pred_region
        // Predicated region
        $region65: #{tpu_custom_call.1} parent=63 // pred_check
          %p456 = pneg %p51
        $region66: #{tpu_custom_call.1} parent=63 // pred_check_branch
          %458 = sbr.rel (%p456) target = $region68
        $region67: #{tpu_custom_call.1} parent=63 // pred_region
          %s459 = sand.u32 %s41, 1
          %s460 = scalar_lea.sflag [#allocation3], %s459
          %s461 = sand.u32 %s41, 1
          %s462 = smul.addr %s461, 16
          %s463 = scalar_lea.vmem [#allocation2], %s462
          %s465 = ssub.s32 256, 256
          %466 = vsyncadd %s460, %s465
          %s467 = smul.addr %s31, 2
          %s468 = smul.addr %s467, 128
          %s469 = scalar_lea.hbm %s0, %s468
          %s470 = sshll.u32 %s463, 4
          %s471 = int_to_ptr.vmem [resolvable:$true] %s470
          %476 = dma.hbm_to_vmem [thread:$0]  %s469, 256, %s471, %s460, 128, 128, 8
        $region68: #{tpu_custom_call.1} parent=63 // pred_fallthru
          _
        // Predicated region
        $region69: #{tpu_custom_call.1} parent=63 // pred_check
          %p477 = pneg %p77
        $region70: #{tpu_custom_call.1} parent=63 // pred_check_branch
          %479 = sbr.rel (%p477) target = $region72
        $region71: #{tpu_custom_call.1} parent=63 // pred_region
          %s480 = sand.u32 %s31, 1
          %s481 = scalar_lea.sflag [#allocation6], %s480
          %s482 = sand.u32 %s67, 1
          %s483 = smul.addr %s482, 64
          %s484 = scalar_lea.vmem [#allocation5], %s483
          %s486 = ssub.s32 1024, 1024
          %487 = vsyncadd %s481, %s486
          %s488 = smul.addr %s31, 8
          %s489 = smul.addr %s488, 128
          %s490 = scalar_lea.hbm %s1, %s489
          %s491 = sshll.u32 %s484, 4
          %s492 = int_to_ptr.vmem [resolvable:$true] %s491
          %497 = dma.hbm_to_vmem [thread:$0]  %s490, 1024, %s492, %s481, 128, 128, 8
        $region72: #{tpu_custom_call.1} parent=63 // pred_fallthru
          _
      $region64: #{tpu_custom_call.1} parent=5 // pred_fallthru
        _
      %p498 = scmp.le.s32.totalorder 1, %s31
      %p499 = scmp.lt.s32.totalorder %s31, 5
      %p500 = pnand %p498, %p499
      %p501 = pneg %p500
      // Predicated region
      $region73: #{tpu_custom_call.1} parent=5 // pred_check
        _
      $region74: #{tpu_custom_call.1} parent=5 // pred_check_branch
        %503 = sbr.rel (%p500) target = $region76
      $region75: #{tpu_custom_call.1} parent=5 // pred_region
        %s504 = ssub.s32 %s31, 1
        %s505 = sand.u32 %s44, 1
        %s506 = scalar_lea.sflag [#allocation3], %s505
        %s507 = sand.u32 %s44, 1
        %s508 = smul.addr %s507, 16
        %s509 = scalar_lea.vmem [#allocation2], %s508
        // Predicated region
        $region77: #{tpu_custom_call.1} parent=75 // pred_check
          %p510 = pneg %p57
        $region78: #{tpu_custom_call.1} parent=75 // pred_check_branch
          %512 = sbr.rel (%p510) target = $region80
        $region79: #{tpu_custom_call.1} parent=75 // pred_region
          %513 = dma.done %s506, 256
        $region80: #{tpu_custom_call.1} parent=75 // pred_fallthru
          _
        %s514 = sand.u32 %s36, 1
        %s515 = scalar_lea.sflag [#allocation6], %s514
        %s516 = sand.u32 %s70, 1
        %s517 = smul.addr %s516, 64
        %s518 = scalar_lea.vmem [#allocation5], %s517
        // Predicated region
        $region81: #{tpu_custom_call.1} parent=75 // pred_check
          %p519 = pneg %p83
        $region82: #{tpu_custom_call.1} parent=75 // pred_check_branch
          %521 = sbr.rel (%p519) target = $region84
        $region83: #{tpu_custom_call.1} parent=75 // pred_region
          %522 = dma.done %s515, 1024
        $region84: #{tpu_custom_call.1} parent=75 // pred_fallthru
          _
        // Predicated region
        $region85: #{tpu_custom_call.1} parent=75 // pred_check
          %p523 = pneg %p104
        $region86: #{tpu_custom_call.1} parent=75 // pred_check_branch
          %525 = sbr.rel (%p523) target = $region88
        $region87: #{tpu_custom_call.1} parent=75 // pred_region
          %526 = dma.done [#allocation6], 6144
        $region88: #{tpu_custom_call.1} parent=75 // pred_fallthru
          _
        // Predicated region
        $region89: #{tpu_custom_call.1} parent=75 // pred_check
          %p527 = pneg %p146
        $region90: #{tpu_custom_call.1} parent=75 // pred_check_branch
          %529 = sbr.rel (%p527) target = $region92
        $region91: #{tpu_custom_call.1} parent=75 // pred_region
          %530 = dma.done [#allocation9], 2048
        $region92: #{tpu_custom_call.1} parent=75 // pred_fallthru
          _
        // Predicated region
        $region93: #{tpu_custom_call.1} parent=75 // pred_check
          %p531 = pneg %p230
        $region94: #{tpu_custom_call.1} parent=75 // pred_check_branch
          %533 = sbr.rel (%p531) target = $region96
        $region95: #{tpu_custom_call.1} parent=75 // pred_region
          %534 = dma.done [#allocation9], 8192
        $region96: #{tpu_custom_call.1} parent=75 // pred_fallthru
          _
        // Predicated region
        $region97: #{tpu_custom_call.1} parent=75 // pred_check
          %p535 = pneg %p272
        $region98: #{tpu_custom_call.1} parent=75 // pred_check_branch
          %537 = sbr.rel (%p535) target = $region100
        $region99: #{tpu_custom_call.1} parent=75 // pred_region
          %538 = dma.done [#allocation12], 8192
        $region100: #{tpu_custom_call.1} parent=75 // pred_fallthru
          _
        %s539 = sand.u32 %s44, 1
        %s540 = scalar_lea.sflag [#allocation3], %s539
        %s541 = sand.u32 %s44, 1
        %s542 = smul.addr %s541, 16
        %s543 = scalar_lea.vmem [#allocation2], %s542
        %p544 = pneg %p57
        %p545 = pneg %p54
        %s546 = sand.u32 %s36, 1
        %s547 = scalar_lea.sflag [#allocation6], %s546
        %s548 = sand.u32 %s70, 1
        %s549 = smul.addr %s548, 64
        %s550 = scalar_lea.vmem [#allocation5], %s549
        %p551 = pneg %p83
        %p552 = pneg %p80
        %p553 = pneg %p104
        %p554 = pneg %p101
        %p555 = pneg %p125
        %p556 = pneg %p122
        %p557 = pneg %p146
        %p558 = pneg %p143
        %p559 = pneg %p167
        %p560 = pneg %p164
        %p561 = pneg %p188
        %p562 = pneg %p185
        %p563 = pneg %p209
        %p564 = pneg %p206
        %p565 = pneg %p230
        %p566 = pneg %p227
        %p567 = pneg %p251
        %p568 = pneg %p248
        %p569 = pneg %p272
        %p570 = pneg %p269
        %p571 = pneg %p293
        %p572 = pneg %p290
        %p573 = pneg %p314
        %p574 = pneg %p311
        %p575 = pneg %p335
        %p576 = pneg %p332
        %p577 = pneg %p361
        %p578 = pneg %p358
        %s579 = sand.u32 %s348, 1
        %s580 = scalar_lea.sflag [#allocation4], %s579
        %s581 = sand.u32 %s348, 1
        %s582 = smul.addr %s581, 16
        %s583 = scalar_lea.vmem [#allocation13], %s582
        %v584 = vld [vmem:[%s509] sm:$0xff]
        %v585 = vld [vmem:[%s509 + $0x8] sm:$0xff]
        %v586 = vld [vmem:[%s518] sm:$0xff]
        %v587 = vld [vmem:[%s518 + $0x8] sm:$0xff]
        %v588 = vld [vmem:[%s518 + $0x10] sm:$0xff]
        %v589 = vld [vmem:[%s518 + $0x18] sm:$0xff]
        %v590 = vld [vmem:[%s518 + $0x20] sm:$0xff]
        %v591 = vld [vmem:[%s518 + $0x28] sm:$0xff]
        %v592 = vld [vmem:[%s518 + $0x30] sm:$0xff]
        %v593 = vld [vmem:[%s518 + $0x38] sm:$0xff]
        %v594 = vld [vmem:[#allocation7] sm:$0xff]
        %v595 = vld [vmem:[#allocation7 + $0x8] sm:$0xff]
        %v596 = vld [vmem:[#allocation7 + $0x10] sm:$0xff]
        %v597 = vld [vmem:[#allocation7 + $0x18] sm:$0xff]
        %v598 = vld [vmem:[#allocation7 + $0x20] sm:$0xff]
        %v599 = vld [vmem:[#allocation7 + $0x28] sm:$0xff]
        %v600 = vld [vmem:[#allocation7 + $0x30] sm:$0xff]
        %v601 = vld [vmem:[#allocation7 + $0x38] sm:$0xff]
        %v602 = vld [vmem:[#allocation7 + $0x40] sm:$0xff]
        %v603 = vld [vmem:[#allocation7 + $0x48] sm:$0xff]
        %v604 = vld [vmem:[#allocation7 + $0x50] sm:$0xff]
        %v605 = vld [vmem:[#allocation7 + $0x58] sm:$0xff]
        %v606 = vld [vmem:[#allocation7 + $0x60] sm:$0xff]
        %v607 = vld [vmem:[#allocation7 + $0x68] sm:$0xff]
        %v608 = vld [vmem:[#allocation7 + $0x70] sm:$0xff]
        %v609 = vld [vmem:[#allocation7 + $0x78] sm:$0xff]
        %v610 = vld [vmem:[#allocation7 + $0x80] sm:$0xff]
        %v611 = vld [vmem:[#allocation7 + $0x88] sm:$0xff]
        %v612 = vld [vmem:[#allocation7 + $0x90] sm:$0xff]
        %v613 = vld [vmem:[#allocation7 + $0x98] sm:$0xff]
        %v614 = vld [vmem:[#allocation7 + $0xa0] sm:$0xff]
        %v615 = vld [vmem:[#allocation7 + $0xa8] sm:$0xff]
        %v616 = vld [vmem:[#allocation7 + $0xb0] sm:$0xff]
        %v617 = vld [vmem:[#allocation7 + $0xb8] sm:$0xff]
        %v618 = vld [vmem:[#allocation7 + $0xc0] sm:$0xff]
        %v619 = vld [vmem:[#allocation7 + $0xc8] sm:$0xff]
        %v620 = vld [vmem:[#allocation7 + $0xd0] sm:$0xff]
        %v621 = vld [vmem:[#allocation7 + $0xd8] sm:$0xff]
        %v622 = vld [vmem:[#allocation7 + $0xe0] sm:$0xff]
        %v623 = vld [vmem:[#allocation7 + $0xe8] sm:$0xff]
        %v624 = vld [vmem:[#allocation7 + $0xf0] sm:$0xff]
        %v625 = vld [vmem:[#allocation7 + $0xf8] sm:$0xff]
        %v626 = vld [vmem:[#allocation7 + $0x100] sm:$0xff]
        %v627 = vld [vmem:[#allocation7 + $0x108] sm:$0xff]
        %v628 = vld [vmem:[#allocation7 + $0x110] sm:$0xff]
        %v629 = vld [vmem:[#allocation7 + $0x118] sm:$0xff]
        %v630 = vld [vmem:[#allocation7 + $0x120] sm:$0xff]
        %v631 = vld [vmem:[#allocation7 + $0x128] sm:$0xff]
        %v632 = vld [vmem:[#allocation7 + $0x130] sm:$0xff]
        %v633 = vld [vmem:[#allocation7 + $0x138] sm:$0xff]
        %v634 = vld [vmem:[#allocation7 + $0x140] sm:$0xff]
        %v635 = vld [vmem:[#allocation7 + $0x148] sm:$0xff]
        %v636 = vld [vmem:[#allocation7 + $0x150] sm:$0xff]
        %v637 = vld [vmem:[#allocation7 + $0x158] sm:$0xff]
        %v638 = vld [vmem:[#allocation7 + $0x160] sm:$0xff]
        %v639 = vld [vmem:[#allocation7 + $0x168] sm:$0xff]
        %v640 = vld [vmem:[#allocation7 + $0x170] sm:$0xff]
        %v641 = vld [vmem:[#allocation7 + $0x178] sm:$0xff]
        %v642 = vld [vmem:[#allocation8] sm:$0xff]
        %v643 = vld [vmem:[#allocation8 + $0x8] sm:$0xff]
        %v644 = vld [vmem:[#allocation8 + $0x10] sm:$0xff]
        %v645 = vld [vmem:[#allocation8 + $0x18] sm:$0xff]
        %v646 = vld [vmem:[#allocation8 + $0x20] sm:$0xff]
        %v647 = vld [vmem:[#allocation8 + $0x28] sm:$0xff]
        %v648 = vld [vmem:[#allocation8 + $0x30] sm:$0xff]
        %v649 = vld [vmem:[#allocation8 + $0x38] sm:$0xff]
        %v650 = vld [vmem:[#allocation8 + $0x40] sm:$0xff]
        %v651 = vld [vmem:[#allocation8 + $0x48] sm:$0xff]
        %v652 = vld [vmem:[#allocation8 + $0x50] sm:$0xff]
        %v653 = vld [vmem:[#allocation8 + $0x58] sm:$0xff]
        %v654 = vld [vmem:[#allocation8 + $0x60] sm:$0xff]
        %v655 = vld [vmem:[#allocation8 + $0x68] sm:$0xff]
        %v656 = vld [vmem:[#allocation8 + $0x70] sm:$0xff]
        %v657 = vld [vmem:[#allocation8 + $0x78] sm:$0xff]
        %v658 = vld [vmem:[#allocation10] sm:$0xff]
        %v659 = vld [vmem:[#allocation10 + $0x8] sm:$0xff]
        %v660 = vld [vmem:[#allocation10 + $0x10] sm:$0xff]
        %v661 = vld [vmem:[#allocation10 + $0x18] sm:$0xff]
        %v662 = vld [vmem:[#allocation10 + $0x20] sm:$0xff]
        %v663 = vld [vmem:[#allocation10 + $0x28] sm:$0xff]
        %v664 = vld [vmem:[#allocation10 + $0x30] sm:$0xff]
        %v665 = vld [vmem:[#allocation10 + $0x38] sm:$0xff]
        %v666 = vld [vmem:[#allocation10 + $0x40] sm:$0xff]
        %v667 = vld [vmem:[#allocation10 + $0x48] sm:$0xff]
        %v668 = vld [vmem:[#allocation10 + $0x50] sm:$0xff]
        %v669 = vld [vmem:[#allocation10 + $0x58] sm:$0xff]
        %v670 = vld [vmem:[#allocation10 + $0x60] sm:$0xff]
        %v671 = vld [vmem:[#allocation10 + $0x68] sm:$0xff]
        %v672 = vld [vmem:[#allocation10 + $0x70] sm:$0xff]
        %v673 = vld [vmem:[#allocation10 + $0x78] sm:$0xff]
        %v674 = vld [vmem:[#allocation10 + $0x80] sm:$0xff]
        %v675 = vld [vmem:[#allocation10 + $0x88] sm:$0xff]
        %v676 = vld [vmem:[#allocation10 + $0x90] sm:$0xff]
        %v677 = vld [vmem:[#allocation10 + $0x98] sm:$0xff]
        %v678 = vld [vmem:[#allocation10 + $0xa0] sm:$0xff]
        %v679 = vld [vmem:[#allocation10 + $0xa8] sm:$0xff]
        %v680 = vld [vmem:[#allocation10 + $0xb0] sm:$0xff]
        %v681 = vld [vmem:[#allocation10 + $0xb8] sm:$0xff]
        %v682 = vld [vmem:[#allocation10 + $0xc0] sm:$0xff]
        %v683 = vld [vmem:[#allocation10 + $0xc8] sm:$0xff]
        %v684 = vld [vmem:[#allocation10 + $0xd0] sm:$0xff]
        %v685 = vld [vmem:[#allocation10 + $0xd8] sm:$0xff]
        %v686 = vld [vmem:[#allocation10 + $0xe0] sm:$0xff]
        %v687 = vld [vmem:[#allocation10 + $0xe8] sm:$0xff]
        %v688 = vld [vmem:[#allocation10 + $0xf0] sm:$0xff]
        %v689 = vld [vmem:[#allocation10 + $0xf8] sm:$0xff]
        %v690 = vld [vmem:[#allocation10 + $0x100] sm:$0xff]
        %v691 = vld [vmem:[#allocation10 + $0x108] sm:$0xff]
        %v692 = vld [vmem:[#allocation10 + $0x110] sm:$0xff]
        %v693 = vld [vmem:[#allocation10 + $0x118] sm:$0xff]
        %v694 = vld [vmem:[#allocation10 + $0x120] sm:$0xff]
        %v695 = vld [vmem:[#allocation10 + $0x128] sm:$0xff]
        %v696 = vld [vmem:[#allocation10 + $0x130] sm:$0xff]
        %v697 = vld [vmem:[#allocation10 + $0x138] sm:$0xff]
        %v698 = vld [vmem:[#allocation10 + $0x140] sm:$0xff]
        %v699 = vld [vmem:[#allocation10 + $0x148] sm:$0xff]
        %v700 = vld [vmem:[#allocation10 + $0x150] sm:$0xff]
        %v701 = vld [vmem:[#allocation10 + $0x158] sm:$0xff]
        %v702 = vld [vmem:[#allocation10 + $0x160] sm:$0xff]
        %v703 = vld [vmem:[#allocation10 + $0x168] sm:$0xff]
        %v704 = vld [vmem:[#allocation10 + $0x170] sm:$0xff]
        %v705 = vld [vmem:[#allocation10 + $0x178] sm:$0xff]
        %v706 = vld [vmem:[#allocation10 + $0x180] sm:$0xff]
        %v707 = vld [vmem:[#allocation10 + $0x188] sm:$0xff]
        %v708 = vld [vmem:[#allocation10 + $0x190] sm:$0xff]
        %v709 = vld [vmem:[#allocation10 + $0x198] sm:$0xff]
        %v710 = vld [vmem:[#allocation10 + $0x1a0] sm:$0xff]
        %v711 = vld [vmem:[#allocation10 + $0x1a8] sm:$0xff]
        %v712 = vld [vmem:[#allocation10 + $0x1b0] sm:$0xff]
        %v713 = vld [vmem:[#allocation10 + $0x1b8] sm:$0xff]
        %v714 = vld [vmem:[#allocation10 + $0x1c0] sm:$0xff]
        %v715 = vld [vmem:[#allocation10 + $0x1c8] sm:$0xff]
        %v716 = vld [vmem:[#allocation10 + $0x1d0] sm:$0xff]
        %v717 = vld [vmem:[#allocation10 + $0x1d8] sm:$0xff]
        %v718 = vld [vmem:[#allocation10 + $0x1e0] sm:$0xff]
        %v719 = vld [vmem:[#allocation10 + $0x1e8] sm:$0xff]
        %v720 = vld [vmem:[#allocation10 + $0x1f0] sm:$0xff]
        %v721 = vld [vmem:[#allocation10 + $0x1f8] sm:$0xff]
        %v722 = vld [vmem:[#allocation11] sm:$0xff]
        %v723 = vld [vmem:[#allocation11 + $0x8] sm:$0xff]
        %v724 = vld [vmem:[#allocation11 + $0x10] sm:$0xff]
        %v725 = vld [vmem:[#allocation11 + $0x18] sm:$0xff]
        %v726 = vld [vmem:[#allocation11 + $0x20] sm:$0xff]
        %v727 = vld [vmem:[#allocation11 + $0x28] sm:$0xff]
        %v728 = vld [vmem:[#allocation11 + $0x30] sm:$0xff]
        %v729 = vld [vmem:[#allocation11 + $0x38] sm:$0xff]
        %v730 = vld [vmem:[#allocation11 + $0x40] sm:$0xff]
        %v731 = vld [vmem:[#allocation11 + $0x48] sm:$0xff]
        %v732 = vld [vmem:[#allocation11 + $0x50] sm:$0xff]
        %v733 = vld [vmem:[#allocation11 + $0x58] sm:$0xff]
        %v734 = vld [vmem:[#allocation11 + $0x60] sm:$0xff]
        %v735 = vld [vmem:[#allocation11 + $0x68] sm:$0xff]
        %v736 = vld [vmem:[#allocation11 + $0x70] sm:$0xff]
        %v737 = vld [vmem:[#allocation11 + $0x78] sm:$0xff]
        %v738 = vld [vmem:[#allocation11 + $0x80] sm:$0xff]
        %v739 = vld [vmem:[#allocation11 + $0x88] sm:$0xff]
        %v740 = vld [vmem:[#allocation11 + $0x90] sm:$0xff]
        %v741 = vld [vmem:[#allocation11 + $0x98] sm:$0xff]
        %v742 = vld [vmem:[#allocation11 + $0xa0] sm:$0xff]
        %v743 = vld [vmem:[#allocation11 + $0xa8] sm:$0xff]
        %v744 = vld [vmem:[#allocation11 + $0xb0] sm:$0xff]
        %v745 = vld [vmem:[#allocation11 + $0xb8] sm:$0xff]
        %v746 = vld [vmem:[#allocation11 + $0xc0] sm:$0xff]
        %v747 = vld [vmem:[#allocation11 + $0xc8] sm:$0xff]
        %v748 = vld [vmem:[#allocation11 + $0xd0] sm:$0xff]
        %v749 = vld [vmem:[#allocation11 + $0xd8] sm:$0xff]
        %v750 = vld [vmem:[#allocation11 + $0xe0] sm:$0xff]
        %v751 = vld [vmem:[#allocation11 + $0xe8] sm:$0xff]
        %v752 = vld [vmem:[#allocation11 + $0xf0] sm:$0xff]
        %v753 = vld [vmem:[#allocation11 + $0xf8] sm:$0xff]
        %v754 = vld [vmem:[#allocation11 + $0x100] sm:$0xff]
        %v755 = vld [vmem:[#allocation11 + $0x108] sm:$0xff]
        %v756 = vld [vmem:[#allocation11 + $0x110] sm:$0xff]
        %v757 = vld [vmem:[#allocation11 + $0x118] sm:$0xff]
        %v758 = vld [vmem:[#allocation11 + $0x120] sm:$0xff]
        %v759 = vld [vmem:[#allocation11 + $0x128] sm:$0xff]
        %v760 = vld [vmem:[#allocation11 + $0x130] sm:$0xff]
        %v761 = vld [vmem:[#allocation11 + $0x138] sm:$0xff]
        %v762 = vld [vmem:[#allocation11 + $0x140] sm:$0xff]
        %v763 = vld [vmem:[#allocation11 + $0x148] sm:$0xff]
        %v764 = vld [vmem:[#allocation11 + $0x150] sm:$0xff]
        %v765 = vld [vmem:[#allocation11 + $0x158] sm:$0xff]
        %v766 = vld [vmem:[#allocation11 + $0x160] sm:$0xff]
        %v767 = vld [vmem:[#allocation11 + $0x168] sm:$0xff]
        %v768 = vld [vmem:[#allocation11 + $0x170] sm:$0xff]
        %v769 = vld [vmem:[#allocation11 + $0x178] sm:$0xff]
        %v770 = vld [vmem:[#allocation11 + $0x180] sm:$0xff]
        %v771 = vld [vmem:[#allocation11 + $0x188] sm:$0xff]
        %v772 = vld [vmem:[#allocation11 + $0x190] sm:$0xff]
        %v773 = vld [vmem:[#allocation11 + $0x198] sm:$0xff]
        %v774 = vld [vmem:[#allocation11 + $0x1a0] sm:$0xff]
        %v775 = vld [vmem:[#allocation11 + $0x1a8] sm:$0xff]
        %v776 = vld [vmem:[#allocation11 + $0x1b0] sm:$0xff]
        %v777 = vld [vmem:[#allocation11 + $0x1b8] sm:$0xff]
        %v778 = vld [vmem:[#allocation11 + $0x1c0] sm:$0xff]
        %v779 = vld [vmem:[#allocation11 + $0x1c8] sm:$0xff]
        %v780 = vld [vmem:[#allocation11 + $0x1d0] sm:$0xff]
        %v781 = vld [vmem:[#allocation11 + $0x1d8] sm:$0xff]
        %v782 = vld [vmem:[#allocation11 + $0x1e0] sm:$0xff]
        %v783 = vld [vmem:[#allocation11 + $0x1e8] sm:$0xff]
        %v784 = vld [vmem:[#allocation11 + $0x1f0] sm:$0xff]
        %v785 = vld [vmem:[#allocation11 + $0x1f8] sm:$0xff]
        %v786 = vld [vmem:[%s3] sm:$0x7]
        %v787 = vld [vmem:[%s5] sm:$0x1]
        %v788 = vld [vmem:[%s9] sm:$0xf]
        %v789 = vld [vmem:[%s11] sm:$0x1]
        %v790 = vld [vmem:[%s6] sm:$0x1]
        %v791 = vld [vmem:[%s7] sm:$0x1]
        %v792 = vld [vmem:[%s12] sm:$0x1]
        %v793 = vld [vmem:[%s13] sm:$0x1]
        %v795 = vlaneseq
        %v796 = vshrl.u32 %v795, 7
        %v797 = vsub.s32 0, %v796
        %v798 = vrot.slane %v786, %v797
        %v799 = vlaneseq
        %v800 = vshrl.u32 %v799, 7
        %v801 = vsub.s32 1, %v800
        %v802 = vrot.slane %v786, %v801
        %v803 = vlaneseq
        %v804 = vshrl.u32 %v803, 7
        %v805 = vsub.s32 2, %v804
        %v806 = vrot.slane %v786, %v805
        %810 = vmatprep.subr.mxu0 %v595
        %811 = vmatpush1.msra.mxu0 %v594
        %812 = vmatprep.subr.mxu0 %v598
        %813 = vmatpush1.msra.mxu0 %v597
        %814 = vmatprep.subr.mxu0 %v601
        %815 = vmatpush1.msra.mxu0 %v600
        %816 = vmatprep.subr.mxu0 %v604
        %817 = vmatpush1.msra.mxu0 %v603
        %818 = vmatprep.subr.mxu0 %v607
        %819 = vmatpush1.msra.mxu0 %v606
        %820 = vmatprep.subr.mxu0 %v610
        %821 = vmatpush1.msra.mxu0 %v609
        %822 = vmatprep.subr.mxu0 %v613
        %823 = vmatpush1.msra.mxu0 %v612
        %824 = vmatprep.subr.mxu0 %v616
        %825 = vmatpush1.msra.mxu0 %v615
        %826 = vmatprep.subr.mxu0 %v619
        %827 = vmatpush1.msra.mxu0 %v618
        %828 = vmatprep.subr.mxu0 %v622
        %829 = vmatpush1.msra.mxu0 %v621
        %830 = vmatprep.subr.mxu0 %v625
        %831 = vmatpush1.msra.mxu0 %v624
        %832 = vmatprep.subr.mxu0 %v628
        %833 = vmatpush1.msra.mxu0 %v627
        %834 = vmatprep.subr.mxu0 %v631
        %835 = vmatpush1.msra.mxu0 %v630
        %836 = vmatprep.subr.mxu0 %v634
        %837 = vmatpush1.msra.mxu0 %v633
        %838 = vmatprep.subr.mxu0 %v637
        %839 = vmatpush1.msra.mxu0 %v636
        %840 = vmatprep.subr.mxu0 %v640
        %841 = vmatpush1.msra.mxu0 %v639
        %842 = vmatprep.subr.mxu0 0.0
        %843 = vmatpush1.msra.mxu0 0.0
        %844 = vmatprep.subr.mxu0 0.0
        %845 = vmatpush1.msra.mxu0 0.0
        %846 = vmatprep.subr.mxu0 0.0
        %847 = vmatpush1.msra.mxu0 0.0
        %848 = vmatprep.subr.mxu0 0.0
        %849 = vmatpush1.msra.mxu0 0.0
        %850 = vmatprep.subr.mxu0 0.0
        %851 = vmatpush1.msra.mxu0 0.0
        %852 = vmatprep.subr.mxu0 0.0
        %853 = vmatpush1.msra.mxu0 0.0
        %854 = vmatprep.subr.mxu0 0.0
        %855 = vmatpush1.msra.mxu0 0.0
        %856 = vmatprep.subr.mxu0 0.0
        %857 = vmatpush1.msra.mxu0 0.0
        %858 = vmatprep.subr.mxu0 0.0
        %859 = vmatpush1.msra.mxu0 0.0
        %860 = vmatprep.subr.mxu0 0.0
        %861 = vmatpush1.msra.mxu0 0.0
        %862 = vmatprep.subr.mxu0 0.0
        %863 = vmatpush1.msra.mxu0 0.0
        %864 = vmatprep.subr.mxu0 0.0
        %865 = vmatpush1.msra.mxu0 0.0
        %866 = vmatprep.subr.mxu0 0.0
        %867 = vmatpush1.msra.mxu0 0.0
        %868 = vmatprep.subr.mxu0 0.0
        %869 = vmatpush1.msra.mxu0 0.0
        %870 = vmatprep.subr.mxu0 0.0
        %871 = vmatpush1.msra.mxu0 0.0
        %872 = vmatprep.subr.mxu0 0.0
        %873 = vmatpush1.msra.mxu0 0.0
        %874 = vmatprep.mubr.f32.mxu0 0.0
        %875 = vmatmul.mubr.f32.gmra.mrb[0].mxu0 %v584
        %v876 = vpop.f32.mrb[0].mxu0
        %v877 = vadd.f32 %v798, %v876
        %v878 = vpop.f32.mrb[0].mxu0
        %v879 = vadd.f32 %v802, %v878
        %880 = vmatprep.mubr.f32.mxu0 0.0
        %881 = vmatmul.mubr.f32.gmra.mrb[0].mxu0 %v585
        %v882 = vpop.f32.mrb[0].mxu0
        %v883 = vadd.f32 %v798, %v882
        %v884 = vpop.f32.mrb[0].mxu0
        %v885 = vadd.f32 %v802, %v884
        %886 = vdwg.mxu0
        %887 = vmatprep.subr.mxu0 0.0
        %888 = vmatpush1.msra.mxu0 %v596
        %889 = vmatprep.subr.mxu0 0.0
        %890 = vmatpush1.msra.mxu0 %v599
        %891 = vmatprep.subr.mxu0 0.0
        %892 = vmatpush1.msra.mxu0 %v602
        %893 = vmatprep.subr.mxu0 0.0
        %894 = vmatpush1.msra.mxu0 %v605
        %895 = vmatprep.subr.mxu0 0.0
        %896 = vmatpush1.msra.mxu0 %v608
        %897 = vmatprep.subr.mxu0 0.0
        %898 = vmatpush1.msra.mxu0 %v611
        %899 = vmatprep.subr.mxu0 0.0
        %900 = vmatpush1.msra.mxu0 %v614
        %901 = vmatprep.subr.mxu0 0.0
        %902 = vmatpush1.msra.mxu0 %v617
        %903 = vmatprep.subr.mxu0 0.0
        %904 = vmatpush1.msra.mxu0 %v620
        %905 = vmatprep.subr.mxu0 0.0
        %906 = vmatpush1.msra.mxu0 %v623
        %907 = vmatprep.subr.mxu0 0.0
        %908 = vmatpush1.msra.mxu0 %v626
        %909 = vmatprep.subr.mxu0 0.0
        %910 = vmatpush1.msra.mxu0 %v629
        %911 = vmatprep.subr.mxu0 0.0
        %912 = vmatpush1.msra.mxu0 %v632
        %913 = vmatprep.subr.mxu0 0.0
        %914 = vmatpush1.msra.mxu0 %v635
        %915 = vmatprep.subr.mxu0 0.0
        %916 = vmatpush1.msra.mxu0 %v638
        %917 = vmatprep.subr.mxu0 0.0
        %918 = vmatpush1.msra.mxu0 %v641
        %919 = vmatprep.subr.mxu0 0.0
        %920 = vmatpush1.msra.mxu0 0.0
        %921 = vmatprep.subr.mxu0 0.0
        %922 = vmatpush1.msra.mxu0 0.0
        %923 = vmatprep.subr.mxu0 0.0
        %924 = vmatpush1.msra.mxu0 0.0
        %925 = vmatprep.subr.mxu0 0.0
        %926 = vmatpush1.msra.mxu0 0.0
        %927 = vmatprep.subr.mxu0 0.0
        %928 = vmatpush1.msra.mxu0 0.0
        %929 = vmatprep.subr.mxu0 0.0
        %930 = vmatpush1.msra.mxu0 0.0
        %931 = vmatprep.subr.mxu0 0.0
        %932 = vmatpush1.msra.mxu0 0.0
        %933 = vmatprep.subr.mxu0 0.0
        %934 = vmatpush1.msra.mxu0 0.0
        %935 = vmatprep.subr.mxu0 0.0
        %936 = vmatpush1.msra.mxu0 0.0
        %937 = vmatprep.subr.mxu0 0.0
        %938 = vmatpush1.msra.mxu0 0.0
        %939 = vmatprep.subr.mxu0 0.0
        %940 = vmatpush1.msra.mxu0 0.0
        %941 = vmatprep.subr.mxu0 0.0
        %942 = vmatpush1.msra.mxu0 0.0
        %943 = vmatprep.subr.mxu0 0.0
        %944 = vmatpush1.msra.mxu0 0.0
        %945 = vmatprep.subr.mxu0 0.0
        %946 = vmatpush1.msra.mxu0 0.0
        %947 = vmatprep.subr.mxu0 0.0
        %948 = vmatpush1.msra.mxu0 0.0
        %949 = vmatprep.subr.mxu0 0.0
        %950 = vmatpush1.msra.mxu0 0.0
        %951 = vmatprep.mubr.f32.mxu0 0.0
        %952 = vmatmul.mubr.f32.gmra.mrb[0].mxu0 %v584
        %v953 = vpop.f32.mrb[0].mxu0
        %v954 = vadd.f32 %v806, %v953
        %v955 = vpop.f32.mrb[0].mxu0
        %956 = vmatprep.mubr.f32.mxu0 0.0
        %957 = vmatmul.mubr.f32.gmra.mrb[0].mxu0 %v585
        %v958 = vpop.f32.mrb[0].mxu0
        %v959 = vadd.f32 %v806, %v958
        %v960 = vpop.f32.mrb[0].mxu0
        %961 = vdwg.mxu0
        %964 = vrot.lane.b32.xlu0 %v877, 96
        %v965 = vpop.permute.xlu0 %964
        %966 = vrot.lane.b32.xlu0 %v883, 96
        %v967 = vpop.permute.xlu0 %966
        %968 = vrot.lane.b32.xlu0 %v877, 64
        %v969 = vpop.permute.xlu0 %968
        %970 = vrot.lane.b32.xlu0 %v883, 64
        %v971 = vpop.permute.xlu0 %970
        %972 = vrot.lane.b32.xlu0 %v877, 32
        %v973 = vpop.permute.xlu0 %972
        %974 = vrot.lane.b32.xlu0 %v883, 32
        %v975 = vpop.permute.xlu0 %974
        %978 = vrot.lane.b32.xlu0 %v879, 96
        %v979 = vpop.permute.xlu0 %978
        %980 = vrot.lane.b32.xlu0 %v885, 96
        %v981 = vpop.permute.xlu0 %980
        %982 = vrot.lane.b32.xlu0 %v879, 64
        %v983 = vpop.permute.xlu0 %982
        %984 = vrot.lane.b32.xlu0 %v885, 64
        %v985 = vpop.permute.xlu0 %984
        %986 = vrot.lane.b32.xlu0 %v879, 32
        %v987 = vpop.permute.xlu0 %986
        %988 = vrot.lane.b32.xlu0 %v885, 32
        %v989 = vpop.permute.xlu0 %988
        %992 = vrot.lane.b32.xlu0 %v954, 96
        %v993 = vpop.permute.xlu0 %992
        %994 = vrot.lane.b32.xlu0 %v959, 96
        %v995 = vpop.permute.xlu0 %994
        %998 = vrot.lane.b32.xlu0 %v954, 64
        %v999 = vpop.permute.xlu0 %998
        %1000 = vrot.lane.b32.xlu0 %v959, 64
        %v1001 = vpop.permute.xlu0 %1000
        %1004 = vrot.lane.b32.xlu0 %v954, 32
        %v1005 = vpop.permute.xlu0 %1004
        %1006 = vrot.lane.b32.xlu0 %v959, 32
        %v1007 = vpop.permute.xlu0 %1006
        %vm1010 = vcmask 261120
        %v1011 = vsel %vm1010, %v877, 0
        %v1013 = vsel %vm1010, %v883, 0
        %v1015 = vsel %vm1010, %v879, 0
        %v1017 = vsel %vm1010, %v885, 0
        %1019 = vmatprep.subr.mxu0 0.0
        %1020 = vmatpush1.xpose.msra.mxu0 %v1015
        %1021 = vmatprep.subr.mxu0 0.0
        %1022 = vmatpush1.xpose.msra.mxu0 %v1017
        %1023 = vmatprep.subr.mxu0 0.0
        %1024 = vmatpush1.xpose.msra.mxu0 0.0
        %1025 = vmatprep.subr.mxu0 0.0
        %1026 = vmatpush1.xpose.msra.mxu0 0.0
        %1027 = vmatprep.subr.mxu0 0.0
        %1028 = vmatpush1.xpose.msra.mxu0 0.0
        %1029 = vmatprep.subr.mxu0 0.0
        %1030 = vmatpush1.xpose.msra.mxu0 0.0
        %1031 = vmatprep.subr.mxu0 0.0
        %1032 = vmatpush1.xpose.msra.mxu0 0.0
        %1033 = vmatprep.subr.mxu0 0.0
        %1034 = vmatpush1.xpose.msra.mxu0 0.0
        %1035 = vmatprep.subr.mxu0 0.0
        %1036 = vmatpush1.xpose.msra.mxu0 0.0
        %1037 = vmatprep.subr.mxu0 0.0
        %1038 = vmatpush1.xpose.msra.mxu0 0.0
        %1039 = vmatprep.subr.mxu0 0.0
        %1040 = vmatpush1.xpose.msra.mxu0 0.0
        %1041 = vmatprep.subr.mxu0 0.0
        %1042 = vmatpush1.xpose.msra.mxu0 0.0
        %1043 = vmatprep.subr.mxu0 0.0
        %1044 = vmatpush1.xpose.msra.mxu0 0.0
        %1045 = vmatprep.subr.mxu0 0.0
        %1046 = vmatpush1.xpose.msra.mxu0 0.0
        %1047 = vmatprep.subr.mxu0 0.0
        %1048 = vmatpush1.xpose.msra.mxu0 0.0
        %1049 = vmatprep.subr.mxu0 0.0
        %1050 = vmatpush1.xpose.msra.mxu0 0.0
        %1051 = vmatprep.subr.mxu0 0.0
        %1052 = vmatpush1.xpose.msra.mxu0 0.0
        %1053 = vmatprep.subr.mxu0 0.0
        %1054 = vmatpush1.xpose.msra.mxu0 0.0
        %1055 = vmatprep.subr.mxu0 0.0
        %1056 = vmatpush1.xpose.msra.mxu0 0.0
        %1057 = vmatprep.subr.mxu0 0.0
        %1058 = vmatpush1.xpose.msra.mxu0 0.0
        %1059 = vmatprep.subr.mxu0 0.0
        %1060 = vmatpush1.xpose.msra.mxu0 0.0
        %1061 = vmatprep.subr.mxu0 0.0
        %1062 = vmatpush1.xpose.msra.mxu0 0.0
        %1063 = vmatprep.subr.mxu0 0.0
        %1064 = vmatpush1.xpose.msra.mxu0 0.0
        %1065 = vmatprep.subr.mxu0 0.0
        %1066 = vmatpush1.xpose.msra.mxu0 0.0
        %1067 = vmatprep.subr.mxu0 0.0
        %1068 = vmatpush1.xpose.msra.mxu0 0.0
        %1069 = vmatprep.subr.mxu0 0.0
        %1070 = vmatpush1.xpose.msra.mxu0 0.0
        %1071 = vmatprep.subr.mxu0 0.0
        %1072 = vmatpush1.xpose.msra.mxu0 0.0
        %1073 = vmatprep.subr.mxu0 0.0
        %1074 = vmatpush1.xpose.msra.mxu0 0.0
        %1075 = vmatprep.subr.mxu0 0.0
        %1076 = vmatpush1.xpose.msra.mxu0 0.0
        %1077 = vmatprep.subr.mxu0 0.0
        %1078 = vmatpush1.xpose.msra.mxu0 0.0
        %1079 = vmatprep.subr.mxu0 0.0
        %1080 = vmatpush1.xpose.msra.mxu0 0.0
        %1081 = vmatprep.subr.mxu0 0.0
        %1082 = vmatpush1.xpose.msra.mxu0 0.0
        %1083 = vmatprep.mubr.f32.mxu0 0.0
        %1084 = vmatmul.mubr.f32.gmra.mrb[0].mxu0 %v1011
        %v1085 = vpop.f32.mrb[0].mxu0
        %v1086 = vadd.f32 %v586, %v1085
        %v1087 = vpop.f32.mrb[0].mxu0
        %1088 = vmatprep.mubr.f32.mxu0 0.0
        %1089 = vmatmul.mubr.f32.gmra.mrb[0].mxu0 %v1013
        %v1090 = vpop.f32.mrb[0].mxu0
        %v1091 = vadd.f32 %v587, %v1090
        %v1092 = vpop.f32.mrb[0].mxu0
        %1093 = vdwg.mxu0
        %v1094 = vsel %vm1010, %v965, 0
        %v1096 = vsel %vm1010, %v967, 0
        %v1098 = vsel %vm1010, %v979, 0
        %v1100 = vsel %vm1010, %v981, 0
        %1102 = vmatprep.subr.mxu0 0.0
        %1103 = vmatpush1.xpose.msra.mxu0 %v1098
        %1104 = vmatprep.subr.mxu0 0.0
        %1105 = vmatpush1.xpose.msra.mxu0 %v1100
        %1106 = vmatprep.subr.mxu0 0.0
        %1107 = vmatpush1.xpose.msra.mxu0 0.0
        %1108 = vmatprep.subr.mxu0 0.0
        %1109 = vmatpush1.xpose.msra.mxu0 0.0
        %1110 = vmatprep.subr.mxu0 0.0
        %1111 = vmatpush1.xpose.msra.mxu0 0.0
        %1112 = vmatprep.subr.mxu0 0.0
        %1113 = vmatpush1.xpose.msra.mxu0 0.0
        %1114 = vmatprep.subr.mxu0 0.0
        %1115 = vmatpush1.xpose.msra.mxu0 0.0
        %1116 = vmatprep.subr.mxu0 0.0
        %1117 = vmatpush1.xpose.msra.mxu0 0.0
        %1118 = vmatprep.subr.mxu0 0.0
        %1119 = vmatpush1.xpose.msra.mxu0 0.0
        %1120 = vmatprep.subr.mxu0 0.0
        %1121 = vmatpush1.xpose.msra.mxu0 0.0
        %1122 = vmatprep.subr.mxu0 0.0
        %1123 = vmatpush1.xpose.msra.mxu0 0.0
        %1124 = vmatprep.subr.mxu0 0.0
        %1125 = vmatpush1.xpose.msra.mxu0 0.0
        %1126 = vmatprep.subr.mxu0 0.0
        %1127 = vmatpush1.xpose.msra.mxu0 0.0
        %1128 = vmatprep.subr.mxu0 0.0
        %1129 = vmatpush1.xpose.msra.mxu0 0.0
        %1130 = vmatprep.subr.mxu0 0.0
        %1131 = vmatpush1.xpose.msra.mxu0 0.0
        %1132 = vmatprep.subr.mxu0 0.0
        %1133 = vmatpush1.xpose.msra.mxu0 0.0
        %1134 = vmatprep.subr.mxu0 0.0
        %1135 = vmatpush1.xpose.msra.mxu0 0.0
        %1136 = vmatprep.subr.mxu0 0.0
        %1137 = vmatpush1.xpose.msra.mxu0 0.0
        %1138 = vmatprep.subr.mxu0 0.0
        %1139 = vmatpush1.xpose.msra.mxu0 0.0
        %1140 = vmatprep.subr.mxu0 0.0
        %1141 = vmatpush1.xpose.msra.mxu0 0.0
        %1142 = vmatprep.subr.mxu0 0.0
        %1143 = vmatpush1.xpose.msra.mxu0 0.0
        %1144 = vmatprep.subr.mxu0 0.0
        %1145 = vmatpush1.xpose.msra.mxu0 0.0
        %1146 = vmatprep.subr.mxu0 0.0
        %1147 = vmatpush1.xpose.msra.mxu0 0.0
        %1148 = vmatprep.subr.mxu0 0.0
        %1149 = vmatpush1.xpose.msra.mxu0 0.0
        %1150 = vmatprep.subr.mxu0 0.0
        %1151 = vmatpush1.xpose.msra.mxu0 0.0
        %1152 = vmatprep.subr.mxu0 0.0
        %1153 = vmatpush1.xpose.msra.mxu0 0.0
        %1154 = vmatprep.subr.mxu0 0.0
        %1155 = vmatpush1.xpose.msra.mxu0 0.0
        %1156 = vmatprep.subr.mxu0 0.0
        %1157 = vmatpush1.xpose.msra.mxu0 0.0
        %1158 = vmatprep.subr.mxu0 0.0
        %1159 = vmatpush1.xpose.msra.mxu0 0.0
        %1160 = vmatprep.subr.mxu0 0.0
        %1161 = vmatpush1.xpose.msra.mxu0 0.0
        %1162 = vmatprep.subr.mxu0 0.0
        %1163 = vmatpush1.xpose.msra.mxu0 0.0
        %1164 = vmatprep.subr.mxu0 0.0
        %1165 = vmatpush1.xpose.msra.mxu0 0.0
        %1166 = vmatprep.mubr.f32.mxu0 0.0
        %1167 = vmatmul.mubr.f32.gmra.mrb[0].mxu0 %v1094
        %v1168 = vpop.f32.mrb[0].mxu0
        %v1169 = vadd.f32 %v588, %v1168
        %v1170 = vpop.f32.mrb[0].mxu0
        %1171 = vmatprep.mubr.f32.mxu0 0.0
        %1172 = vmatmul.mubr.f32.gmra.mrb[0].mxu0 %v1096
        %v1173 = vpop.f32.mrb[0].mxu0
        %v1174 = vadd.f32 %v589, %v1173
        %v1175 = vpop.f32.mrb[0].mxu0
        %1176 = vdwg.mxu0
        %v1177 = vsel %vm1010, %v969, 0
        %v1179 = vsel %vm1010, %v971, 0
        %v1181 = vsel %vm1010, %v983, 0
        %v1183 = vsel %vm1010, %v985, 0
        %1185 = vmatprep.subr.mxu0 0.0
        %1186 = vmatpush1.xpose.msra.mxu0 %v1181
        %1187 = vmatprep.subr.mxu0 0.0
        %1188 = vmatpush1.xpose.msra.mxu0 %v1183
        %1189 = vmatprep.subr.mxu0 0.0
        %1190 = vmatpush1.xpose.msra.mxu0 0.0
        %1191 = vmatprep.subr.mxu0 0.0
        %1192 = vmatpush1.xpose.msra.mxu0 0.0
        %1193 = vmatprep.subr.mxu0 0.0
        %1194 = vmatpush1.xpose.msra.mxu0 0.0
        %1195 = vmatprep.subr.mxu0 0.0
        %1196 = vmatpush1.xpose.msra.mxu0 0.0
        %1197 = vmatprep.subr.mxu0 0.0
        %1198 = vmatpush1.xpose.msra.mxu0 0.0
        %1199 = vmatprep.subr.mxu0 0.0
        %1200 = vmatpush1.xpose.msra.mxu0 0.0
        %1201 = vmatprep.subr.mxu0 0.0
        %1202 = vmatpush1.xpose.msra.mxu0 0.0
        %1203 = vmatprep.subr.mxu0 0.0
        %1204 = vmatpush1.xpose.msra.mxu0 0.0
        %1205 = vmatprep.subr.mxu0 0.0
        %1206 = vmatpush1.xpose.msra.mxu0 0.0
        %1207 = vmatprep.subr.mxu0 0.0
        %1208 = vmatpush1.xpose.msra.mxu0 0.0
        %1209 = vmatprep.subr.mxu0 0.0
        %1210 = vmatpush1.xpose.msra.mxu0 0.0
        %1211 = vmatprep.subr.mxu0 0.0
        %1212 = vmatpush1.xpose.msra.mxu0 0.0
        %1213 = vmatprep.subr.mxu0 0.0
        %1214 = vmatpush1.xpose.msra.mxu0 0.0
        %1215 = vmatprep.subr.mxu0 0.0
        %1216 = vmatpush1.xpose.msra.mxu0 0.0
        %1217 = vmatprep.subr.mxu0 0.0
        %1218 = vmatpush1.xpose.msra.mxu0 0.0
        %1219 = vmatprep.subr.mxu0 0.0
        %1220 = vmatpush1.xpose.msra.mxu0 0.0
        %1221 = vmatprep.subr.mxu0 0.0
        %1222 = vmatpush1.xpose.msra.mxu0 0.0
        %1223 = vmatprep.subr.mxu0 0.0
        %1224 = vmatpush1.xpose.msra.mxu0 0.0
        %1225 = vmatprep.subr.mxu0 0.0
        %1226 = vmatpush1.xpose.msra.mxu0 0.0
        %1227 = vmatprep.subr.mxu0 0.0
        %1228 = vmatpush1.xpose.msra.mxu0 0.0
        %1229 = vmatprep.subr.mxu0 0.0
        %1230 = vmatpush1.xpose.msra.mxu0 0.0
        %1231 = vmatprep.subr.mxu0 0.0
        %1232 = vmatpush1.xpose.msra.mxu0 0.0
        %1233 = vmatprep.subr.mxu0 0.0
        %1234 = vmatpush1.xpose.msra.mxu0 0.0
        %1235 = vmatprep.subr.mxu0 0.0
        %1236 = vmatpush1.xpose.msra.mxu0 0.0
        %1237 = vmatprep.subr.mxu0 0.0
        %1238 = vmatpush1.xpose.msra.mxu0 0.0
        %1239 = vmatprep.subr.mxu0 0.0
        %1240 = vmatpush1.xpose.msra.mxu0 0.0
        %1241 = vmatprep.subr.mxu0 0.0
        %1242 = vmatpush1.xpose.msra.mxu0 0.0
        %1243 = vmatprep.subr.mxu0 0.0
        %1244 = vmatpush1.xpose.msra.mxu0 0.0
        %1245 = vmatprep.subr.mxu0 0.0
        %1246 = vmatpush1.xpose.msra.mxu0 0.0
        %1247 = vmatprep.subr.mxu0 0.0
        %1248 = vmatpush1.xpose.msra.mxu0 0.0
        %1249 = vmatprep.mubr.f32.mxu0 0.0
        %1250 = vmatmul.mubr.f32.gmra.mrb[0].mxu0 %v1177
        %v1251 = vpop.f32.mrb[0].mxu0
        %v1252 = vadd.f32 %v590, %v1251
        %v1253 = vpop.f32.mrb[0].mxu0
        %1254 = vmatprep.mubr.f32.mxu0 0.0
        %1255 = vmatmul.mubr.f32.gmra.mrb[0].mxu0 %v1179
        %v1256 = vpop.f32.mrb[0].mxu0
        %v1257 = vadd.f32 %v591, %v1256
        %v1258 = vpop.f32.mrb[0].mxu0
        %1259 = vdwg.mxu0
        %v1260 = vsel %vm1010, %v973, 0
        %v1262 = vsel %vm1010, %v975, 0
        %v1264 = vsel %vm1010, %v987, 0
        %v1266 = vsel %vm1010, %v989, 0
        %1268 = vmatprep.subr.mxu0 0.0
        %1269 = vmatpush1.xpose.msra.mxu0 %v1264
        %1270 = vmatprep.subr.mxu0 0.0
        %1271 = vmatpush1.xpose.msra.mxu0 %v1266
        %1272 = vmatprep.subr.mxu0 0.0
        %1273 = vmatpush1.xpose.msra.mxu0 0.0
        %1274 = vmatprep.subr.mxu0 0.0
        %1275 = vmatpush1.xpose.msra.mxu0 0.0
        %1276 = vmatprep.subr.mxu0 0.0
        %1277 = vmatpush1.xpose.msra.mxu0 0.0
        %1278 = vmatprep.subr.mxu0 0.0
        %1279 = vmatpush1.xpose.msra.mxu0 0.0
        %1280 = vmatprep.subr.mxu0 0.0
        %1281 = vmatpush1.xpose.msra.mxu0 0.0
        %1282 = vmatprep.subr.mxu0 0.0
        %1283 = vmatpush1.xpose.msra.mxu0 0.0
        %1284 = vmatprep.subr.mxu0 0.0
        %1285 = vmatpush1.xpose.msra.mxu0 0.0
        %1286 = vmatprep.subr.mxu0 0.0
        %1287 = vmatpush1.xpose.msra.mxu0 0.0
        %1288 = vmatprep.subr.mxu0 0.0
        %1289 = vmatpush1.xpose.msra.mxu0 0.0
        %1290 = vmatprep.subr.mxu0 0.0
        %1291 = vmatpush1.xpose.msra.mxu0 0.0
        %1292 = vmatprep.subr.mxu0 0.0
        %1293 = vmatpush1.xpose.msra.mxu0 0.0
        %1294 = vmatprep.subr.mxu0 0.0
        %1295 = vmatpush1.xpose.msra.mxu0 0.0
        %1296 = vmatprep.subr.mxu0 0.0
        %1297 = vmatpush1.xpose.msra.mxu0 0.0
        %1298 = vmatprep.subr.mxu0 0.0
        %1299 = vmatpush1.xpose.msra.mxu0 0.0
        %1300 = vmatprep.subr.mxu0 0.0
        %1301 = vmatpush1.xpose.msra.mxu0 0.0
        %1302 = vmatprep.subr.mxu0 0.0
        %1303 = vmatpush1.xpose.msra.mxu0 0.0
        %1304 = vmatprep.subr.mxu0 0.0
        %1305 = vmatpush1.xpose.msra.mxu0 0.0
        %1306 = vmatprep.subr.mxu0 0.0
        %1307 = vmatpush1.xpose.msra.mxu0 0.0
        %1308 = vmatprep.subr.mxu0 0.0
        %1309 = vmatpush1.xpose.msra.mxu0 0.0
        %1310 = vmatprep.subr.mxu0 0.0
        %1311 = vmatpush1.xpose.msra.mxu0 0.0
        %1312 = vmatprep.subr.mxu0 0.0
        %1313 = vmatpush1.xpose.msra.mxu0 0.0
        %1314 = vmatprep.subr.mxu0 0.0
        %1315 = vmatpush1.xpose.msra.mxu0 0.0
        %1316 = vmatprep.subr.mxu0 0.0
        %1317 = vmatpush1.xpose.msra.mxu0 0.0
        %1318 = vmatprep.subr.mxu0 0.0
        %1319 = vmatpush1.xpose.msra.mxu0 0.0
        %1320 = vmatprep.subr.mxu0 0.0
        %1321 = vmatpush1.xpose.msra.mxu0 0.0
        %1322 = vmatprep.subr.mxu0 0.0
        %1323 = vmatpush1.xpose.msra.mxu0 0.0
        %1324 = vmatprep.subr.mxu0 0.0
        %1325 = vmatpush1.xpose.msra.mxu0 0.0
        %1326 = vmatprep.subr.mxu0 0.0
        %1327 = vmatpush1.xpose.msra.mxu0 0.0
        %1328 = vmatprep.subr.mxu0 0.0
        %1329 = vmatpush1.xpose.msra.mxu0 0.0
        %1330 = vmatprep.subr.mxu0 0.0
        %1331 = vmatpush1.xpose.msra.mxu0 0.0
        %1332 = vmatprep.mubr.f32.mxu0 0.0
        %1333 = vmatmul.mubr.f32.gmra.mrb[0].mxu0 %v1260
        %v1334 = vpop.f32.mrb[0].mxu0
        %v1335 = vadd.f32 %v592, %v1334
        %v1336 = vpop.f32.mrb[0].mxu0
        %1337 = vmatprep.mubr.f32.mxu0 0.0
        %1338 = vmatmul.mubr.f32.gmra.mrb[0].mxu0 %v1262
        %v1339 = vpop.f32.mrb[0].mxu0
        %v1340 = vadd.f32 %v593, %v1339
        %v1341 = vpop.f32.mrb[0].mxu0
        %1342 = vdwg.mxu0
        %vm1343 = vcmask 130048
        %v1344 = vsel %vm1343, %v1086, -inf
        %1345 = vmax.xlane.f32.xlu0 %v1344
        %v1346 = vpop.xlane.xlu0 %1345
        %v1347 = vsel %vm1343, %v1091, -inf
        %1348 = vmax.xlane.f32.xlu0 %v1347
        %v1349 = vpop.xlane.xlu0 %1348
        %v1350 = vsel %vm1343, %v1169, -inf
        %1351 = vmax.xlane.f32.xlu0 %v1350
        %v1352 = vpop.xlane.xlu0 %1351
        %v1353 = vsel %vm1343, %v1174, -inf
        %1354 = vmax.xlane.f32.xlu0 %v1353
        %v1355 = vpop.xlane.xlu0 %1354
        %v1356 = vsel %vm1343, %v1252, -inf
        %1357 = vmax.xlane.f32.xlu0 %v1356
        %v1358 = vpop.xlane.xlu0 %1357
        %v1359 = vsel %vm1343, %v1257, -inf
        %1360 = vmax.xlane.f32.xlu0 %v1359
        %v1361 = vpop.xlane.xlu0 %1360
        %v1362 = vsel %vm1343, %v1335, -inf
        %1363 = vmax.xlane.f32.xlu0 %v1362
        %v1364 = vpop.xlane.xlu0 %1363
        %v1365 = vsel %vm1343, %v1340, -inf
        %1366 = vmax.xlane.f32.xlu0 %v1365
        %v1367 = vpop.xlane.xlu0 %1366
        %v1368 = vsub.f32 %v1086, %v1346
        %v1369 = vsub.f32 %v1091, %v1349
        %v1370 = vsub.f32 %v1169, %v1352
        %v1371 = vsub.f32 %v1174, %v1355
        %v1372 = vsub.f32 %v1252, %v1358
        %v1373 = vsub.f32 %v1257, %v1361
        %v1374 = vsub.f32 %v1335, %v1364
        %v1375 = vsub.f32 %v1340, %v1367
        %v1376 = vmul.f32 %v1368, 1.442695
        %v1377 = vpow.pop %v1376
        %v1378 = vmul.f32 %v1369, 1.442695
        %v1379 = vpow.pop %v1378
        %v1380 = vmul.f32 %v1370, 1.442695
        %v1381 = vpow.pop %v1380
        %v1382 = vmul.f32 %v1371, 1.442695
        %v1383 = vpow.pop %v1382
        %v1384 = vmul.f32 %v1372, 1.442695
        %v1385 = vpow.pop %v1384
        %v1386 = vmul.f32 %v1373, 1.442695
        %v1387 = vpow.pop %v1386
        %v1388 = vmul.f32 %v1374, 1.442695
        %v1389 = vpow.pop %v1388
        %v1390 = vmul.f32 %v1375, 1.442695
        %v1391 = vpow.pop %v1390
        %v1392 = vsel %vm1343, %v1377, 0.0
        %1393 = vadd.xlane.f32.xlu0 %v1392
        %v1394 = vpop.xlane.xlu0 %1393
        %v1395 = vsel %vm1343, %v1379, 0.0
        %1396 = vadd.xlane.f32.xlu0 %v1395
        %v1397 = vpop.xlane.xlu0 %1396
        %v1398 = vsel %vm1343, %v1381, 0.0
        %1399 = vadd.xlane.f32.xlu0 %v1398
        %v1400 = vpop.xlane.xlu0 %1399
        %v1401 = vsel %vm1343, %v1383, 0.0
        %1402 = vadd.xlane.f32.xlu0 %v1401
        %v1403 = vpop.xlane.xlu0 %1402
        %v1404 = vsel %vm1343, %v1385, 0.0
        %1405 = vadd.xlane.f32.xlu0 %v1404
        %v1406 = vpop.xlane.xlu0 %1405
        %v1407 = vsel %vm1343, %v1387, 0.0
        %1408 = vadd.xlane.f32.xlu0 %v1407
        %v1409 = vpop.xlane.xlu0 %1408
        %v1410 = vsel %vm1343, %v1389, 0.0
        %1411 = vadd.xlane.f32.xlu0 %v1410
        %v1412 = vpop.xlane.xlu0 %1411
        %v1413 = vsel %vm1343, %v1391, 0.0
        %1414 = vadd.xlane.f32.xlu0 %v1413
        %v1415 = vpop.xlane.xlu0 %1414
        %v1416 = vrcp.pop %v1394
        %v1417 = vmul.f32 %v1377, %v1416
        %v1418 = vrcp.pop %v1397
        %v1419 = vmul.f32 %v1379, %v1418
        %v1420 = vrcp.pop %v1400
        %v1421 = vmul.f32 %v1381, %v1420
        %v1422 = vrcp.pop %v1403
        %v1423 = vmul.f32 %v1383, %v1422
        %v1424 = vrcp.pop %v1406
        %v1425 = vmul.f32 %v1385, %v1424
        %v1426 = vrcp.pop %v1409
        %v1427 = vmul.f32 %v1387, %v1426
        %v1428 = vrcp.pop %v1412
        %v1429 = vmul.f32 %v1389, %v1428
        %v1430 = vrcp.pop %v1415
        %v1431 = vmul.f32 %v1391, %v1430
        %v1433 = vsel %vm1343, %v1417, 0
        %v1436 = vsel %vm1343, %v1419, 0
        %1438 = vmatprep.subr.mxu0 0.0
        %1439 = vmatpush1.msra.mxu0 %v954
        %1440 = vmatprep.subr.mxu0 0.0
        %1441 = vmatpush1.msra.mxu0 %v959
        %1442 = vmatprep.subr.mxu0 0.0
        %1443 = vmatpush1.msra.mxu0 0.0
        %1444 = vmatprep.subr.mxu0 0.0
        %1445 = vmatpush1.msra.mxu0 0.0
        %1446 = vmatprep.subr.mxu0 0.0
        %1447 = vmatpush1.msra.mxu0 0.0
        %1448 = vmatprep.subr.mxu0 0.0
        %1449 = vmatpush1.msra.mxu0 0.0
        %1450 = vmatprep.subr.mxu0 0.0
        %1451 = vmatpush1.msra.mxu0 0.0
        %1452 = vmatprep.subr.mxu0 0.0
        %1453 = vmatpush1.msra.mxu0 0.0
        %1454 = vmatprep.subr.mxu0 0.0
        %1455 = vmatpush1.msra.mxu0 0.0
        %1456 = vmatprep.subr.mxu0 0.0
        %1457 = vmatpush1.msra.mxu0 0.0
        %1458 = vmatprep.subr.mxu0 0.0
        %1459 = vmatpush1.msra.mxu0 0.0
        %1460 = vmatprep.subr.mxu0 0.0
        %1461 = vmatpush1.msra.mxu0 0.0
        %1462 = vmatprep.subr.mxu0 0.0
        %1463 = vmatpush1.msra.mxu0 0.0
        %1464 = vmatprep.subr.mxu0 0.0
        %1465 = vmatpush1.msra.mxu0 0.0
        %1466 = vmatprep.subr.mxu0 0.0
        %1467 = vmatpush1.msra.mxu0 0.0
        %1468 = vmatprep.subr.mxu0 0.0
        %1469 = vmatpush1.msra.mxu0 0.0
        %1470 = vmatprep.subr.mxu0 0.0
        %1471 = vmatpush1.msra.mxu0 0.0
        %1472 = vmatprep.subr.mxu0 0.0
        %1473 = vmatpush1.msra.mxu0 0.0
        %1474 = vmatprep.subr.mxu0 0.0
        %1475 = vmatpush1.msra.mxu0 0.0
        %1476 = vmatprep.subr.mxu0 0.0
        %1477 = vmatpush1.msra.mxu0 0.0
        %1478 = vmatprep.subr.mxu0 0.0
        %1479 = vmatpush1.msra.mxu0 0.0
        %1480 = vmatprep.subr.mxu0 0.0
        %1481 = vmatpush1.msra.mxu0 0.0
        %1482 = vmatprep.subr.mxu0 0.0
        %1483 = vmatpush1.msra.mxu0 0.0
        %1484 = vmatprep.subr.mxu0 0.0
        %1485 = vmatpush1.msra.mxu0 0.0
        %1486 = vmatprep.subr.mxu0 0.0
        %1487 = vmatpush1.msra.mxu0 0.0
        %1488 = vmatprep.subr.mxu0 0.0
        %1489 = vmatpush1.msra.mxu0 0.0
        %1490 = vmatprep.subr.mxu0 0.0
        %1491 = vmatpush1.msra.mxu0 0.0
        %1492 = vmatprep.subr.mxu0 0.0
        %1493 = vmatpush1.msra.mxu0 0.0
        %1494 = vmatprep.subr.mxu0 0.0
        %1495 = vmatpush1.msra.mxu0 0.0
        %1496 = vmatprep.subr.mxu0 0.0
        %1497 = vmatpush1.msra.mxu0 0.0
        %1498 = vmatprep.subr.mxu0 0.0
        %1499 = vmatpush1.msra.mxu0 0.0
        %1500 = vmatprep.subr.mxu0 0.0
        %1501 = vmatpush1.msra.mxu0 0.0
        %1502 = vmatprep.mubr.f32.mxu0 0.0
        %1503 = vmatmul.mubr.f32.gmra.mrb[0].mxu0 %v1433
        %v1504 = vpop.f32.mrb[0].mxu0
        %v1505 = vadd.f32 0.0, %v1504
        %v1506 = vpop.f32.mrb[0].mxu0
        %1507 = vmatprep.mubr.f32.mxu0 0.0
        %1508 = vmatmul.mubr.f32.gmra.mrb[0].mxu0 %v1436
        %v1509 = vpop.f32.mrb[0].mxu0
        %v1510 = vadd.f32 0.0, %v1509
        %v1511 = vpop.f32.mrb[0].mxu0
        %1512 = vdwg.mxu0
        %v1514 = vsel %vm1343, %v1421, 0
        %v1517 = vsel %vm1343, %v1423, 0
        %1519 = vmatprep.subr.mxu0 0.0
        %1520 = vmatpush1.msra.mxu0 %v993
        %1521 = vmatprep.subr.mxu0 0.0
        %1522 = vmatpush1.msra.mxu0 %v995
        %1523 = vmatprep.subr.mxu0 0.0
        %1524 = vmatpush1.msra.mxu0 0.0
        %1525 = vmatprep.subr.mxu0 0.0
        %1526 = vmatpush1.msra.mxu0 0.0
        %1527 = vmatprep.subr.mxu0 0.0
        %1528 = vmatpush1.msra.mxu0 0.0
        %1529 = vmatprep.subr.mxu0 0.0
        %1530 = vmatpush1.msra.mxu0 0.0
        %1531 = vmatprep.subr.mxu0 0.0
        %1532 = vmatpush1.msra.mxu0 0.0
        %1533 = vmatprep.subr.mxu0 0.0
        %1534 = vmatpush1.msra.mxu0 0.0
        %1535 = vmatprep.subr.mxu0 0.0
        %1536 = vmatpush1.msra.mxu0 0.0
        %1537 = vmatprep.subr.mxu0 0.0
        %1538 = vmatpush1.msra.mxu0 0.0
        %1539 = vmatprep.subr.mxu0 0.0
        %1540 = vmatpush1.msra.mxu0 0.0
        %1541 = vmatprep.subr.mxu0 0.0
        %1542 = vmatpush1.msra.mxu0 0.0
        %1543 = vmatprep.subr.mxu0 0.0
        %1544 = vmatpush1.msra.mxu0 0.0
        %1545 = vmatprep.subr.mxu0 0.0
        %1546 = vmatpush1.msra.mxu0 0.0
        %1547 = vmatprep.subr.mxu0 0.0
        %1548 = vmatpush1.msra.mxu0 0.0
        %1549 = vmatprep.subr.mxu0 0.0
        %1550 = vmatpush1.msra.mxu0 0.0
        %1551 = vmatprep.subr.mxu0 0.0
        %1552 = vmatpush1.msra.mxu0 0.0
        %1553 = vmatprep.subr.mxu0 0.0
        %1554 = vmatpush1.msra.mxu0 0.0
        %1555 = vmatprep.subr.mxu0 0.0
        %1556 = vmatpush1.msra.mxu0 0.0
        %1557 = vmatprep.subr.mxu0 0.0
        %1558 = vmatpush1.msra.mxu0 0.0
        %1559 = vmatprep.subr.mxu0 0.0
        %1560 = vmatpush1.msra.mxu0 0.0
        %1561 = vmatprep.subr.mxu0 0.0
        %1562 = vmatpush1.msra.mxu0 0.0
        %1563 = vmatprep.subr.mxu0 0.0
        %1564 = vmatpush1.msra.mxu0 0.0
        %1565 = vmatprep.subr.mxu0 0.0
        %1566 = vmatpush1.msra.mxu0 0.0
        %1567 = vmatprep.subr.mxu0 0.0
        %1568 = vmatpush1.msra.mxu0 0.0
        %1569 = vmatprep.subr.mxu0 0.0
        %1570 = vmatpush1.msra.mxu0 0.0
        %1571 = vmatprep.subr.mxu0 0.0
        %1572 = vmatpush1.msra.mxu0 0.0
        %1573 = vmatprep.subr.mxu0 0.0
        %1574 = vmatpush1.msra.mxu0 0.0
        %1575 = vmatprep.subr.mxu0 0.0
        %1576 = vmatpush1.msra.mxu0 0.0
        %1577 = vmatprep.subr.mxu0 0.0
        %1578 = vmatpush1.msra.mxu0 0.0
        %1579 = vmatprep.subr.mxu0 0.0
        %1580 = vmatpush1.msra.mxu0 0.0
        %1581 = vmatprep.subr.mxu0 0.0
        %1582 = vmatpush1.msra.mxu0 0.0
        %1583 = vmatprep.mubr.f32.mxu0 0.0
        %1584 = vmatmul.mubr.f32.gmra.mrb[0].mxu0 %v1514
        %v1585 = vpop.f32.mrb[0].mxu0
        %v1586 = vadd.f32 0.0, %v1585
        %v1587 = vpop.f32.mrb[0].mxu0
        %1588 = vmatprep.mubr.f32.mxu0 0.0
        %1589 = vmatmul.mubr.f32.gmra.mrb[0].mxu0 %v1517
        %v1590 = vpop.f32.mrb[0].mxu0
        %v1591 = vadd.f32 0.0, %v1590
        %v1592 = vpop.f32.mrb[0].mxu0
        %1593 = vdwg.mxu0
        %v1595 = vsel %vm1343, %v1425, 0
        %v1598 = vsel %vm1343, %v1427, 0
        %1600 = vmatprep.subr.mxu0 0.0
        %1601 = vmatpush1.msra.mxu0 %v999
        %1602 = vmatprep.subr.mxu0 0.0
        %1603 = vmatpush1.msra.mxu0 %v1001
        %1604 = vmatprep.subr.mxu0 0.0
        %1605 = vmatpush1.msra.mxu0 0.0
        %1606 = vmatprep.subr.mxu0 0.0
        %1607 = vmatpush1.msra.mxu0 0.0
        %1608 = vmatprep.subr.mxu0 0.0
        %1609 = vmatpush1.msra.mxu0 0.0
        %1610 = vmatprep.subr.mxu0 0.0
        %1611 = vmatpush1.msra.mxu0 0.0
        %1612 = vmatprep.subr.mxu0 0.0
        %1613 = vmatpush1.msra.mxu0 0.0
        %1614 = vmatprep.subr.mxu0 0.0
        %1615 = vmatpush1.msra.mxu0 0.0
        %1616 = vmatprep.subr.mxu0 0.0
        %1617 = vmatpush1.msra.mxu0 0.0
        %1618 = vmatprep.subr.mxu0 0.0
        %1619 = vmatpush1.msra.mxu0 0.0
        %1620 = vmatprep.subr.mxu0 0.0
        %1621 = vmatpush1.msra.mxu0 0.0
        %1622 = vmatprep.subr.mxu0 0.0
        %1623 = vmatpush1.msra.mxu0 0.0
        %1624 = vmatprep.subr.mxu0 0.0
        %1625 = vmatpush1.msra.mxu0 0.0
        %1626 = vmatprep.subr.mxu0 0.0
        %1627 = vmatpush1.msra.mxu0 0.0
        %1628 = vmatprep.subr.mxu0 0.0
        %1629 = vmatpush1.msra.mxu0 0.0
        %1630 = vmatprep.subr.mxu0 0.0
        %1631 = vmatpush1.msra.mxu0 0.0
        %1632 = vmatprep.subr.mxu0 0.0
        %1633 = vmatpush1.msra.mxu0 0.0
        %1634 = vmatprep.subr.mxu0 0.0
        %1635 = vmatpush1.msra.mxu0 0.0
        %1636 = vmatprep.subr.mxu0 0.0
        %1637 = vmatpush1.msra.mxu0 0.0
        %1638 = vmatprep.subr.mxu0 0.0
        %1639 = vmatpush1.msra.mxu0 0.0
        %1640 = vmatprep.subr.mxu0 0.0
        %1641 = vmatpush1.msra.mxu0 0.0
        %1642 = vmatprep.subr.mxu0 0.0
        %1643 = vmatpush1.msra.mxu0 0.0
        %1644 = vmatprep.subr.mxu0 0.0
        %1645 = vmatpush1.msra.mxu0 0.0
        %1646 = vmatprep.subr.mxu0 0.0
        %1647 = vmatpush1.msra.mxu0 0.0
        %1648 = vmatprep.subr.mxu0 0.0
        %1649 = vmatpush1.msra.mxu0 0.0
        %1650 = vmatprep.subr.mxu0 0.0
        %1651 = vmatpush1.msra.mxu0 0.0
        %1652 = vmatprep.subr.mxu0 0.0
        %1653 = vmatpush1.msra.mxu0 0.0
        %1654 = vmatprep.subr.mxu0 0.0
        %1655 = vmatpush1.msra.mxu0 0.0
        %1656 = vmatprep.subr.mxu0 0.0
        %1657 = vmatpush1.msra.mxu0 0.0
        %1658 = vmatprep.subr.mxu0 0.0
        %1659 = vmatpush1.msra.mxu0 0.0
        %1660 = vmatprep.subr.mxu0 0.0
        %1661 = vmatpush1.msra.mxu0 0.0
        %1662 = vmatprep.subr.mxu0 0.0
        %1663 = vmatpush1.msra.mxu0 0.0
        %1664 = vmatprep.mubr.f32.mxu0 0.0
        %1665 = vmatmul.mubr.f32.gmra.mrb[0].mxu0 %v1595
        %v1666 = vpop.f32.mrb[0].mxu0
        %v1667 = vadd.f32 0.0, %v1666
        %v1668 = vpop.f32.mrb[0].mxu0
        %1669 = vmatprep.mubr.f32.mxu0 0.0
        %1670 = vmatmul.mubr.f32.gmra.mrb[0].mxu0 %v1598
        %v1671 = vpop.f32.mrb[0].mxu0
        %v1672 = vadd.f32 0.0, %v1671
        %v1673 = vpop.f32.mrb[0].mxu0
        %1674 = vdwg.mxu0
        %v1676 = vsel %vm1343, %v1429, 0
        %v1679 = vsel %vm1343, %v1431, 0
        %1681 = vmatprep.subr.mxu0 0.0
        %1682 = vmatpush1.msra.mxu0 %v1005
        %1683 = vmatprep.subr.mxu0 0.0
        %1684 = vmatpush1.msra.mxu0 %v1007
        %1685 = vmatprep.subr.mxu0 0.0
        %1686 = vmatpush1.msra.mxu0 0.0
        %1687 = vmatprep.subr.mxu0 0.0
        %1688 = vmatpush1.msra.mxu0 0.0
        %1689 = vmatprep.subr.mxu0 0.0
        %1690 = vmatpush1.msra.mxu0 0.0
        %1691 = vmatprep.subr.mxu0 0.0
        %1692 = vmatpush1.msra.mxu0 0.0
        %1693 = vmatprep.subr.mxu0 0.0
        %1694 = vmatpush1.msra.mxu0 0.0
        %1695 = vmatprep.subr.mxu0 0.0
        %1696 = vmatpush1.msra.mxu0 0.0
        %1697 = vmatprep.subr.mxu0 0.0
        %1698 = vmatpush1.msra.mxu0 0.0
        %1699 = vmatprep.subr.mxu0 0.0
        %1700 = vmatpush1.msra.mxu0 0.0
        %1701 = vmatprep.subr.mxu0 0.0
        %1702 = vmatpush1.msra.mxu0 0.0
        %1703 = vmatprep.subr.mxu0 0.0
        %1704 = vmatpush1.msra.mxu0 0.0
        %1705 = vmatprep.subr.mxu0 0.0
        %1706 = vmatpush1.msra.mxu0 0.0
        %1707 = vmatprep.subr.mxu0 0.0
        %1708 = vmatpush1.msra.mxu0 0.0
        %1709 = vmatprep.subr.mxu0 0.0
        %1710 = vmatpush1.msra.mxu0 0.0
        %1711 = vmatprep.subr.mxu0 0.0
        %1712 = vmatpush1.msra.mxu0 0.0
        %1713 = vmatprep.subr.mxu0 0.0
        %1714 = vmatpush1.msra.mxu0 0.0
        %1715 = vmatprep.subr.mxu0 0.0
        %1716 = vmatpush1.msra.mxu0 0.0
        %1717 = vmatprep.subr.mxu0 0.0
        %1718 = vmatpush1.msra.mxu0 0.0
        %1719 = vmatprep.subr.mxu0 0.0
        %1720 = vmatpush1.msra.mxu0 0.0
        %1721 = vmatprep.subr.mxu0 0.0
        %1722 = vmatpush1.msra.mxu0 0.0
        %1723 = vmatprep.subr.mxu0 0.0
        %1724 = vmatpush1.msra.mxu0 0.0
        %1725 = vmatprep.subr.mxu0 0.0
        %1726 = vmatpush1.msra.mxu0 0.0
        %1727 = vmatprep.subr.mxu0 0.0
        %1728 = vmatpush1.msra.mxu0 0.0
        %1729 = vmatprep.subr.mxu0 0.0
        %1730 = vmatpush1.msra.mxu0 0.0
        %1731 = vmatprep.subr.mxu0 0.0
        %1732 = vmatpush1.msra.mxu0 0.0
        %1733 = vmatprep.subr.mxu0 0.0
        %1734 = vmatpush1.msra.mxu0 0.0
        %1735 = vmatprep.subr.mxu0 0.0
        %1736 = vmatpush1.msra.mxu0 0.0
        %1737 = vmatprep.subr.mxu0 0.0
        %1738 = vmatpush1.msra.mxu0 0.0
        %1739 = vmatprep.subr.mxu0 0.0
        %1740 = vmatpush1.msra.mxu0 0.0
        %1741 = vmatprep.subr.mxu0 0.0
        %1742 = vmatpush1.msra.mxu0 0.0
        %1743 = vmatprep.subr.mxu0 0.0
        %1744 = vmatpush1.msra.mxu0 0.0
        %1745 = vmatprep.mubr.f32.mxu0 0.0
        %1746 = vmatmul.mubr.f32.gmra.mrb[0].mxu0 %v1676
        %v1747 = vpop.f32.mrb[0].mxu0
        %v1748 = vadd.f32 0.0, %v1747
        %v1749 = vpop.f32.mrb[0].mxu0
        %1750 = vmatprep.mubr.f32.mxu0 0.0
        %1751 = vmatmul.mubr.f32.gmra.mrb[0].mxu0 %v1679
        %v1752 = vpop.f32.mrb[0].mxu0
        %v1753 = vadd.f32 0.0, %v1752
        %v1754 = vpop.f32.mrb[0].mxu0
        %1755 = vdwg.mxu0
        %1758 = vrot.lane.b32.xlu0 %v1586, 32
        %v1759 = vpop.permute.xlu0 %1758
        %1760 = vrot.lane.b32.xlu0 %v1591, 32
        %v1761 = vpop.permute.xlu0 %1760
        %1766 = vrot.lane.b32.xlu0 %v1667, 64
        %v1767 = vpop.permute.xlu0 %1766
        %1768 = vrot.lane.b32.xlu0 %v1672, 64
        %v1769 = vpop.permute.xlu0 %1768
        %1774 = vrot.lane.b32.xlu0 %v1748, 96
        %v1775 = vpop.permute.xlu0 %1774
        %1776 = vrot.lane.b32.xlu0 %v1753, 96
        %v1777 = vpop.permute.xlu0 %1776
        %v1780 = vsel %vm1010, %v1505, %v1759
        %v1781 = vsel %vm1010, %v1510, %v1761
        %vm1782 = vcmask 523264
        %v1783 = vsel %vm1782, %v1780, %v1767
        %v1784 = vsel %vm1782, %v1781, %v1769
        %vm1785 = vcmask 785408
        %v1786 = vsel %vm1785, %v1783, %v1775
        %v1787 = vsel %vm1785, %v1784, %v1777
        %v1789 = vlaneseq
        %v1790 = vshrl.u32 %v1789, 7
        %v1791 = vsub.s32 0, %v1790
        %v1792 = vrot.slane %v787, %v1791
        %1794 = vmatprep.subr.mxu0 0.0
        %1795 = vmatpush1.msra.mxu0 %v642
        %1796 = vmatprep.subr.mxu0 0.0
        %1797 = vmatpush1.msra.mxu0 %v643
        %1798 = vmatprep.subr.mxu0 0.0
        %1799 = vmatpush1.msra.mxu0 %v644
        %1800 = vmatprep.subr.mxu0 0.0
        %1801 = vmatpush1.msra.mxu0 %v645
        %1802 = vmatprep.subr.mxu0 0.0
        %1803 = vmatpush1.msra.mxu0 %v646
        %1804 = vmatprep.subr.mxu0 0.0
        %1805 = vmatpush1.msra.mxu0 %v647
        %1806 = vmatprep.subr.mxu0 0.0
        %1807 = vmatpush1.msra.mxu0 %v648
        %1808 = vmatprep.subr.mxu0 0.0
        %1809 = vmatpush1.msra.mxu0 %v649
        %1810 = vmatprep.subr.mxu0 0.0
        %1811 = vmatpush1.msra.mxu0 %v650
        %1812 = vmatprep.subr.mxu0 0.0
        %1813 = vmatpush1.msra.mxu0 %v651
        %1814 = vmatprep.subr.mxu0 0.0
        %1815 = vmatpush1.msra.mxu0 %v652
        %1816 = vmatprep.subr.mxu0 0.0
        %1817 = vmatpush1.msra.mxu0 %v653
        %1818 = vmatprep.subr.mxu0 0.0
        %1819 = vmatpush1.msra.mxu0 %v654
        %1820 = vmatprep.subr.mxu0 0.0
        %1821 = vmatpush1.msra.mxu0 %v655
        %1822 = vmatprep.subr.mxu0 0.0
        %1823 = vmatpush1.msra.mxu0 %v656
        %1824 = vmatprep.subr.mxu0 0.0
        %1825 = vmatpush1.msra.mxu0 %v657
        %1826 = vmatprep.subr.mxu0 0.0
        %1827 = vmatpush1.msra.mxu0 0.0
        %1828 = vmatprep.subr.mxu0 0.0
        %1829 = vmatpush1.msra.mxu0 0.0
        %1830 = vmatprep.subr.mxu0 0.0
        %1831 = vmatpush1.msra.mxu0 0.0
        %1832 = vmatprep.subr.mxu0 0.0
        %1833 = vmatpush1.msra.mxu0 0.0
        %1834 = vmatprep.subr.mxu0 0.0
        %1835 = vmatpush1.msra.mxu0 0.0
        %1836 = vmatprep.subr.mxu0 0.0
        %1837 = vmatpush1.msra.mxu0 0.0
        %1838 = vmatprep.subr.mxu0 0.0
        %1839 = vmatpush1.msra.mxu0 0.0
        %1840 = vmatprep.subr.mxu0 0.0
        %1841 = vmatpush1.msra.mxu0 0.0
        %1842 = vmatprep.subr.mxu0 0.0
        %1843 = vmatpush1.msra.mxu0 0.0
        %1844 = vmatprep.subr.mxu0 0.0
        %1845 = vmatpush1.msra.mxu0 0.0
        %1846 = vmatprep.subr.mxu0 0.0
        %1847 = vmatpush1.msra.mxu0 0.0
        %1848 = vmatprep.subr.mxu0 0.0
        %1849 = vmatpush1.msra.mxu0 0.0
        %1850 = vmatprep.subr.mxu0 0.0
        %1851 = vmatpush1.msra.mxu0 0.0
        %1852 = vmatprep.subr.mxu0 0.0
        %1853 = vmatpush1.msra.mxu0 0.0
        %1854 = vmatprep.subr.mxu0 0.0
        %1855 = vmatpush1.msra.mxu0 0.0
        %1856 = vmatprep.subr.mxu0 0.0
        %1857 = vmatpush1.msra.mxu0 0.0
        %1858 = vmatprep.mubr.f32.mxu0 0.0
        %1859 = vmatmul.mubr.f32.gmra.mrb[0].mxu0 %v1786
        %v1860 = vpop.f32.mrb[0].mxu0
        %v1861 = vadd.f32 %v1792, %v1860
        %v1862 = vpop.f32.mrb[0].mxu0
        %1863 = vmatprep.mubr.f32.mxu0 0.0
        %1864 = vmatmul.mubr.f32.gmra.mrb[0].mxu0 %v1787
        %v1865 = vpop.f32.mrb[0].mxu0
        %v1866 = vadd.f32 %v1792, %v1865
        %v1867 = vpop.f32.mrb[0].mxu0
        %1868 = vdwg.mxu0
        %v1869 = vadd.f32 %v584, %v1861
        %v1870 = vadd.f32 %v585, %v1866
        %1871 = vadd.xlane.f32.xlu0 %v1869
        %v1872 = vpop.xlane.xlu0 %1871
        %1873 = vadd.xlane.f32.xlu0 %v1870
        %v1874 = vpop.xlane.xlu0 %1873
        %v1875 = vrcp.pop 128.0
        %v1876 = vmul.f32 %v1872, %v1875
        %v1877 = vmul.f32 %v1874, %v1875
        %v1878 = vsub.f32 %v1869, %v1876
        %v1879 = vsub.f32 %v1870, %v1877
        %v1880 = vmul.f32 %v1878, %v1878
        %v1881 = vmul.f32 %v1879, %v1879
        %1882 = vadd.xlane.f32.xlu0 %v1880
        %v1883 = vpop.xlane.xlu0 %1882
        %1884 = vadd.xlane.f32.xlu0 %v1881
        %v1885 = vpop.xlane.xlu0 %1884
        %v1886 = vmul.f32 %v1883, %v1875
        %v1887 = vmul.f32 %v1885, %v1875
        %v1888 = vadd.f32 %v1886, 1e-05
        %v1889 = vadd.f32 %v1887, 1e-05
        %v1890 = vrsqrt.pop %v1888
        %v1891 = vrsqrt.pop %v1889
        %v1892 = vmul.f32 %v1878, %v1890
        %v1893 = vmul.f32 %v1879, %v1891
        %v1895 = vlaneseq
        %v1896 = vshrl.u32 %v1895, 7
        %v1897 = vsub.s32 0, %v1896
        %v1898 = vrot.slane %v790, %v1897
        %v1900 = vmul.f32 %v1892, %v1898
        %v1901 = vmul.f32 %v1893, %v1898
        %v1903 = vlaneseq
        %v1904 = vshrl.u32 %v1903, 7
        %v1905 = vsub.s32 0, %v1904
        %v1906 = vrot.slane %v791, %v1905
        %v1908 = vadd.f32 %v1900, %v1906
        %v1909 = vadd.f32 %v1901, %v1906
        %v1911 = vlaneseq
        %v1912 = vshrl.u32 %v1911, 7
        %v1913 = vsub.s32 0, %v1912
        %v1914 = vrot.slane %v788, %v1913
        %v1915 = vlaneseq
        %v1916 = vshrl.u32 %v1915, 7
        %v1917 = vsub.s32 1, %v1916
        %v1918 = vrot.slane %v788, %v1917
        %v1919 = vlaneseq
        %v1920 = vshrl.u32 %v1919, 7
        %v1921 = vsub.s32 2, %v1920
        %v1922 = vrot.slane %v788, %v1921
        %v1923 = vlaneseq
        %v1924 = vshrl.u32 %v1923, 7
        %v1925 = vsub.s32 3, %v1924
        %v1926 = vrot.slane %v788, %v1925
        %1931 = vmatprep.subr.mxu0 %v659
        %1932 = vmatpush1.msra.mxu0 %v658
        %1933 = vmatprep.subr.mxu0 %v663
        %1934 = vmatpush1.msra.mxu0 %v662
        %1935 = vmatprep.subr.mxu0 %v667
        %1936 = vmatpush1.msra.mxu0 %v666
        %1937 = vmatprep.subr.mxu0 %v671
        %1938 = vmatpush1.msra.mxu0 %v670
        %1939 = vmatprep.subr.mxu0 %v675
        %1940 = vmatpush1.msra.mxu0 %v674
        %1941 = vmatprep.subr.mxu0 %v679
        %1942 = vmatpush1.msra.mxu0 %v678
        %1943 = vmatprep.subr.mxu0 %v683
        %1944 = vmatpush1.msra.mxu0 %v682
        %1945 = vmatprep.subr.mxu0 %v687
        %1946 = vmatpush1.msra.mxu0 %v686
        %1947 = vmatprep.subr.mxu0 %v691
        %1948 = vmatpush1.msra.mxu0 %v690
        %1949 = vmatprep.subr.mxu0 %v695
        %1950 = vmatpush1.msra.mxu0 %v694
        %1951 = vmatprep.subr.mxu0 %v699
        %1952 = vmatpush1.msra.mxu0 %v698
        %1953 = vmatprep.subr.mxu0 %v703
        %1954 = vmatpush1.msra.mxu0 %v702
        %1955 = vmatprep.subr.mxu0 %v707
        %1956 = vmatpush1.msra.mxu0 %v706
        %1957 = vmatprep.subr.mxu0 %v711
        %1958 = vmatpush1.msra.mxu0 %v710
        %1959 = vmatprep.subr.mxu0 %v715
        %1960 = vmatpush1.msra.mxu0 %v714
        %1961 = vmatprep.subr.mxu0 %v719
        %1962 = vmatpush1.msra.mxu0 %v718
        %1963 = vmatprep.subr.mxu0 0.0
        %1964 = vmatpush1.msra.mxu0 0.0
        %1965 = vmatprep.subr.mxu0 0.0
        %1966 = vmatpush1.msra.mxu0 0.0
        %1967 = vmatprep.subr.mxu0 0.0
        %1968 = vmatpush1.msra.mxu0 0.0
        %1969 = vmatprep.subr.mxu0 0.0
        %1970 = vmatpush1.msra.mxu0 0.0
        %1971 = vmatprep.subr.mxu0 0.0
        %1972 = vmatpush1.msra.mxu0 0.0
        %1973 = vmatprep.subr.mxu0 0.0
        %1974 = vmatpush1.msra.mxu0 0.0
        %1975 = vmatprep.subr.mxu0 0.0
        %1976 = vmatpush1.msra.mxu0 0.0
        %1977 = vmatprep.subr.mxu0 0.0
        %1978 = vmatpush1.msra.mxu0 0.0
        %1979 = vmatprep.subr.mxu0 0.0
        %1980 = vmatpush1.msra.mxu0 0.0
        %1981 = vmatprep.subr.mxu0 0.0
        %1982 = vmatpush1.msra.mxu0 0.0
        %1983 = vmatprep.subr.mxu0 0.0
        %1984 = vmatpush1.msra.mxu0 0.0
        %1985 = vmatprep.subr.mxu0 0.0
        %1986 = vmatpush1.msra.mxu0 0.0
        %1987 = vmatprep.subr.mxu0 0.0
        %1988 = vmatpush1.msra.mxu0 0.0
        %1989 = vmatprep.subr.mxu0 0.0
        %1990 = vmatpush1.msra.mxu0 0.0
        %1991 = vmatprep.subr.mxu0 0.0
        %1992 = vmatpush1.msra.mxu0 0.0
        %1993 = vmatprep.subr.mxu0 0.0
        %1994 = vmatpush1.msra.mxu0 0.0
        %1995 = vmatprep.mubr.f32.mxu0 0.0
        %1996 = vmatmul.mubr.f32.gmra.mrb[0].mxu0 %v1908
        %v1997 = vpop.f32.mrb[0].mxu0
        %v1998 = vadd.f32 %v1914, %v1997
        %v1999 = vpop.f32.mrb[0].mxu0
        %v2000 = vadd.f32 %v1918, %v1999
        %2001 = vmatprep.mubr.f32.mxu0 0.0
        %2002 = vmatmul.mubr.f32.gmra.mrb[0].mxu0 %v1909
        %v2003 = vpop.f32.mrb[0].mxu0
        %v2004 = vadd.f32 %v1914, %v2003
        %v2005 = vpop.f32.mrb[0].mxu0
        %v2006 = vadd.f32 %v1918, %v2005
        %2007 = vdwg.mxu0
        %2008 = vmatprep.subr.mxu0 %v661
        %2009 = vmatpush1.msra.mxu0 %v660
        %2010 = vmatprep.subr.mxu0 %v665
        %2011 = vmatpush1.msra.mxu0 %v664
        %2012 = vmatprep.subr.mxu0 %v669
        %2013 = vmatpush1.msra.mxu0 %v668
        %2014 = vmatprep.subr.mxu0 %v673
        %2015 = vmatpush1.msra.mxu0 %v672
        %2016 = vmatprep.subr.mxu0 %v677
        %2017 = vmatpush1.msra.mxu0 %v676
        %2018 = vmatprep.subr.mxu0 %v681
        %2019 = vmatpush1.msra.mxu0 %v680
        %2020 = vmatprep.subr.mxu0 %v685
        %2021 = vmatpush1.msra.mxu0 %v684
        %2022 = vmatprep.subr.mxu0 %v689
        %2023 = vmatpush1.msra.mxu0 %v688
        %2024 = vmatprep.subr.mxu0 %v693
        %2025 = vmatpush1.msra.mxu0 %v692
        %2026 = vmatprep.subr.mxu0 %v697
        %2027 = vmatpush1.msra.mxu0 %v696
        %2028 = vmatprep.subr.mxu0 %v701
        %2029 = vmatpush1.msra.mxu0 %v700
        %2030 = vmatprep.subr.mxu0 %v705
        %2031 = vmatpush1.msra.mxu0 %v704
        %2032 = vmatprep.subr.mxu0 %v709
        %2033 = vmatpush1.msra.mxu0 %v708
        %2034 = vmatprep.subr.mxu0 %v713
        %2035 = vmatpush1.msra.mxu0 %v712
        %2036 = vmatprep.subr.mxu0 %v717
        %2037 = vmatpush1.msra.mxu0 %v716
        %2038 = vmatprep.subr.mxu0 %v721
        %2039 = vmatpush1.msra.mxu0 %v720
        %2040 = vmatprep.subr.mxu0 0.0
        %2041 = vmatpush1.msra.mxu0 0.0
        %2042 = vmatprep.subr.mxu0 0.0
        %2043 = vmatpush1.msra.mxu0 0.0
        %2044 = vmatprep.subr.mxu0 0.0
        %2045 = vmatpush1.msra.mxu0 0.0
        %2046 = vmatprep.subr.mxu0 0.0
        %2047 = vmatpush1.msra.mxu0 0.0
        %2048 = vmatprep.subr.mxu0 0.0
        %2049 = vmatpush1.msra.mxu0 0.0
        %2050 = vmatprep.subr.mxu0 0.0
        %2051 = vmatpush1.msra.mxu0 0.0
        %2052 = vmatprep.subr.mxu0 0.0
        %2053 = vmatpush1.msra.mxu0 0.0
        %2054 = vmatprep.subr.mxu0 0.0
        %2055 = vmatpush1.msra.mxu0 0.0
        %2056 = vmatprep.subr.mxu0 0.0
        %2057 = vmatpush1.msra.mxu0 0.0
        %2058 = vmatprep.subr.mxu0 0.0
        %2059 = vmatpush1.msra.mxu0 0.0
        %2060 = vmatprep.subr.mxu0 0.0
        %2061 = vmatpush1.msra.mxu0 0.0
        %2062 = vmatprep.subr.mxu0 0.0
        %2063 = vmatpush1.msra.mxu0 0.0
        %2064 = vmatprep.subr.mxu0 0.0
        %2065 = vmatpush1.msra.mxu0 0.0
        %2066 = vmatprep.subr.mxu0 0.0
        %2067 = vmatpush1.msra.mxu0 0.0
        %2068 = vmatprep.subr.mxu0 0.0
        %2069 = vmatpush1.msra.mxu0 0.0
        %2070 = vmatprep.subr.mxu0 0.0
        %2071 = vmatpush1.msra.mxu0 0.0
        %2072 = vmatprep.mubr.f32.mxu0 0.0
        %2073 = vmatmul.mubr.f32.gmra.mrb[0].mxu0 %v1908
        %v2074 = vpop.f32.mrb[0].mxu0
        %v2075 = vadd.f32 %v1922, %v2074
        %v2076 = vpop.f32.mrb[0].mxu0
        %v2077 = vadd.f32 %v1926, %v2076
        %2078 = vmatprep.mubr.f32.mxu0 0.0
        %2079 = vmatmul.mubr.f32.gmra.mrb[0].mxu0 %v1909
        %v2080 = vpop.f32.mrb[0].mxu0
        %v2081 = vadd.f32 %v1922, %v2080
        %v2082 = vpop.f32.mrb[0].mxu0
        %v2083 = vadd.f32 %v1926, %v2082
        %2084 = vdwg.mxu0
        %v2085 = vmax.f32 %v1998, 0.0
        %v2086 = vmax.f32 %v2000, 0.0
        %v2087 = vmax.f32 %v2075, 0.0
        %v2088 = vmax.f32 %v2077, 0.0
        %v2089 = vmax.f32 %v2004, 0.0
        %v2090 = vmax.f32 %v2006, 0.0
        %v2091 = vmax.f32 %v2081, 0.0
        %v2092 = vmax.f32 %v2083, 0.0
        %v2094 = vlaneseq
        %v2095 = vshrl.u32 %v2094, 7
        %v2096 = vsub.s32 0, %v2095
        %v2097 = vrot.slane %v789, %v2096
        %2099 = vmatprep.subr.mxu0 0.0
        %2100 = vmatpush1.msra.mxu0 %v722
        %2101 = vmatprep.subr.mxu0 0.0
        %2102 = vmatpush1.msra.mxu0 %v723
        %2103 = vmatprep.subr.mxu0 0.0
        %2104 = vmatpush1.msra.mxu0 %v724
        %2105 = vmatprep.subr.mxu0 0.0
        %2106 = vmatpush1.msra.mxu0 %v725
        %2107 = vmatprep.subr.mxu0 0.0
        %2108 = vmatpush1.msra.mxu0 %v726
        %2109 = vmatprep.subr.mxu0 0.0
        %2110 = vmatpush1.msra.mxu0 %v727
        %2111 = vmatprep.subr.mxu0 0.0
        %2112 = vmatpush1.msra.mxu0 %v728
        %2113 = vmatprep.subr.mxu0 0.0
        %2114 = vmatpush1.msra.mxu0 %v729
        %2115 = vmatprep.subr.mxu0 0.0
        %2116 = vmatpush1.msra.mxu0 %v730
        %2117 = vmatprep.subr.mxu0 0.0
        %2118 = vmatpush1.msra.mxu0 %v731
        %2119 = vmatprep.subr.mxu0 0.0
        %2120 = vmatpush1.msra.mxu0 %v732
        %2121 = vmatprep.subr.mxu0 0.0
        %2122 = vmatpush1.msra.mxu0 %v733
        %2123 = vmatprep.subr.mxu0 0.0
        %2124 = vmatpush1.msra.mxu0 %v734
        %2125 = vmatprep.subr.mxu0 0.0
        %2126 = vmatpush1.msra.mxu0 %v735
        %2127 = vmatprep.subr.mxu0 0.0
        %2128 = vmatpush1.msra.mxu0 %v736
        %2129 = vmatprep.subr.mxu0 0.0
        %2130 = vmatpush1.msra.mxu0 %v737
        %2131 = vmatprep.subr.mxu0 0.0
        %2132 = vmatpush1.msra.mxu0 %v738
        %2133 = vmatprep.subr.mxu0 0.0
        %2134 = vmatpush1.msra.mxu0 %v739
        %2135 = vmatprep.subr.mxu0 0.0
        %2136 = vmatpush1.msra.mxu0 %v740
        %2137 = vmatprep.subr.mxu0 0.0
        %2138 = vmatpush1.msra.mxu0 %v741
        %2139 = vmatprep.subr.mxu0 0.0
        %2140 = vmatpush1.msra.mxu0 %v742
        %2141 = vmatprep.subr.mxu0 0.0
        %2142 = vmatpush1.msra.mxu0 %v743
        %2143 = vmatprep.subr.mxu0 0.0
        %2144 = vmatpush1.msra.mxu0 %v744
        %2145 = vmatprep.subr.mxu0 0.0
        %2146 = vmatpush1.msra.mxu0 %v745
        %2147 = vmatprep.subr.mxu0 0.0
        %2148 = vmatpush1.msra.mxu0 %v746
        %2149 = vmatprep.subr.mxu0 0.0
        %2150 = vmatpush1.msra.mxu0 %v747
        %2151 = vmatprep.subr.mxu0 0.0
        %2152 = vmatpush1.msra.mxu0 %v748
        %2153 = vmatprep.subr.mxu0 0.0
        %2154 = vmatpush1.msra.mxu0 %v749
        %2155 = vmatprep.subr.mxu0 0.0
        %2156 = vmatpush1.msra.mxu0 %v750
        %2157 = vmatprep.subr.mxu0 0.0
        %2158 = vmatpush1.msra.mxu0 %v751
        %2159 = vmatprep.subr.mxu0 0.0
        %2160 = vmatpush1.msra.mxu0 %v752
        %2161 = vmatprep.subr.mxu0 0.0
        %2162 = vmatpush1.msra.mxu0 %v753
        %2163 = vmatprep.mubr.f32.mxu0 %v2086
        %2164 = vmatmul.mubr.f32.gmra.mrb[0].mxu0 %v2085
        %v2165 = vpop.f32.mrb[0].mxu0
        %v2166 = vadd.f32 %v2097, %v2165
        %v2167 = vpop.f32.mrb[0].mxu0
        %2168 = vmatprep.mubr.f32.mxu0 %v2090
        %2169 = vmatmul.mubr.f32.gmra.mrb[0].mxu0 %v2089
        %v2170 = vpop.f32.mrb[0].mxu0
        %v2171 = vadd.f32 %v2097, %v2170
        %v2172 = vpop.f32.mrb[0].mxu0
        %2173 = vdwg.mxu0
        %2174 = vmatprep.subr.mxu0 0.0
        %2175 = vmatpush1.msra.mxu0 %v754
        %2176 = vmatprep.subr.mxu0 0.0
        %2177 = vmatpush1.msra.mxu0 %v755
        %2178 = vmatprep.subr.mxu0 0.0
        %2179 = vmatpush1.msra.mxu0 %v756
        %2180 = vmatprep.subr.mxu0 0.0
        %2181 = vmatpush1.msra.mxu0 %v757
        %2182 = vmatprep.subr.mxu0 0.0
        %2183 = vmatpush1.msra.mxu0 %v758
        %2184 = vmatprep.subr.mxu0 0.0
        %2185 = vmatpush1.msra.mxu0 %v759
        %2186 = vmatprep.subr.mxu0 0.0
        %2187 = vmatpush1.msra.mxu0 %v760
        %2188 = vmatprep.subr.mxu0 0.0
        %2189 = vmatpush1.msra.mxu0 %v761
        %2190 = vmatprep.subr.mxu0 0.0
        %2191 = vmatpush1.msra.mxu0 %v762
        %2192 = vmatprep.subr.mxu0 0.0
        %2193 = vmatpush1.msra.mxu0 %v763
        %2194 = vmatprep.subr.mxu0 0.0
        %2195 = vmatpush1.msra.mxu0 %v764
        %2196 = vmatprep.subr.mxu0 0.0
        %2197 = vmatpush1.msra.mxu0 %v765
        %2198 = vmatprep.subr.mxu0 0.0
        %2199 = vmatpush1.msra.mxu0 %v766
        %2200 = vmatprep.subr.mxu0 0.0
        %2201 = vmatpush1.msra.mxu0 %v767
        %2202 = vmatprep.subr.mxu0 0.0
        %2203 = vmatpush1.msra.mxu0 %v768
        %2204 = vmatprep.subr.mxu0 0.0
        %2205 = vmatpush1.msra.mxu0 %v769
        %2206 = vmatprep.subr.mxu0 0.0
        %2207 = vmatpush1.msra.mxu0 %v770
        %2208 = vmatprep.subr.mxu0 0.0
        %2209 = vmatpush1.msra.mxu0 %v771
        %2210 = vmatprep.subr.mxu0 0.0
        %2211 = vmatpush1.msra.mxu0 %v772
        %2212 = vmatprep.subr.mxu0 0.0
        %2213 = vmatpush1.msra.mxu0 %v773
        %2214 = vmatprep.subr.mxu0 0.0
        %2215 = vmatpush1.msra.mxu0 %v774
        %2216 = vmatprep.subr.mxu0 0.0
        %2217 = vmatpush1.msra.mxu0 %v775
        %2218 = vmatprep.subr.mxu0 0.0
        %2219 = vmatpush1.msra.mxu0 %v776
        %2220 = vmatprep.subr.mxu0 0.0
        %2221 = vmatpush1.msra.mxu0 %v777
        %2222 = vmatprep.subr.mxu0 0.0
        %2223 = vmatpush1.msra.mxu0 %v778
        %2224 = vmatprep.subr.mxu0 0.0
        %2225 = vmatpush1.msra.mxu0 %v779
        %2226 = vmatprep.subr.mxu0 0.0
        %2227 = vmatpush1.msra.mxu0 %v780
        %2228 = vmatprep.subr.mxu0 0.0
        %2229 = vmatpush1.msra.mxu0 %v781
        %2230 = vmatprep.subr.mxu0 0.0
        %2231 = vmatpush1.msra.mxu0 %v782
        %2232 = vmatprep.subr.mxu0 0.0
        %2233 = vmatpush1.msra.mxu0 %v783
        %2234 = vmatprep.subr.mxu0 0.0
        %2235 = vmatpush1.msra.mxu0 %v784
        %2236 = vmatprep.subr.mxu0 0.0
        %2237 = vmatpush1.msra.mxu0 %v785
        %2238 = vmatprep.mubr.f32.mxu0 %v2088
        %2239 = vmatmul.mubr.f32.gmra.mrb[0].mxu0 %v2087
        %v2240 = vpop.f32.mrb[0].mxu0
        %v2241 = vadd.f32 %v2166, %v2240
        %v2242 = vpop.f32.mrb[0].mxu0
        %2243 = vmatprep.mubr.f32.mxu0 %v2092
        %2244 = vmatmul.mubr.f32.gmra.mrb[0].mxu0 %v2091
        %v2245 = vpop.f32.mrb[0].mxu0
        %v2246 = vadd.f32 %v2171, %v2245
        %v2247 = vpop.f32.mrb[0].mxu0
        %2248 = vdwg.mxu0
        %v2249 = vadd.f32 %v1908, %v2241
        %v2250 = vadd.f32 %v1909, %v2246
        %2251 = vadd.xlane.f32.xlu0 %v2249
        %v2252 = vpop.xlane.xlu0 %2251
        %2253 = vadd.xlane.f32.xlu0 %v2250
        %v2254 = vpop.xlane.xlu0 %2253
        %v2255 = vmul.f32 %v2252, %v1875
        %v2256 = vmul.f32 %v2254, %v1875
        %v2257 = vsub.f32 %v2249, %v2255
        %v2258 = vsub.f32 %v2250, %v2256
        %v2259 = vmul.f32 %v2257, %v2257
        %v2260 = vmul.f32 %v2258, %v2258
        %2261 = vadd.xlane.f32.xlu0 %v2259
        %v2262 = vpop.xlane.xlu0 %2261
        %2263 = vadd.xlane.f32.xlu0 %v2260
        %v2264 = vpop.xlane.xlu0 %2263
        %v2265 = vmul.f32 %v2262, %v1875
        %v2266 = vmul.f32 %v2264, %v1875
        %v2267 = vadd.f32 %v2265, 1e-05
        %v2268 = vadd.f32 %v2266, 1e-05
        %v2269 = vrsqrt.pop %v2267
        %v2270 = vrsqrt.pop %v2268
        %v2271 = vmul.f32 %v2257, %v2269
        %v2272 = vmul.f32 %v2258, %v2270
        %v2274 = vlaneseq
        %v2275 = vshrl.u32 %v2274, 7
        %v2276 = vsub.s32 0, %v2275
        %v2277 = vrot.slane %v792, %v2276
        %v2279 = vmul.f32 %v2271, %v2277
        %v2280 = vmul.f32 %v2272, %v2277
        %v2282 = vlaneseq
        %v2283 = vshrl.u32 %v2282, 7
        %v2284 = vsub.s32 0, %v2283
        %v2285 = vrot.slane %v793, %v2284
        %v2287 = vadd.f32 %v2279, %v2285
        %v2288 = vadd.f32 %v2280, %v2285
        %2289 = vst [vmem:[%s583] sm:$0xff] %v2287
        %2290 = vst [vmem:[%s583 + $0x8] sm:$0xff] %v2288
        %s2291 = sand.u32 %s348, 1
        %s2292 = scalar_lea.sflag [#allocation4], %s2291
        %s2293 = sand.u32 %s348, 1
        %s2294 = smul.addr %s2293, 16
        %s2295 = scalar_lea.vmem [#allocation13], %s2294
        // Predicated region
        $region101: #{tpu_custom_call.1} parent=75 // pred_check
          %p2296 = pneg %p358
        $region102: #{tpu_custom_call.1} parent=75 // pred_check_branch
          %2298 = sbr.rel (%p2296) target = $region104
        $region103: #{tpu_custom_call.1} parent=75 // pred_region
          %s2300 = ssub.s32 256, 256
          %2301 = vsyncadd %s2292, %s2300
          %s2302 = smul.addr %s36, 2
          %s2303 = smul.addr %s2302, 128
          %s2304 = scalar_lea.hbm %s14, %s2303
          %s2305 = sshll.u32 %s2295, 4
          %s2306 = int_to_ptr.vmem [resolvable:$true] %s2305
          %2311 = dma.vmem_to_hbm [thread:$0]  %s2306, 256, %s2304, %s2292, 128, 128, 8
        $region104: #{tpu_custom_call.1} parent=75 // pred_fallthru
          _
      $region76: #{tpu_custom_call.1} parent=5 // pred_fallthru
        _
      %p2312 = scmp.le.s32.totalorder 2, %s31
      // Predicated region
      $region105: #{tpu_custom_call.1} parent=5 // pred_check
        %p2313 = pneg %p2312
      $region106: #{tpu_custom_call.1} parent=5 // pred_check_branch
        %2315 = sbr.rel (%p2313) target = $region108
      $region107: #{tpu_custom_call.1} parent=5 // pred_region
        %s2316 = ssub.s32 %s31, 2
        // Predicated region
        $region109: #{tpu_custom_call.1} parent=107 // pred_check
          %p2317 = pneg %p364
        $region110: #{tpu_custom_call.1} parent=107 // pred_check_branch
          %2319 = sbr.rel (%p2317) target = $region112
        $region111: #{tpu_custom_call.1} parent=107 // pred_region
          %s2320 = sand.u32 %s349, 1
          %s2321 = scalar_lea.sflag [#allocation4], %s2320
          %s2322 = sand.u32 %s349, 1
          %s2323 = smul.addr %s2322, 16
          %s2324 = scalar_lea.vmem [#allocation13], %s2323
          %2325 = dma.done %s2321, 256
        $region112: #{tpu_custom_call.1} parent=107 // pred_fallthru
          _
      $region108: #{tpu_custom_call.1} parent=5 // pred_fallthru
        _
    $region6: #{tpu_custom_call.1} parent=1 // loop_footer
      %s35 = sadd.s32 1, %s31
    $region7: #{tpu_custom_call.1} parent=1 // loop_footer_branch
      %30 = sbr.rel target = $region3
    $region8: #{tpu_custom_call.1} parent=1 // loop_exit
      _
    %2326 = vsyncpa [#allocation3], 1
    %s2327 = scalar_lea.sflag [#allocation3], 1
    %2328 = vsyncpa %s2327, 1
    %2329 = vsyncpa [#allocation6], 1
    %s2330 = scalar_lea.sflag [#allocation6], 1
    %2331 = vsyncpa %s2330, 1
    %2332 = vsyncpa [#allocation9], 1
    %2333 = vsyncpa [#allocation12], 1
    %2334 = vsyncpa [#allocation4], 1
    %s2335 = scalar_lea.sflag [#allocation4], 1
    %2336 = vsyncpa %s2335, 1

// kernel: tpu_custom_call.1
$region0: #{tpu_custom_call.1}
  #allocation0 [shape = 'u32[]', space=smem, size = 0x4, offset = 0x4, fixed_abs, tag = 'smem constant byte address 0x4 - core index']
  #allocation1 [shape = 'u32[144,128]{1,0:T(1,128)}', space=vmem, size = 0x12000, scoped, tag = 'internal scratch']
  %s0 = inlined_call_operand.hbm [shape: f32[4,16,128], index: 0, kind: input, shape index: {}]
  %s1 = inlined_call_operand.hbm [shape: f32[4,4,16,16], index: 1, kind: input, shape index: {}]
  %s2 = inlined_call_operand.hbm [shape: f32[128,384], index: 2, kind: input, shape index: {}]
  %s3 = inlined_call_operand.vmem [shape: f32[1,384], index: 3, kind: input, shape index: {}]
  %s4 = inlined_call_operand.hbm [shape: f32[128,128], index: 4, kind: input, shape index: {}]
  %s5 = inlined_call_operand.vmem [shape: f32[1,128], index: 5, kind: input, shape index: {}]
  %s6 = inlined_call_operand.vmem [shape: f32[1,128], index: 6, kind: input, shape index: {}]
  %s7 = inlined_call_operand.vmem [shape: f32[1,128], index: 7, kind: input, shape index: {}]
  %s8 = inlined_call_operand.hbm [shape: f32[128,512], index: 8, kind: input, shape index: {}]
  %s9 = inlined_call_operand.vmem [shape: f32[1,512], index: 9, kind: input, shape index: {}]
  %s10 = inlined_call_operand.hbm [shape: f32[512,128], index: 10, kind: input, shape index: {}]
  %s11 = inlined_call_operand.vmem [shape: f32[1,128], index: 11, kind: input, shape index: {}]
  %s12 = inlined_call_operand.vmem [shape: f32[1,128], index: 12, kind: input, shape index: {}]
  %s13 = inlined_call_operand.vmem [shape: f32[1,128], index: 13, kind: input, shape index: {}]
  %s14 = inlined_call_operand.hbm [shape: f32[4,16,128], index: 14, kind: output, shape index: {}]
  %s15 = sld [smem:[#allocation0]]
  $region113: #{tpu_custom_call.1} parent=0
    _
  %s17 = ssub.s32 1, %s15
  %s18 = scalar_select 0, %s17, %s15
  $region1: #{tpu_custom_call.1} parent=0
    #allocation2 [shape = 'u8[16384]{0}', space=vmem, size = 0x4000, scoped, tag = 'input window, operand 0']
    #allocation3 [shape = 's32[2]{0}', space=sflag, size = 0x8, scoped, tag = 'scoped memory for tpu_custom_call.1']
    #allocation4 [shape = 's32[2]{0}', space=sflag, size = 0x8, scoped, tag = 'scoped memory for tpu_custom_call.1']
    #allocation5 [shape = 'u8[65536]{0}', space=vmem, size = 0x10000, scoped, tag = 'input window, operand 1']
    #allocation6 [shape = 's32[2]{0}', space=sflag, size = 0x8, scoped, tag = 'scoped memory for tpu_custom_call.1']
    #allocation7 [shape = 'u8[196608]{0}', space=vmem, size = 0x30000, scoped, tag = 'input window, operand 2, single buffered']
    #allocation8 [shape = 'u8[65536]{0}', space=vmem, size = 0x10000, scoped, tag = 'input window, operand 4, single buffered']
    #allocation9 [shape = 's32[1]{0}', space=sflag, size = 0x4, scoped, tag = 'scoped memory for tpu_custom_call.1']
    #allocation10 [shape = 'u8[262144]{0}', space=vmem, size = 0x40000, scoped, tag = 'input window, operand 8, single buffered']
    #allocation11 [shape = 'u8[262144]{0}', space=vmem, size = 0x40000, scoped, tag = 'input window, operand 10, single buffered']
    #allocation12 [shape = 's32[1]{0}', space=sflag, size = 0x4, scoped, tag = 'scoped memory for tpu_custom_call.1']
    #allocation13 [shape = 'u8[16384]{0}', space=vmem, size = 0x4000, scoped, tag = 'output window, operand 0']
    %19 = vsyncpa [#allocation3], 0
    %s20 = scalar_lea.sflag [#allocation3], 1
    %21 = vsyncpa %s20, 0
    %22 = vsyncpa [#allocation6], 0
    %s23 = scalar_lea.sflag [#allocation6], 1
    %24 = vsyncpa %s23, 0
    %25 = vsyncpa [#allocation9], 0
    %26 = vsyncpa [#allocation12], 0
    %27 = vsyncpa [#allocation4], 0
    %s28 = scalar_lea.sflag [#allocation4], 1
    %29 = vsyncpa %s28, 0
    loop: start=0, step=1, limit=6
    $region2: #{tpu_custom_call.1} parent=1 // loop_pre_header
      _
    $region3: #{tpu_custom_call.1} parent=1 // loop_header
      %s31 = sphi 0, %s35
      %p32 = scmp.ge.s32.totalorder %s31, 6
      %s41 = sphi 0, %s43
      %s44 = sphi 0, %s41
      %s45 = sphi 0, %s44
      %s61 = sphi 0, %s45
      %s67 = sphi 0, %s69
      %s70 = sphi 0, %s67
      %s71 = sphi 0, %s70
      %s87 = sphi 0, %s71
      %s91 = sphi 0, %s91
      %s93 = sphi 0, %s91
      %s94 = sphi 0, %s93
      %s108 = sphi 0, %s94
      %s112 = sphi 0, %s112
      %s114 = sphi 0, %s112
      %s115 = sphi 0, %s114
      %s129 = sphi 0, %s115
      %s133 = sphi 0, %s133
      %s135 = sphi 0, %s133
      %s136 = sphi 0, %s135
      %s150 = sphi 0, %s136
      %s154 = sphi 0, %s154
      %s156 = sphi 0, %s154
      %s157 = sphi 0, %s156
      %s171 = sphi 0, %s157
      %s175 = sphi 0, %s175
      %s177 = sphi 0, %s175
      %s178 = sphi 0, %s177
      %s192 = sphi 0, %s178
      %s196 = sphi 0, %s196
      %s198 = sphi 0, %s196
      %s199 = sphi 0, %s198
      %s213 = sphi 0, %s199
      %s217 = sphi 0, %s217
      %s219 = sphi 0, %s217
      %s220 = sphi 0, %s219
      %s234 = sphi 0, %s220
      %s238 = sphi 0, %s238
      %s240 = sphi 0, %s238
      %s241 = sphi 0, %s240
      %s255 = sphi 0, %s241
      %s259 = sphi 0, %s259
      %s261 = sphi 0, %s259
      %s262 = sphi 0, %s261
      %s276 = sphi 0, %s262
      %s280 = sphi 0, %s280
      %s282 = sphi 0, %s280
      %s283 = sphi 0, %s282
      %s297 = sphi 0, %s283
      %s301 = sphi 0, %s301
      %s303 = sphi 0, %s301
      %s304 = sphi 0, %s303
      %s318 = sphi 0, %s304
      %s322 = sphi 0, %s322
      %s324 = sphi 0, %s322
      %s325 = sphi 0, %s324
      %s339 = sphi 0, %s325
      %s345 = sphi 0, %s347
      %s348 = sphi 0, %s345
      %s349 = sphi 0, %s348
      %s365 = sphi 0, %s349
    $region4: #{tpu_custom_call.1} parent=1 // loop_header_branch
      %34 = sbr.rel (%p32) target = $region8
    $region5: #{tpu_custom_call.1} parent=1 // loop_body
      %s36 = ssub.s32 %s31, 1
      %s37 = ssub.s32 %s31, 2
      %s38 = sadd.s32 %s31, 1
      %s39 = ssub.s32 %s31, %s38
      %p40 = scmp.eq.s32.totalorder %s39, 0
      %s42 = sadd.s32 %s41, 1
      %s43 = scalar_select %p40, %s41, %s42
      %p46 = pneg %p40
      %p47 = scmp.eq.s32.totalorder %s31, 3
      %p48 = por %p46, %p47
      %p49 = scmp.ne.s32.totalorder %s41, %s44
      %p50 = scmp.eq.s32.totalorder %s31, 0
      %p51 = por %p49, %p50
      %p52 = scmp.ne.s32.totalorder %s41, %s44
      %p53 = scmp.eq.s32.totalorder %s36, 3
      %p54 = por %p52, %p53
      %p55 = scmp.ne.s32.totalorder %s44, %s45
      %p56 = scmp.eq.s32.totalorder %s36, 0
      %p57 = por %p55, %p56
      %p58 = scmp.ne.s32.totalorder %s44, %s45
      %p59 = scmp.eq.s32.totalorder %s37, 3
      %p60 = por %p58, %p59
      %p62 = scmp.ne.s32.totalorder %s45, %s61
      %p63 = scmp.eq.s32.totalorder %s37, 0
      %p64 = por %p62, %p63
      %s65 = ssub.s32 %s31, %s38
      %p66 = scmp.eq.s32.totalorder %s65, 0
      %s68 = sadd.s32 %s67, 1
      %s69 = scalar_select %p66, %s67, %s68
      %p72 = pneg %p66
      %p73 = scmp.eq.s32.totalorder %s31, 3
      %p74 = por %p72, %p73
      %p75 = scmp.ne.s32.totalorder %s67, %s70
      %p76 = scmp.eq.s32.totalorder %s31, 0
      %p77 = por %p75, %p76
      %p78 = scmp.ne.s32.totalorder %s67, %s70
      %p79 = scmp.eq.s32.totalorder %s36, 3
      %p80 = por %p78, %p79
      %p81 = scmp.ne.s32.totalorder %s70, %s71
      %p82 = scmp.eq.s32.totalorder %s36, 0
      %p83 = por %p81, %p82
      %p84 = scmp.ne.s32.totalorder %s70, %s71
      %p85 = scmp.eq.s32.totalorder %s37, 3
      %p86 = por %p84, %p85
      %p88 = scmp.ne.s32.totalorder %s71, %s87
      %p89 = scmp.eq.s32.totalorder %s37, 0
      %p90 = por %p88, %p89
      %s92 = sadd.s32 %s91, 1
      %p95 = scmp.eq.s32.totalorder %s31, 3
      %p96 = scmp.ne.s32.totalorder %s91, %s93
      %p97 = scmp.eq.s32.totalorder %s31, 0
      %p98 = por %p96, %p97
      %p99 = scmp.ne.s32.totalorder %s91, %s93
      %p100 = scmp.eq.s32.totalorder %s36, 3
      %p101 = por %p99, %p100
      %p102 = scmp.ne.s32.totalorder %s93, %s94
      %p103 = scmp.eq.s32.totalorder %s36, 0
      %p104 = por %p102, %p103
      %p105 = scmp.ne.s32.totalorder %s93, %s94
      %p106 = scmp.eq.s32.totalorder %s37, 3
      %p107 = por %p105, %p106
      %p109 = scmp.ne.s32.totalorder %s94, %s108
      %p110 = scmp.eq.s32.totalorder %s37, 0
      %p111 = por %p109, %p110
      %s113 = sadd.s32 %s112, 1
      %p116 = scmp.eq.s32.totalorder %s31, 3
      %p117 = scmp.ne.s32.totalorder %s112, %s114
      %p118 = scmp.eq.s32.totalorder %s31, 0
      %p119 = por %p117, %p118
      %p120 = scmp.ne.s32.totalorder %s112, %s114
      %p121 = scmp.eq.s32.totalorder %s36, 3
      %p122 = por %p120, %p121
      %p123 = scmp.ne.s32.totalorder %s114, %s115
      %p124 = scmp.eq.s32.totalorder %s36, 0
      %p125 = por %p123, %p124
      %p126 = scmp.ne.s32.totalorder %s114, %s115
      %p127 = scmp.eq.s32.totalorder %s37, 3
      %p128 = por %p126, %p127
      %p130 = scmp.ne.s32.totalorder %s115, %s129
      %p131 = scmp.eq.s32.totalorder %s37, 0
      %p132 = por %p130, %p131
      %s134 = sadd.s32 %s133, 1
      %p137 = scmp.eq.s32.totalorder %s31, 3
      %p138 = scmp.ne.s32.totalorder %s133, %s135
      %p139 = scmp.eq.s32.totalorder %s31, 0
      %p140 = por %p138, %p139
      %p141 = scmp.ne.s32.totalorder %s133, %s135
      %p142 = scmp.eq.s32.totalorder %s36, 3
      %p143 = por %p141, %p142
      %p144 = scmp.ne.s32.totalorder %s135, %s136
      %p145 = scmp.eq.s32.totalorder %s36, 0
      %p146 = por %p144, %p145
      %p147 = scmp.ne.s32.totalorder %s135, %s136
      %p148 = scmp.eq.s32.totalorder %s37, 3
      %p149 = por %p147, %p148
      %p151 = scmp.ne.s32.totalorder %s136, %s150
      %p152 = scmp.eq.s32.totalorder %s37, 0
      %p153 = por %p151, %p152
      %s155 = sadd.s32 %s154, 1
      %p158 = scmp.eq.s32.totalorder %s31, 3
      %p159 = scmp.ne.s32.totalorder %s154, %s156
      %p160 = scmp.eq.s32.totalorder %s31, 0
      %p161 = por %p159, %p160
      %p162 = scmp.ne.s32.totalorder %s154, %s156
      %p163 = scmp.eq.s32.totalorder %s36, 3
      %p164 = por %p162, %p163
      %p165 = scmp.ne.s32.totalorder %s156, %s157
      %p166 = scmp.eq.s32.totalorder %s36, 0
      %p167 = por %p165, %p166
      %p168 = scmp.ne.s32.totalorder %s156, %s157
      %p169 = scmp.eq.s32.totalorder %s37, 3
      %p170 = por %p168, %p169
      %p172 = scmp.ne.s32.totalorder %s157, %s171
      %p173 = scmp.eq.s32.totalorder %s37, 0
      %p174 = por %p172, %p173
      %s176 = sadd.s32 %s175, 1
      %p179 = scmp.eq.s32.totalorder %s31, 3
      %p180 = scmp.ne.s32.totalorder %s175, %s177
      %p181 = scmp.eq.s32.totalorder %s31, 0
      %p182 = por %p180, %p181
      %p183 = scmp.ne.s32.totalorder %s175, %s177
      %p184 = scmp.eq.s32.totalorder %s36, 3
      %p185 = por %p183, %p184
      %p186 = scmp.ne.s32.totalorder %s177, %s178
      %p187 = scmp.eq.s32.totalorder %s36, 0
      %p188 = por %p186, %p187
      %p189 = scmp.ne.s32.totalorder %s177, %s178
      %p190 = scmp.eq.s32.totalorder %s37, 3
      %p191 = por %p189, %p190
      %p193 = scmp.ne.s32.totalorder %s178, %s192
      %p194 = scmp.eq.s32.totalorder %s37, 0
      %p195 = por %p193, %p194
      %s197 = sadd.s32 %s196, 1
      %p200 = scmp.eq.s32.totalorder %s31, 3
      %p201 = scmp.ne.s32.totalorder %s196, %s198
      %p202 = scmp.eq.s32.totalorder %s31, 0
      %p203 = por %p201, %p202
      %p204 = scmp.ne.s32.totalorder %s196, %s198
      %p205 = scmp.eq.s32.totalorder %s36, 3
      %p206 = por %p204, %p205
      %p207 = scmp.ne.s32.totalorder %s198, %s199
      %p208 = scmp.eq.s32.totalorder %s36, 0
      %p209 = por %p207, %p208
      %p210 = scmp.ne.s32.totalorder %s198, %s199
      %p211 = scmp.eq.s32.totalorder %s37, 3
      %p212 = por %p210, %p211
      %p214 = scmp.ne.s32.totalorder %s199, %s213
      %p215 = scmp.eq.s32.totalorder %s37, 0
      %p216 = por %p214, %p215
      %s218 = sadd.s32 %s217, 1
      %p221 = scmp.eq.s32.totalorder %s31, 3
      %p222 = scmp.ne.s32.totalorder %s217, %s219
      %p223 = scmp.eq.s32.totalorder %s31, 0
      %p224 = por %p222, %p223
      %p225 = scmp.ne.s32.totalorder %s217, %s219
      %p226 = scmp.eq.s32.totalorder %s36, 3
      %p227 = por %p225, %p226
      %p228 = scmp.ne.s32.totalorder %s219, %s220
      %p229 = scmp.eq.s32.totalorder %s36, 0
      %p230 = por %p228, %p229
      %p231 = scmp.ne.s32.totalorder %s219, %s220
      %p232 = scmp.eq.s32.totalorder %s37, 3
      %p233 = por %p231, %p232
      %p235 = scmp.ne.s32.totalorder %s220, %s234
      %p236 = scmp.eq.s32.totalorder %s37, 0
      %p237 = por %p235, %p236
      %s239 = sadd.s32 %s238, 1
      %p242 = scmp.eq.s32.totalorder %s31, 3
      %p243 = scmp.ne.s32.totalorder %s238, %s240
      %p244 = scmp.eq.s32.totalorder %s31, 0
      %p245 = por %p243, %p244
      %p246 = scmp.ne.s32.totalorder %s238, %s240
      %p247 = scmp.eq.s32.totalorder %s36, 3
      %p248 = por %p246, %p247
      %p249 = scmp.ne.s32.totalorder %s240, %s241
      %p250 = scmp.eq.s32.totalorder %s36, 0
      %p251 = por %p249, %p250
      %p252 = scmp.ne.s32.totalorder %s240, %s241
      %p253 = scmp.eq.s32.totalorder %s37, 3
      %p254 = por %p252, %p253
      %p256 = scmp.ne.s32.totalorder %s241, %s255
      %p257 = scmp.eq.s32.totalorder %s37, 0
      %p258 = por %p256, %p257
      %s260 = sadd.s32 %s259, 1
      %p263 = scmp.eq.s32.totalorder %s31, 3
      %p264 = scmp.ne.s32.totalorder %s259, %s261
      %p265 = scmp.eq.s32.totalorder %s31, 0
      %p266 = por %p264, %p265
      %p267 = scmp.ne.s32.totalorder %s259, %s261
      %p268 = scmp.eq.s32.totalorder %s36, 3
      %p269 = por %p267, %p268
      %p270 = scmp.ne.s32.totalorder %s261, %s262
      %p271 = scmp.eq.s32.totalorder %s36, 0
      %p272 = por %p270, %p271
      %p273 = scmp.ne.s32.totalorder %s261, %s262
      %p274 = scmp.eq.s32.totalorder %s37, 3
      %p275 = por %p273, %p274
      %p277 = scmp.ne.s32.totalorder %s262, %s276
      %p278 = scmp.eq.s32.totalorder %s37, 0
      %p279 = por %p277, %p278
      %s281 = sadd.s32 %s280, 1
      %p284 = scmp.eq.s32.totalorder %s31, 3
      %p285 = scmp.ne.s32.totalorder %s280, %s282
      %p286 = scmp.eq.s32.totalorder %s31, 0
      %p287 = por %p285, %p286
      %p288 = scmp.ne.s32.totalorder %s280, %s282
      %p289 = scmp.eq.s32.totalorder %s36, 3
      %p290 = por %p288, %p289
      %p291 = scmp.ne.s32.totalorder %s282, %s283
      %p292 = scmp.eq.s32.totalorder %s36, 0
      %p293 = por %p291, %p292
      %p294 = scmp.ne.s32.totalorder %s282, %s283
      %p295 = scmp.eq.s32.totalorder %s37, 3
      %p296 = por %p294, %p295
      %p298 = scmp.ne.s32.totalorder %s283, %s297
      %p299 = scmp.eq.s32.totalorder %s37, 0
      %p300 = por %p298, %p299
      %s302 = sadd.s32 %s301, 1
      %p305 = scmp.eq.s32.totalorder %s31, 3
      %p306 = scmp.ne.s32.totalorder %s301, %s303
      %p307 = scmp.eq.s32.totalorder %s31, 0
      %p308 = por %p306, %p307
      %p309 = scmp.ne.s32.totalorder %s301, %s303
      %p310 = scmp.eq.s32.totalorder %s36, 3
      %p311 = por %p309, %p310
      %p312 = scmp.ne.s32.totalorder %s303, %s304
      %p313 = scmp.eq.s32.totalorder %s36, 0
      %p314 = por %p312, %p313
      %p315 = scmp.ne.s32.totalorder %s303, %s304
      %p316 = scmp.eq.s32.totalorder %s37, 3
      %p317 = por %p315, %p316
      %p319 = scmp.ne.s32.totalorder %s304, %s318
      %p320 = scmp.eq.s32.totalorder %s37, 0
      %p321 = por %p319, %p320
      %s323 = sadd.s32 %s322, 1
      %p326 = scmp.eq.s32.totalorder %s31, 3
      %p327 = scmp.ne.s32.totalorder %s322, %s324
      %p328 = scmp.eq.s32.totalorder %s31, 0
      %p329 = por %p327, %p328
      %p330 = scmp.ne.s32.totalorder %s322, %s324
      %p331 = scmp.eq.s32.totalorder %s36, 3
      %p332 = por %p330, %p331
      %p333 = scmp.ne.s32.totalorder %s324, %s325
      %p334 = scmp.eq.s32.totalorder %s36, 0
      %p335 = por %p333, %p334
      %p336 = scmp.ne.s32.totalorder %s324, %s325
      %p337 = scmp.eq.s32.totalorder %s37, 3
      %p338 = por %p336, %p337
      %p340 = scmp.ne.s32.totalorder %s325, %s339
      %p341 = scmp.eq.s32.totalorder %s37, 0
      %p342 = por %p340, %p341
      %s343 = ssub.s32 %s31, %s38
      %p344 = scmp.eq.s32.totalorder %s343, 0
      %s346 = sadd.s32 %s345, 1
      %s347 = scalar_select %p344, %s345, %s346
      %p350 = pneg %p344
      %p351 = scmp.eq.s32.totalorder %s31, 3
      %p352 = por %p350, %p351
      %p353 = scmp.ne.s32.totalorder %s345, %s348
      %p354 = scmp.eq.s32.totalorder %s31, 0
      %p355 = por %p353, %p354
      %p356 = scmp.ne.s32.totalorder %s345, %s348
      %p357 = scmp.eq.s32.totalorder %s36, 3
      %p358 = por %p356, %p357
      %p359 = scmp.ne.s32.totalorder %s348, %s349
      %p360 = scmp.eq.s32.totalorder %s36, 0
      %p361 = por %p359, %p360
      %p362 = scmp.ne.s32.totalorder %s348, %s349
      %p363 = scmp.eq.s32.totalorder %s37, 3
      %p364 = por %p362, %p363
      %p366 = scmp.ne.s32.totalorder %s349, %s365
      %p367 = scmp.eq.s32.totalorder %s37, 0
      %p368 = por %p366, %p367
      %p369 = scmp.le.s32.totalorder 1, %s31
      %p370 = scmp.lt.s32.totalorder %s31, 5
      %p371 = pnand %p369, %p370
      %p372 = pneg %p371
      // Predicated region
      $region9: #{tpu_custom_call.1} parent=5 // pred_check
        _
      $region10: #{tpu_custom_call.1} parent=5 // pred_check_branch
        %374 = sbr.rel (%p371) target = $region12
      $region11: #{tpu_custom_call.1} parent=5 // pred_region
        %s375 = ssub.s32 %s31, 1
        // Predicated region
        $region13: #{tpu_custom_call.1} parent=11 // pred_check
          %p376 = pneg %p104
        $region14: #{tpu_custom_call.1} parent=11 // pred_check_branch
          %378 = sbr.rel (%p376) target = $region16
        $region15: #{tpu_custom_call.1} parent=11 // pred_region
          %s380 = ssub.s32 6144, 6144
          %381 = vsyncadd [#allocation6], %s380
          %s382 = sshll.u32 [#allocation7], 4
          %s383 = int_to_ptr.vmem [resolvable:$true] %s382
          %388 = dma.hbm_to_vmem [thread:$0]  %s2, 6144, %s383, [#allocation6], 384, 384, 24
        $region16: #{tpu_custom_call.1} parent=11 // pred_fallthru
          _
        // Predicated region
        $region17: #{tpu_custom_call.1} parent=11 // pred_check
          %p389 = pneg %p125
        $region18: #{tpu_custom_call.1} parent=11 // pred_check_branch
          %391 = sbr.rel (%p389) target = $region20
        $region19: #{tpu_custom_call.1} parent=11 // pred_region
          _
        $region20: #{tpu_custom_call.1} parent=11 // pred_fallthru
          _
        // Predicated region
        $region21: #{tpu_custom_call.1} parent=11 // pred_check
          %p392 = pneg %p146
        $region22: #{tpu_custom_call.1} parent=11 // pred_check_branch
          %394 = sbr.rel (%p392) target = $region24
        $region23: #{tpu_custom_call.1} parent=11 // pred_region
          %s396 = ssub.s32 2048, 2048
          %397 = vsyncadd [#allocation9], %s396
          %s398 = sshll.u32 [#allocation8], 4
          %s399 = int_to_ptr.vmem [resolvable:$true] %s398
          %404 = dma.hbm_to_vmem [thread:$0]  %s4, 2048, %s399, [#allocation9], 128, 128, 8
        $region24: #{tpu_custom_call.1} parent=11 // pred_fallthru
          _
        // Predicated region
        $region25: #{tpu_custom_call.1} parent=11 // pred_check
          %p405 = pneg %p167
        $region26: #{tpu_custom_call.1} parent=11 // pred_check_branch
          %407 = sbr.rel (%p405) target = $region28
        $region27: #{tpu_custom_call.1} parent=11 // pred_region
          _
        $region28: #{tpu_custom_call.1} parent=11 // pred_fallthru
          _
        // Predicated region
        $region29: #{tpu_custom_call.1} parent=11 // pred_check
          %p408 = pneg %p188
        $region30: #{tpu_custom_call.1} parent=11 // pred_check_branch
          %410 = sbr.rel (%p408) target = $region32
        $region31: #{tpu_custom_call.1} parent=11 // pred_region
          _
        $region32: #{tpu_custom_call.1} parent=11 // pred_fallthru
          _
        // Predicated region
        $region33: #{tpu_custom_call.1} parent=11 // pred_check
          %p411 = pneg %p209
        $region34: #{tpu_custom_call.1} parent=11 // pred_check_branch
          %413 = sbr.rel (%p411) target = $region36
        $region35: #{tpu_custom_call.1} parent=11 // pred_region
          _
        $region36: #{tpu_custom_call.1} parent=11 // pred_fallthru
          _
        // Predicated region
        $region37: #{tpu_custom_call.1} parent=11 // pred_check
          %p414 = pneg %p230
        $region38: #{tpu_custom_call.1} parent=11 // pred_check_branch
          %416 = sbr.rel (%p414) target = $region40
        $region39: #{tpu_custom_call.1} parent=11 // pred_region
          %s418 = ssub.s32 8192, 8192
          %419 = vsyncadd [#allocation9], %s418
          %s420 = sshll.u32 [#allocation10], 4
          %s421 = int_to_ptr.vmem [resolvable:$true] %s420
          %426 = dma.hbm_to_vmem [thread:$0]  %s8, 8192, %s421, [#allocation9], 512, 512, 32
        $region40: #{tpu_custom_call.1} parent=11 // pred_fallthru
          _
        // Predicated region
        $region41: #{tpu_custom_call.1} parent=11 // pred_check
          %p427 = pneg %p251
        $region42: #{tpu_custom_call.1} parent=11 // pred_check_branch
          %429 = sbr.rel (%p427) target = $region44
        $region43: #{tpu_custom_call.1} parent=11 // pred_region
          _
        $region44: #{tpu_custom_call.1} parent=11 // pred_fallthru
          _
        // Predicated region
        $region45: #{tpu_custom_call.1} parent=11 // pred_check
          %p430 = pneg %p272
        $region46: #{tpu_custom_call.1} parent=11 // pred_check_branch
          %432 = sbr.rel (%p430) target = $region48
        $region47: #{tpu_custom_call.1} parent=11 // pred_region
          %s434 = ssub.s32 8192, 8192
          %435 = vsyncadd [#allocation12], %s434
          %s436 = sshll.u32 [#allocation11], 4
          %s437 = int_to_ptr.vmem [resolvable:$true] %s436
          %442 = dma.hbm_to_vmem [thread:$0]  %s10, 8192, %s437, [#allocation12], 128, 128, 8
        $region48: #{tpu_custom_call.1} parent=11 // pred_fallthru
          _
        // Predicated region
        $region49: #{tpu_custom_call.1} parent=11 // pred_check
          %p443 = pneg %p293
        $region50: #{tpu_custom_call.1} parent=11 // pred_check_branch
          %445 = sbr.rel (%p443) target = $region52
        $region51: #{tpu_custom_call.1} parent=11 // pred_region
          _
        $region52: #{tpu_custom_call.1} parent=11 // pred_fallthru
          _
        // Predicated region
        $region53: #{tpu_custom_call.1} parent=11 // pred_check
          %p446 = pneg %p314
        $region54: #{tpu_custom_call.1} parent=11 // pred_check_branch
          %448 = sbr.rel (%p446) target = $region56
        $region55: #{tpu_custom_call.1} parent=11 // pred_region
          _
        $region56: #{tpu_custom_call.1} parent=11 // pred_fallthru
          _
        // Predicated region
        $region57: #{tpu_custom_call.1} parent=11 // pred_check
          %p449 = pneg %p335
        $region58: #{tpu_custom_call.1} parent=11 // pred_check_branch
          %451 = sbr.rel (%p449) target = $region60
        $region59: #{tpu_custom_call.1} parent=11 // pred_region
          _
        $region60: #{tpu_custom_call.1} parent=11 // pred_fallthru
          _
      $region12: #{tpu_custom_call.1} parent=5 // pred_fallthru
        _
      %p452 = scmp.lt.s32.totalorder %s31, 4
      // Predicated region
      $region61: #{tpu_custom_call.1} parent=5 // pred_check
        %p453 = pneg %p452
      $region62: #{tpu_custom_call.1} parent=5 // pred_check_branch
        %455 = sbr.rel (%p453) target = $region64
      $region63: #{tpu_custom_call.1} parent=5 // pred_region
        // Predicated region
        $region65: #{tpu_custom_call.1} parent=63 // pred_check
          %p456 = pneg %p51
        $region66: #{tpu_custom_call.1} parent=63 // pred_check_branch
          %458 = sbr.rel (%p456) target = $region68
        $region67: #{tpu_custom_call.1} parent=63 // pred_region
          %s459 = sand.u32 %s41, 1
          %s460 = scalar_lea.sflag [#allocation3], %s459
          %s461 = sand.u32 %s41, 1
          %s462 = smul.addr %s461, 16
          %s463 = scalar_lea.vmem [#allocation2], %s462
          %s465 = ssub.s32 256, 256
          %466 = vsyncadd %s460, %s465
          %s467 = smul.addr %s31, 2
          %s468 = smul.addr %s467, 128
          %s469 = scalar_lea.hbm %s0, %s468
          %s470 = sshll.u32 %s463, 4
          %s471 = int_to_ptr.vmem [resolvable:$true] %s470
          %476 = dma.hbm_to_vmem [thread:$0]  %s469, 256, %s471, %s460, 128, 128, 8
        $region68: #{tpu_custom_call.1} parent=63 // pred_fallthru
          _
        // Predicated region
        $region69: #{tpu_custom_call.1} parent=63 // pred_check
          %p477 = pneg %p77
        $region70: #{tpu_custom_call.1} parent=63 // pred_check_branch
          %479 = sbr.rel (%p477) target = $region72
        $region71: #{tpu_custom_call.1} parent=63 // pred_region
          %s480 = sand.u32 %s31, 1
          %s481 = scalar_lea.sflag [#allocation6], %s480
          %s482 = sand.u32 %s67, 1
          %s483 = smul.addr %s482, 64
          %s484 = scalar_lea.vmem [#allocation5], %s483
          %s486 = ssub.s32 1024, 1024
          %487 = vsyncadd %s481, %s486
          %s488 = smul.addr %s31, 8
          %s489 = smul.addr %s488, 128
          %s490 = scalar_lea.hbm %s1, %s489
          %s491 = sshll.u32 %s484, 4
          %s492 = int_to_ptr.vmem [resolvable:$true] %s491
          %497 = dma.hbm_to_vmem [thread:$0]  %s490, 1024, %s492, %s481, 128, 128, 8
        $region72: #{tpu_custom_call.1} parent=63 // pred_fallthru
          _
      $region64: #{tpu_custom_call.1} parent=5 // pred_fallthru
        _
      %p498 = scmp.le.s32.totalorder 1, %s31
      %p499 = scmp.lt.s32.totalorder %s31, 5
      %p500 = pnand %p498, %p499
      %p501 = pneg %p500
      // Predicated region
      $region73: #{tpu_custom_call.1} parent=5 // pred_check
        _
      $region74: #{tpu_custom_call.1} parent=5 // pred_check_branch
        %503 = sbr.rel (%p500) target = $region76
      $region75: #{tpu_custom_call.1} parent=5 // pred_region
        %s504 = ssub.s32 %s31, 1
        %s505 = sand.u32 %s44, 1
        %s506 = scalar_lea.sflag [#allocation3], %s505
        %s507 = sand.u32 %s44, 1
        %s508 = smul.addr %s507, 16
        %s509 = scalar_lea.vmem [#allocation2], %s508
        // Predicated region
        $region77: #{tpu_custom_call.1} parent=75 // pred_check
          %p510 = pneg %p57
        $region78: #{tpu_custom_call.1} parent=75 // pred_check_branch
          %512 = sbr.rel (%p510) target = $region80
        $region79: #{tpu_custom_call.1} parent=75 // pred_region
          %513 = dma.done %s506, 256
        $region80: #{tpu_custom_call.1} parent=75 // pred_fallthru
          _
        %s514 = sand.u32 %s36, 1
        %s515 = scalar_lea.sflag [#allocation6], %s514
        %s516 = sand.u32 %s70, 1
        %s517 = smul.addr %s516, 64
        %s518 = scalar_lea.vmem [#allocation5], %s517
        // Predicated region
        $region81: #{tpu_custom_call.1} parent=75 // pred_check
          %p519 = pneg %p83
        $region82: #{tpu_custom_call.1} parent=75 // pred_check_branch
          %521 = sbr.rel (%p519) target = $region84
        $region83: #{tpu_custom_call.1} parent=75 // pred_region
          %522 = dma.done %s515, 1024
        $region84: #{tpu_custom_call.1} parent=75 // pred_fallthru
          _
        // Predicated region
        $region85: #{tpu_custom_call.1} parent=75 // pred_check
          %p523 = pneg %p104
        $region86: #{tpu_custom_call.1} parent=75 // pred_check_branch
          %525 = sbr.rel (%p523) target = $region88
        $region87: #{tpu_custom_call.1} parent=75 // pred_region
          %526 = dma.done [#allocation6], 6144
        $region88: #{tpu_custom_call.1} parent=75 // pred_fallthru
          _
        // Predicated region
        $region89: #{tpu_custom_call.1} parent=75 // pred_check
          %p527 = pneg %p146
        $region90: #{tpu_custom_call.1} parent=75 // pred_check_branch
          %529 = sbr.rel (%p527) target = $region92
        $region91: #{tpu_custom_call.1} parent=75 // pred_region
          %530 = dma.done [#allocation9], 2048
        $region92: #{tpu_custom_call.1} parent=75 // pred_fallthru
          _
        // Predicated region
        $region93: #{tpu_custom_call.1} parent=75 // pred_check
          %p531 = pneg %p230
        $region94: #{tpu_custom_call.1} parent=75 // pred_check_branch
          %533 = sbr.rel (%p531) target = $region96
        $region95: #{tpu_custom_call.1} parent=75 // pred_region
          %534 = dma.done [#allocation9], 8192
        $region96: #{tpu_custom_call.1} parent=75 // pred_fallthru
          _
        // Predicated region
        $region97: #{tpu_custom_call.1} parent=75 // pred_check
          %p535 = pneg %p272
        $region98: #{tpu_custom_call.1} parent=75 // pred_check_branch
          %537 = sbr.rel (%p535) target = $region100
        $region99: #{tpu_custom_call.1} parent=75 // pred_region
          %538 = dma.done [#allocation12], 8192
        $region100: #{tpu_custom_call.1} parent=75 // pred_fallthru
          _
        %s539 = sand.u32 %s44, 1
        %s540 = scalar_lea.sflag [#allocation3], %s539
        %s541 = sand.u32 %s44, 1
        %s542 = smul.addr %s541, 16
        %s543 = scalar_lea.vmem [#allocation2], %s542
        %p544 = pneg %p57
        %p545 = pneg %p54
        %s546 = sand.u32 %s36, 1
        %s547 = scalar_lea.sflag [#allocation6], %s546
        %s548 = sand.u32 %s70, 1
        %s549 = smul.addr %s548, 64
        %s550 = scalar_lea.vmem [#allocation5], %s549
        %p551 = pneg %p83
        %p552 = pneg %p80
        %p553 = pneg %p104
        %p554 = pneg %p101
        %p555 = pneg %p125
        %p556 = pneg %p122
        %p557 = pneg %p146
        %p558 = pneg %p143
        %p559 = pneg %p167
        %p560 = pneg %p164
        %p561 = pneg %p188
        %p562 = pneg %p185
        %p563 = pneg %p209
        %p564 = pneg %p206
        %p565 = pneg %p230
        %p566 = pneg %p227
        %p567 = pneg %p251
        %p568 = pneg %p248
        %p569 = pneg %p272
        %p570 = pneg %p269
        %p571 = pneg %p293
        %p572 = pneg %p290
        %p573 = pneg %p314
        %p574 = pneg %p311
        %p575 = pneg %p335
        %p576 = pneg %p332
        %p577 = pneg %p361
        %p578 = pneg %p358
        %s579 = sand.u32 %s348, 1
        %s580 = scalar_lea.sflag [#allocation4], %s579
        %s581 = sand.u32 %s348, 1
        %s582 = smul.addr %s581, 16
        %s583 = scalar_lea.vmem [#allocation13], %s582
        %v584 = vld [vmem:[%s509] sm:$0xff]
        %v585 = vld [vmem:[%s509 + $0x8] sm:$0xff]
        %v586 = vld [vmem:[%s518] sm:$0xff]
        %v587 = vld [vmem:[%s518 + $0x8] sm:$0xff]
        %v588 = vld [vmem:[%s518 + $0x10] sm:$0xff]
        %v589 = vld [vmem:[%s518 + $0x18] sm:$0xff]
        %v590 = vld [vmem:[%s518 + $0x20] sm:$0xff]
        %v591 = vld [vmem:[%s518 + $0x28] sm:$0xff]
        %v592 = vld [vmem:[%s518 + $0x30] sm:$0xff]
        %v593 = vld [vmem:[%s518 + $0x38] sm:$0xff]
        %v594 = vld [vmem:[#allocation7] sm:$0xff]
        %v595 = vld [vmem:[#allocation7 + $0x8] sm:$0xff]
        %v596 = vld [vmem:[#allocation7 + $0x10] sm:$0xff]
        %v597 = vld [vmem:[#allocation7 + $0x18] sm:$0xff]
        %v598 = vld [vmem:[#allocation7 + $0x20] sm:$0xff]
        %v599 = vld [vmem:[#allocation7 + $0x28] sm:$0xff]
        %v600 = vld [vmem:[#allocation7 + $0x30] sm:$0xff]
        %v601 = vld [vmem:[#allocation7 + $0x38] sm:$0xff]
        %v602 = vld [vmem:[#allocation7 + $0x40] sm:$0xff]
        %v603 = vld [vmem:[#allocation7 + $0x48] sm:$0xff]
        %v604 = vld [vmem:[#allocation7 + $0x50] sm:$0xff]
        %v605 = vld [vmem:[#allocation7 + $0x58] sm:$0xff]
        %v606 = vld [vmem:[#allocation7 + $0x60] sm:$0xff]
        %v607 = vld [vmem:[#allocation7 + $0x68] sm:$0xff]
        %v608 = vld [vmem:[#allocation7 + $0x70] sm:$0xff]
        %v609 = vld [vmem:[#allocation7 + $0x78] sm:$0xff]
        %v610 = vld [vmem:[#allocation7 + $0x80] sm:$0xff]
        %v611 = vld [vmem:[#allocation7 + $0x88] sm:$0xff]
        %v612 = vld [vmem:[#allocation7 + $0x90] sm:$0xff]
        %v613 = vld [vmem:[#allocation7 + $0x98] sm:$0xff]
        %v614 = vld [vmem:[#allocation7 + $0xa0] sm:$0xff]
        %v615 = vld [vmem:[#allocation7 + $0xa8] sm:$0xff]
        %v616 = vld [vmem:[#allocation7 + $0xb0] sm:$0xff]
        %v617 = vld [vmem:[#allocation7 + $0xb8] sm:$0xff]
        %v618 = vld [vmem:[#allocation7 + $0xc0] sm:$0xff]
        %v619 = vld [vmem:[#allocation7 + $0xc8] sm:$0xff]
        %v620 = vld [vmem:[#allocation7 + $0xd0] sm:$0xff]
        %v621 = vld [vmem:[#allocation7 + $0xd8] sm:$0xff]
        %v622 = vld [vmem:[#allocation7 + $0xe0] sm:$0xff]
        %v623 = vld [vmem:[#allocation7 + $0xe8] sm:$0xff]
        %v624 = vld [vmem:[#allocation7 + $0xf0] sm:$0xff]
        %v625 = vld [vmem:[#allocation7 + $0xf8] sm:$0xff]
        %v626 = vld [vmem:[#allocation7 + $0x100] sm:$0xff]
        %v627 = vld [vmem:[#allocation7 + $0x108] sm:$0xff]
        %v628 = vld [vmem:[#allocation7 + $0x110] sm:$0xff]
        %v629 = vld [vmem:[#allocation7 + $0x118] sm:$0xff]
        %v630 = vld [vmem:[#allocation7 + $0x120] sm:$0xff]
        %v631 = vld [vmem:[#allocation7 + $0x128] sm:$0xff]
        %v632 = vld [vmem:[#allocation7 + $0x130] sm:$0xff]
        %v633 = vld [vmem:[#allocation7 + $0x138] sm:$0xff]
        %v634 = vld [vmem:[#allocation7 + $0x140] sm:$0xff]
        %v635 = vld [vmem:[#allocation7 + $0x148] sm:$0xff]
        %v636 = vld [vmem:[#allocation7 + $0x150] sm:$0xff]
        %v637 = vld [vmem:[#allocation7 + $0x158] sm:$0xff]
        %v638 = vld [vmem:[#allocation7 + $0x160] sm:$0xff]
        %v639 = vld [vmem:[#allocation7 + $0x168] sm:$0xff]
        %v640 = vld [vmem:[#allocation7 + $0x170] sm:$0xff]
        %v641 = vld [vmem:[#allocation7 + $0x178] sm:$0xff]
        %v642 = vld [vmem:[#allocation8] sm:$0xff]
        %v643 = vld [vmem:[#allocation8 + $0x8] sm:$0xff]
        %v644 = vld [vmem:[#allocation8 + $0x10] sm:$0xff]
        %v645 = vld [vmem:[#allocation8 + $0x18] sm:$0xff]
        %v646 = vld [vmem:[#allocation8 + $0x20] sm:$0xff]
        %v647 = vld [vmem:[#allocation8 + $0x28] sm:$0xff]
        %v648 = vld [vmem:[#allocation8 + $0x30] sm:$0xff]
        %v649 = vld [vmem:[#allocation8 + $0x38] sm:$0xff]
        %v650 = vld [vmem:[#allocation8 + $0x40] sm:$0xff]
        %v651 = vld [vmem:[#allocation8 + $0x48] sm:$0xff]
        %v652 = vld [vmem:[#allocation8 + $0x50] sm:$0xff]
        %v653 = vld [vmem:[#allocation8 + $0x58] sm:$0xff]
        %v654 = vld [vmem:[#allocation8 + $0x60] sm:$0xff]
        %v655 = vld [vmem:[#allocation8 + $0x68] sm:$0xff]
        %v656 = vld [vmem:[#allocation8 + $0x70] sm:$0xff]
        %v657 = vld [vmem:[#allocation8 + $0x78] sm:$0xff]
        %v658 = vld [vmem:[#allocation10] sm:$0xff]
        %v659 = vld [vmem:[#allocation10 + $0x8] sm:$0xff]
        %v660 = vld [vmem:[#allocation10 + $0x10] sm:$0xff]
        %v661 = vld [vmem:[#allocation10 + $0x18] sm:$0xff]
        %v662 = vld [vmem:[#allocation10 + $0x20] sm:$0xff]
        %v663 = vld [vmem:[#allocation10 + $0x28] sm:$0xff]
        %v664 = vld [vmem:[#allocation10 + $0x30] sm:$0xff]
        %v665 = vld [vmem:[#allocation10 + $0x38] sm:$0xff]
        %v666 = vld [vmem:[#allocation10 + $0x40] sm:$0xff]
        %v667 = vld [vmem:[#allocation10 + $0x48] sm:$0xff]
        %v668 = vld [vmem:[#allocation10 + $0x50] sm:$0xff]
        %v669 = vld [vmem:[#allocation10 + $0x58] sm:$0xff]
        %v670 = vld [vmem:[#allocation10 + $0x60] sm:$0xff]
        %v671 = vld [vmem:[#allocation10 + $0x68] sm:$0xff]
        %v672 = vld [vmem:[#allocation10 + $0x70] sm:$0xff]
        %v673 = vld [vmem:[#allocation10 + $0x78] sm:$0xff]
        %v674 = vld [vmem:[#allocation10 + $0x80] sm:$0xff]
        %v675 = vld [vmem:[#allocation10 + $0x88] sm:$0xff]
        %v676 = vld [vmem:[#allocation10 + $0x90] sm:$0xff]
        %v677 = vld [vmem:[#allocation10 + $0x98] sm:$0xff]
        %v678 = vld [vmem:[#allocation10 + $0xa0] sm:$0xff]
        %v679 = vld [vmem:[#allocation10 + $0xa8] sm:$0xff]
        %v680 = vld [vmem:[#allocation10 + $0xb0] sm:$0xff]
        %v681 = vld [vmem:[#allocation10 + $0xb8] sm:$0xff]
        %v682 = vld [vmem:[#allocation10 + $0xc0] sm:$0xff]
        %v683 = vld [vmem:[#allocation10 + $0xc8] sm:$0xff]
        %v684 = vld [vmem:[#allocation10 + $0xd0] sm:$0xff]
        %v685 = vld [vmem:[#allocation10 + $0xd8] sm:$0xff]
        %v686 = vld [vmem:[#allocation10 + $0xe0] sm:$0xff]
        %v687 = vld [vmem:[#allocation10 + $0xe8] sm:$0xff]
        %v688 = vld [vmem:[#allocation10 + $0xf0] sm:$0xff]
        %v689 = vld [vmem:[#allocation10 + $0xf8] sm:$0xff]
        %v690 = vld [vmem:[#allocation10 + $0x100] sm:$0xff]
        %v691 = vld [vmem:[#allocation10 + $0x108] sm:$0xff]
        %v692 = vld [vmem:[#allocation10 + $0x110] sm:$0xff]
        %v693 = vld [vmem:[#allocation10 + $0x118] sm:$0xff]
        %v694 = vld [vmem:[#allocation10 + $0x120] sm:$0xff]
        %v695 = vld [vmem:[#allocation10 + $0x128] sm:$0xff]
        %v696 = vld [vmem:[#allocation10 + $0x130] sm:$0xff]
        %v697 = vld [vmem:[#allocation10 + $0x138] sm:$0xff]
        %v698 = vld [vmem:[#allocation10 + $0x140] sm:$0xff]
        %v699 = vld [vmem:[#allocation10 + $0x148] sm:$0xff]
        %v700 = vld [vmem:[#allocation10 + $0x150] sm:$0xff]
        %v701 = vld [vmem:[#allocation10 + $0x158] sm:$0xff]
        %v702 = vld [vmem:[#allocation10 + $0x160] sm:$0xff]
        %v703 = vld [vmem:[#allocation10 + $0x168] sm:$0xff]
        %v704 = vld [vmem:[#allocation10 + $0x170] sm:$0xff]
        %v705 = vld [vmem:[#allocation10 + $0x178] sm:$0xff]
        %v706 = vld [vmem:[#allocation10 + $0x180] sm:$0xff]
        %v707 = vld [vmem:[#allocation10 + $0x188] sm:$0xff]
        %v708 = vld [vmem:[#allocation10 + $0x190] sm:$0xff]
        %v709 = vld [vmem:[#allocation10 + $0x198] sm:$0xff]
        %v710 = vld [vmem:[#allocation10 + $0x1a0] sm:$0xff]
        %v711 = vld [vmem:[#allocation10 + $0x1a8] sm:$0xff]
        %v712 = vld [vmem:[#allocation10 + $0x1b0] sm:$0xff]
        %v713 = vld [vmem:[#allocation10 + $0x1b8] sm:$0xff]
        %v714 = vld [vmem:[#allocation10 + $0x1c0] sm:$0xff]
        %v715 = vld [vmem:[#allocation10 + $0x1c8] sm:$0xff]
        %v716 = vld [vmem:[#allocation10 + $0x1d0] sm:$0xff]
        %v717 = vld [vmem:[#allocation10 + $0x1d8] sm:$0xff]
        %v718 = vld [vmem:[#allocation10 + $0x1e0] sm:$0xff]
        %v719 = vld [vmem:[#allocation10 + $0x1e8] sm:$0xff]
        %v720 = vld [vmem:[#allocation10 + $0x1f0] sm:$0xff]
        %v721 = vld [vmem:[#allocation10 + $0x1f8] sm:$0xff]
        %v722 = vld [vmem:[#allocation11] sm:$0xff]
        %v723 = vld [vmem:[#allocation11 + $0x8] sm:$0xff]
        %v724 = vld [vmem:[#allocation11 + $0x10] sm:$0xff]
        %v725 = vld [vmem:[#allocation11 + $0x18] sm:$0xff]
        %v726 = vld [vmem:[#allocation11 + $0x20] sm:$0xff]
        %v727 = vld [vmem:[#allocation11 + $0x28] sm:$0xff]
        %v728 = vld [vmem:[#allocation11 + $0x30] sm:$0xff]
        %v729 = vld [vmem:[#allocation11 + $0x38] sm:$0xff]
        %v730 = vld [vmem:[#allocation11 + $0x40] sm:$0xff]
        %v731 = vld [vmem:[#allocation11 + $0x48] sm:$0xff]
        %v732 = vld [vmem:[#allocation11 + $0x50] sm:$0xff]
        %v733 = vld [vmem:[#allocation11 + $0x58] sm:$0xff]
        %v734 = vld [vmem:[#allocation11 + $0x60] sm:$0xff]
        %v735 = vld [vmem:[#allocation11 + $0x68] sm:$0xff]
        %v736 = vld [vmem:[#allocation11 + $0x70] sm:$0xff]
        %v737 = vld [vmem:[#allocation11 + $0x78] sm:$0xff]
        %v738 = vld [vmem:[#allocation11 + $0x80] sm:$0xff]
        %v739 = vld [vmem:[#allocation11 + $0x88] sm:$0xff]
        %v740 = vld [vmem:[#allocation11 + $0x90] sm:$0xff]
        %v741 = vld [vmem:[#allocation11 + $0x98] sm:$0xff]
        %v742 = vld [vmem:[#allocation11 + $0xa0] sm:$0xff]
        %v743 = vld [vmem:[#allocation11 + $0xa8] sm:$0xff]
        %v744 = vld [vmem:[#allocation11 + $0xb0] sm:$0xff]
        %v745 = vld [vmem:[#allocation11 + $0xb8] sm:$0xff]
        %v746 = vld [vmem:[#allocation11 + $0xc0] sm:$0xff]
        %v747 = vld [vmem:[#allocation11 + $0xc8] sm:$0xff]
        %v748 = vld [vmem:[#allocation11 + $0xd0] sm:$0xff]
        %v749 = vld [vmem:[#allocation11 + $0xd8] sm:$0xff]
        %v750 = vld [vmem:[#allocation11 + $0xe0] sm:$0xff]
        %v751 = vld [vmem:[#allocation11 + $0xe8] sm:$0xff]
        %v752 = vld [vmem:[#allocation11 + $0xf0] sm:$0xff]
        %v753 = vld [vmem:[#allocation11 + $0xf8] sm:$0xff]
        %v754 = vld [vmem:[#allocation11 + $0x100] sm:$0xff]
        %v755 = vld [vmem:[#allocation11 + $0x108] sm:$0xff]
        %v756 = vld [vmem:[#allocation11 + $0x110] sm:$0xff]
        %v757 = vld [vmem:[#allocation11 + $0x118] sm:$0xff]
        %v758 = vld [vmem:[#allocation11 + $0x120] sm:$0xff]
        %v759 = vld [vmem:[#allocation11 + $0x128] sm:$0xff]
        %v760 = vld [vmem:[#allocation11 + $0x130] sm:$0xff]
        %v761 = vld [vmem:[#allocation11 + $0x138] sm:$0xff]
        %v762 = vld [vmem:[#allocation11 + $0x140] sm:$0xff]
        %v763 = vld [vmem:[#allocation11 + $0x148] sm:$0xff]
        %v764 = vld [vmem:[#allocation11 + $0x150] sm:$0xff]
        %v765 = vld [vmem:[#allocation11 + $0x158] sm:$0xff]
        %v766 = vld [vmem:[#allocation11 + $0x160] sm:$0xff]
        %v767 = vld [vmem:[#allocation11 + $0x168] sm:$0xff]
        %v768 = vld [vmem:[#allocation11 + $0x170] sm:$0xff]
        %v769 = vld [vmem:[#allocation11 + $0x178] sm:$0xff]
        %v770 = vld [vmem:[#allocation11 + $0x180] sm:$0xff]
        %v771 = vld [vmem:[#allocation11 + $0x188] sm:$0xff]
        %v772 = vld [vmem:[#allocation11 + $0x190] sm:$0xff]
        %v773 = vld [vmem:[#allocation11 + $0x198] sm:$0xff]
        %v774 = vld [vmem:[#allocation11 + $0x1a0] sm:$0xff]
        %v775 = vld [vmem:[#allocation11 + $0x1a8] sm:$0xff]
        %v776 = vld [vmem:[#allocation11 + $0x1b0] sm:$0xff]
        %v777 = vld [vmem:[#allocation11 + $0x1b8] sm:$0xff]
        %v778 = vld [vmem:[#allocation11 + $0x1c0] sm:$0xff]
        %v779 = vld [vmem:[#allocation11 + $0x1c8] sm:$0xff]
        %v780 = vld [vmem:[#allocation11 + $0x1d0] sm:$0xff]
        %v781 = vld [vmem:[#allocation11 + $0x1d8] sm:$0xff]
        %v782 = vld [vmem:[#allocation11 + $0x1e0] sm:$0xff]
        %v783 = vld [vmem:[#allocation11 + $0x1e8] sm:$0xff]
        %v784 = vld [vmem:[#allocation11 + $0x1f0] sm:$0xff]
        %v785 = vld [vmem:[#allocation11 + $0x1f8] sm:$0xff]
        %v786 = vld [vmem:[%s3] sm:$0x7]
        %v787 = vld [vmem:[%s5] sm:$0x1]
        %v788 = vld [vmem:[%s9] sm:$0xf]
        %v789 = vld [vmem:[%s11] sm:$0x1]
        %v790 = vld [vmem:[%s6] sm:$0x1]
        %v791 = vld [vmem:[%s7] sm:$0x1]
        %v792 = vld [vmem:[%s12] sm:$0x1]
        %v793 = vld [vmem:[%s13] sm:$0x1]
        %v795 = vlaneseq
        %v796 = vshrl.u32 %v795, 7
        %v797 = vsub.s32 0, %v796
        %v798 = vrot.slane %v786, %v797
        %v799 = vlaneseq
        %v800 = vshrl.u32 %v799, 7
        %v801 = vsub.s32 1, %v800
        %v802 = vrot.slane %v786, %v801
        %v803 = vlaneseq
        %v804 = vshrl.u32 %v803, 7
        %v805 = vsub.s32 2, %v804
        %v806 = vrot.slane %v786, %v805
        %810 = vmatprep.subr.mxu0 %v595
        %811 = vmatpush1.msra.mxu0 %v594
        %812 = vmatprep.subr.mxu0 %v598
        %813 = vmatpush1.msra.mxu0 %v597
        %814 = vmatprep.subr.mxu0 %v601
        %815 = vmatpush1.msra.mxu0 %v600
        %816 = vmatprep.subr.mxu0 %v604
        %817 = vmatpush1.msra.mxu0 %v603
        %818 = vmatprep.subr.mxu0 %v607
        %819 = vmatpush1.msra.mxu0 %v606
        %820 = vmatprep.subr.mxu0 %v610
        %821 = vmatpush1.msra.mxu0 %v609
        %822 = vmatprep.subr.mxu0 %v613
        %823 = vmatpush1.msra.mxu0 %v612
        %824 = vmatprep.subr.mxu0 %v616
        %825 = vmatpush1.msra.mxu0 %v615
        %826 = vmatprep.subr.mxu0 %v619
        %827 = vmatpush1.msra.mxu0 %v618
        %828 = vmatprep.subr.mxu0 %v622
        %829 = vmatpush1.msra.mxu0 %v621
        %830 = vmatprep.subr.mxu0 %v625
        %831 = vmatpush1.msra.mxu0 %v624
        %832 = vmatprep.subr.mxu0 %v628
        %833 = vmatpush1.msra.mxu0 %v627
        %834 = vmatprep.subr.mxu0 %v631
        %835 = vmatpush1.msra.mxu0 %v630
        %836 = vmatprep.subr.mxu0 %v634
        %837 = vmatpush1.msra.mxu0 %v633
        %838 = vmatprep.subr.mxu0 %v637
        %839 = vmatpush1.msra.mxu0 %v636
        %840 = vmatprep.subr.mxu0 %v640
        %841 = vmatpush1.msra.mxu0 %v639
        %842 = vmatprep.subr.mxu0 0.0
        %843 = vmatpush1.msra.mxu0 0.0
        %844 = vmatprep.subr.mxu0 0.0
        %845 = vmatpush1.msra.mxu0 0.0
        %846 = vmatprep.subr.mxu0 0.0
        %847 = vmatpush1.msra.mxu0 0.0
        %848 = vmatprep.subr.mxu0 0.0
        %849 = vmatpush1.msra.mxu0 0.0
        %850 = vmatprep.subr.mxu0 0.0
        %851 = vmatpush1.msra.mxu0 0.0
        %852 = vmatprep.subr.mxu0 0.0
        %853 = vmatpush1.msra.mxu0 0.0
        %854 = vmatprep.subr.mxu0 0.0
        %855 = vmatpush1.msra.mxu0 0.0
        %856 = vmatprep.subr.mxu0 0.0
        %857 = vmatpush1.msra.mxu0 0.0
        %858 = vmatprep.subr.mxu0 0.0
        %859 = vmatpush1.msra.mxu0 0.0
        %860 = vmatprep.subr.mxu0 0.0
        %861 = vmatpush1.msra.mxu0 0.0
        %862 = vmatprep.subr.mxu0 0.0
        %863 = vmatpush1.msra.mxu0 0.0
        %864 = vmatprep.subr.mxu0 0.0
        %865 = vmatpush1.msra.mxu0 0.0
        %866 = vmatprep.subr.mxu0 0.0
        %867 = vmatpush1.msra.mxu0 0.0
        %868 = vmatprep.subr.mxu0 0.0
        %869 = vmatpush1.msra.mxu0 0.0
        %870 = vmatprep.subr.mxu0 0.0
        %871 = vmatpush1.msra.mxu0 0.0
        %872 = vmatprep.subr.mxu0 0.0
        %873 = vmatpush1.msra.mxu0 0.0
        %874 = vmatprep.mubr.f32.mxu0 0.0
        %875 = vmatmul.mubr.f32.gmra.mrb[0].mxu0 %v584
        %v876 = vpop.f32.mrb[0].mxu0
        %v877 = vadd.f32 %v798, %v876
        %v878 = vpop.f32.mrb[0].mxu0
        %v879 = vadd.f32 %v802, %v878
        %880 = vmatprep.mubr.f32.mxu0 0.0
        %881 = vmatmul.mubr.f32.gmra.mrb[0].mxu0 %v585
        %v882 = vpop.f32.mrb[0].mxu0
        %v883 = vadd.f32 %v798, %v882
        %v884 = vpop.f32.mrb[0].mxu0
        %v885 = vadd.f32 %v802, %v884
        %886 = vdwg.mxu0
        %887 = vmatprep.subr.mxu0 0.0
        %888 = vmatpush1.msra.mxu0 %v596
        %889 = vmatprep.subr.mxu0 0.0
        %890 = vmatpush1.msra.mxu0 %v599
        %891 = vmatprep.subr.mxu0 0.0
        %892 = vmatpush1.msra.mxu0 %v602
        %893 = vmatprep.subr.mxu0 0.0
        %894 = vmatpush1.msra.mxu0 %v605
        %895 = vmatprep.subr.mxu0 0.0
        %896 = vmatpush1.msra.mxu0 %v608
        %897 = vmatprep.subr.mxu0 0.0
        %898 = vmatpush1.msra.mxu0 %v611
        %899 = vmatprep.subr.mxu0 0.0
        %900 = vmatpush1.msra.mxu0 %v614
        %901 = vmatprep.subr.mxu0 0.0
        %902 = vmatpush1.msra.mxu0 %v617
        %903 = vmatprep.subr.mxu0 0.0
        %904 = vmatpush1.msra.mxu0 %v620
        %905 = vmatprep.subr.mxu0 0.0
        %906 = vmatpush1.msra.mxu0 %v623
        %907 = vmatprep.subr.mxu0 0.0
        %908 = vmatpush1.msra.mxu0 %v626
        %909 = vmatprep.subr.mxu0 0.0
        %910 = vmatpush1.msra.mxu0 %v629
        %911 = vmatprep.subr.mxu0 0.0
        %912 = vmatpush1.msra.mxu0 %v632
        %913 = vmatprep.subr.mxu0 0.0
        %914 = vmatpush1.msra.mxu0 %v635
        %915 = vmatprep.subr.mxu0 0.0
        %916 = vmatpush1.msra.mxu0 %v638
        %917 = vmatprep.subr.mxu0 0.0
        %918 = vmatpush1.msra.mxu0 %v641
        %919 = vmatprep.subr.mxu0 0.0
        %920 = vmatpush1.msra.mxu0 0.0
        %921 = vmatprep.subr.mxu0 0.0
        %922 = vmatpush1.msra.mxu0 0.0
        %923 = vmatprep.subr.mxu0 0.0
        %924 = vmatpush1.msra.mxu0 0.0
        %925 = vmatprep.subr.mxu0 0.0
        %926 = vmatpush1.msra.mxu0 0.0
        %927 = vmatprep.subr.mxu0 0.0
        %928 = vmatpush1.msra.mxu0 0.0
        %929 = vmatprep.subr.mxu0 0.0
        %930 = vmatpush1.msra.mxu0 0.0
        %931 = vmatprep.subr.mxu0 0.0
        %932 = vmatpush1.msra.mxu0 0.0
        %933 = vmatprep.subr.mxu0 0.0
        %934 = vmatpush1.msra.mxu0 0.0
        %935 = vmatprep.subr.mxu0 0.0
        %936 = vmatpush1.msra.mxu0 0.0
        %937 = vmatprep.subr.mxu0 0.0
        %938 = vmatpush1.msra.mxu0 0.0
        %939 = vmatprep.subr.mxu0 0.0
        %940 = vmatpush1.msra.mxu0 0.0
        %941 = vmatprep.subr.mxu0 0.0
        %942 = vmatpush1.msra.mxu0 0.0
        %943 = vmatprep.subr.mxu0 0.0
        %944 = vmatpush1.msra.mxu0 0.0
        %945 = vmatprep.subr.mxu0 0.0
        %946 = vmatpush1.msra.mxu0 0.0
        %947 = vmatprep.subr.mxu0 0.0
        %948 = vmatpush1.msra.mxu0 0.0
        %949 = vmatprep.subr.mxu0 0.0
        %950 = vmatpush1.msra.mxu0 0.0
        %951 = vmatprep.mubr.f32.mxu0 0.0
        %952 = vmatmul.mubr.f32.gmra.mrb[0].mxu0 %v584
        %v953 = vpop.f32.mrb[0].mxu0
        %v954 = vadd.f32 %v806, %v953
        %v955 = vpop.f32.mrb[0].mxu0
        %956 = vmatprep.mubr.f32.mxu0 0.0
        %957 = vmatmul.mubr.f32.gmra.mrb[0].mxu0 %v585
        %v958 = vpop.f32.mrb[0].mxu0
        %v959 = vadd.f32 %v806, %v958
        %v960 = vpop.f32.mrb[0].mxu0
        %961 = vdwg.mxu0
        %964 = vrot.lane.b32.xlu0 %v877, 96
        %v965 = vpop.permute.xlu0 %964
        %966 = vrot.lane.b32.xlu0 %v883, 96
        %v967 = vpop.permute.xlu0 %966
        %968 = vrot.lane.b32.xlu0 %v877, 64
        %v969 = vpop.permute.xlu0 %968
        %970 = vrot.lane.b32.xlu0 %v883, 64
        %v971 = vpop.permute.xlu0 %970
        %972 = vrot.lane.b32.xlu0 %v877, 32
        %v973 = vpop.permute.xlu0 %972
        %974 = vrot.lane.b32.xlu0 %v883, 32
        %v975 = vpop.permute.xlu0 %974
        %978 = vrot.lane.b32.xlu0 %v879, 96
        %v979 = vpop.permute.xlu0 %978
        %980 = vrot.lane.b32.xlu0 %v885, 96
        %v981 = vpop.permute.xlu0 %980
        %982 = vrot.lane.b32.xlu0 %v879, 64
        %v983 = vpop.permute.xlu0 %982
        %984 = vrot.lane.b32.xlu0 %v885, 64
        %v985 = vpop.permute.xlu0 %984
        %986 = vrot.lane.b32.xlu0 %v879, 32
        %v987 = vpop.permute.xlu0 %986
        %988 = vrot.lane.b32.xlu0 %v885, 32
        %v989 = vpop.permute.xlu0 %988
        %992 = vrot.lane.b32.xlu0 %v954, 96
        %v993 = vpop.permute.xlu0 %992
        %994 = vrot.lane.b32.xlu0 %v959, 96
        %v995 = vpop.permute.xlu0 %994
        %998 = vrot.lane.b32.xlu0 %v954, 64
        %v999 = vpop.permute.xlu0 %998
        %1000 = vrot.lane.b32.xlu0 %v959, 64
        %v1001 = vpop.permute.xlu0 %1000
        %1004 = vrot.lane.b32.xlu0 %v954, 32
        %v1005 = vpop.permute.xlu0 %1004
        %1006 = vrot.lane.b32.xlu0 %v959, 32
        %v1007 = vpop.permute.xlu0 %1006
        %vm1010 = vcmask 261120
        %v1011 = vsel %vm1010, %v877, 0
        %v1013 = vsel %vm1010, %v883, 0
        %v1015 = vsel %vm1010, %v879, 0
        %v1017 = vsel %vm1010, %v885, 0
        %1019 = vmatprep.subr.mxu0 0.0
        %1020 = vmatpush1.xpose.msra.mxu0 %v1015
        %1021 = vmatprep.subr.mxu0 0.0
        %1022 = vmatpush1.xpose.msra.mxu0 %v1017
        %1023 = vmatprep.subr.mxu0 0.0
        %1024 = vmatpush1.xpose.msra.mxu0 0.0
        %1025 = vmatprep.subr.mxu0 0.0
        %1026 = vmatpush1.xpose.msra.mxu0 0.0
        %1027 = vmatprep.subr.mxu0 0.0
        %1028 = vmatpush1.xpose.msra.mxu0 0.0
        %1029 = vmatprep.subr.mxu0 0.0
        %1030 = vmatpush1.xpose.msra.mxu0 0.0
        %1031 = vmatprep.subr.mxu0 0.0
        %1032 = vmatpush1.xpose.msra.mxu0 0.0
        %1033 = vmatprep.subr.mxu0 0.0
        %1034 = vmatpush1.xpose.msra.mxu0 0.0
        %1035 = vmatprep.subr.mxu0 0.0
        %1036 = vmatpush1.xpose.msra.mxu0 0.0
        %1037 = vmatprep.subr.mxu0 0.0
        %1038 = vmatpush1.xpose.msra.mxu0 0.0
        %1039 = vmatprep.subr.mxu0 0.0
        %1040 = vmatpush1.xpose.msra.mxu0 0.0
        %1041 = vmatprep.subr.mxu0 0.0
        %1042 = vmatpush1.xpose.msra.mxu0 0.0
        %1043 = vmatprep.subr.mxu0 0.0
        %1044 = vmatpush1.xpose.msra.mxu0 0.0
        %1045 = vmatprep.subr.mxu0 0.0
        %1046 = vmatpush1.xpose.msra.mxu0 0.0
        %1047 = vmatprep.subr.mxu0 0.0
        %1048 = vmatpush1.xpose.msra.mxu0 0.0
        %1049 = vmatprep.subr.mxu0 0.0
        %1050 = vmatpush1.xpose.msra.mxu0 0.0
        %1051 = vmatprep.subr.mxu0 0.0
        %1052 = vmatpush1.xpose.msra.mxu0 0.0
        %1053 = vmatprep.subr.mxu0 0.0
        %1054 = vmatpush1.xpose.msra.mxu0 0.0
        %1055 = vmatprep.subr.mxu0 0.0
        %1056 = vmatpush1.xpose.msra.mxu0 0.0
        %1057 = vmatprep.subr.mxu0 0.0
        %1058 = vmatpush1.xpose.msra.mxu0 0.0
        %1059 = vmatprep.subr.mxu0 0.0
        %1060 = vmatpush1.xpose.msra.mxu0 0.0
        %1061 = vmatprep.subr.mxu0 0.0
        %1062 = vmatpush1.xpose.msra.mxu0 0.0
        %1063 = vmatprep.subr.mxu0 0.0
        %1064 = vmatpush1.xpose.msra.mxu0 0.0
        %1065 = vmatprep.subr.mxu0 0.0
        %1066 = vmatpush1.xpose.msra.mxu0 0.0
        %1067 = vmatprep.subr.mxu0 0.0
        %1068 = vmatpush1.xpose.msra.mxu0 0.0
        %1069 = vmatprep.subr.mxu0 0.0
        %1070 = vmatpush1.xpose.msra.mxu0 0.0
        %1071 = vmatprep.subr.mxu0 0.0
        %1072 = vmatpush1.xpose.msra.mxu0 0.0
        %1073 = vmatprep.subr.mxu0 0.0
        %1074 = vmatpush1.xpose.msra.mxu0 0.0
        %1075 = vmatprep.subr.mxu0 0.0
        %1076 = vmatpush1.xpose.msra.mxu0 0.0
        %1077 = vmatprep.subr.mxu0 0.0
        %1078 = vmatpush1.xpose.msra.mxu0 0.0
        %1079 = vmatprep.subr.mxu0 0.0
        %1080 = vmatpush1.xpose.msra.mxu0 0.0
        %1081 = vmatprep.subr.mxu0 0.0
        %1082 = vmatpush1.xpose.msra.mxu0 0.0
        %1083 = vmatprep.mubr.f32.mxu0 0.0
        %1084 = vmatmul.mubr.f32.gmra.mrb[0].mxu0 %v1011
        %v1085 = vpop.f32.mrb[0].mxu0
        %v1086 = vadd.f32 %v586, %v1085
        %v1087 = vpop.f32.mrb[0].mxu0
        %1088 = vmatprep.mubr.f32.mxu0 0.0
        %1089 = vmatmul.mubr.f32.gmra.mrb[0].mxu0 %v1013
        %v1090 = vpop.f32.mrb[0].mxu0
        %v1091 = vadd.f32 %v587, %v1090
        %v1092 = vpop.f32.mrb[0].mxu0
        %1093 = vdwg.mxu0
        %v1094 = vsel %vm1010, %v965, 0
        %v1096 = vsel %vm1010, %v967, 0
        %v1098 = vsel %vm1010, %v979, 0
        %v1100 = vsel %vm1010, %v981, 0
        %1102 = vmatprep.subr.mxu0 0.0
        %1103 = vmatpush1.xpose.msra.mxu0 %v1098
        %1104 = vmatprep.subr.mxu0 0.0
        %1105 = vmatpush1.xpose.msra.mxu0 %v1100
        %1106 = vmatprep.subr.mxu0 0.0
        %1107 = vmatpush1.xpose.msra.mxu0 0.0
        %1108 = vmatprep.subr.mxu0 0.0
        %1109 = vmatpush1.xpose.msra.mxu0 0.0
        %1110 = vmatprep.subr.mxu0 0.0
        %1111 = vmatpush1.xpose.msra.mxu0 0.0
        %1112 = vmatprep.subr.mxu0 0.0
        %1113 = vmatpush1.xpose.msra.mxu0 0.0
        %1114 = vmatprep.subr.mxu0 0.0
        %1115 = vmatpush1.xpose.msra.mxu0 0.0
        %1116 = vmatprep.subr.mxu0 0.0
        %1117 = vmatpush1.xpose.msra.mxu0 0.0
        %1118 = vmatprep.subr.mxu0 0.0
        %1119 = vmatpush1.xpose.msra.mxu0 0.0
        %1120 = vmatprep.subr.mxu0 0.0
        %1121 = vmatpush1.xpose.msra.mxu0 0.0
        %1122 = vmatprep.subr.mxu0 0.0
        %1123 = vmatpush1.xpose.msra.mxu0 0.0
        %1124 = vmatprep.subr.mxu0 0.0
        %1125 = vmatpush1.xpose.msra.mxu0 0.0
        %1126 = vmatprep.subr.mxu0 0.0
        %1127 = vmatpush1.xpose.msra.mxu0 0.0
        %1128 = vmatprep.subr.mxu0 0.0
        %1129 = vmatpush1.xpose.msra.mxu0 0.0
        %1130 = vmatprep.subr.mxu0 0.0
        %1131 = vmatpush1.xpose.msra.mxu0 0.0
        %1132 = vmatprep.subr.mxu0 0.0
        %1133 = vmatpush1.xpose.msra.mxu0 0.0
        %1134 = vmatprep.subr.mxu0 0.0
        %1135 = vmatpush1.xpose.msra.mxu0 0.0
        %1136 = vmatprep.subr.mxu0 0.0
        %1137 = vmatpush1.xpose.msra.mxu0 0.0
        %1138 = vmatprep.subr.mxu0 0.0
        %1139 = vmatpush1.xpose.msra.mxu0 0.0
        %1140 = vmatprep.subr.mxu0 0.0
        %1141 = vmatpush1.xpose.msra.mxu0 0.0
        %1142 = vmatprep.subr.mxu0 0.0
        %1143 = vmatpush1.xpose.msra.mxu0 0.0
        %1144 = vmatprep.subr.mxu0 0.0
        %1145 = vmatpush1.xpose.msra.mxu0 0.0
        %1146 = vmatprep.subr.mxu0 0.0
        %1147 = vmatpush1.xpose.msra.mxu0 0.0
        %1148 = vmatprep.subr.mxu0 0.0
        %1149 = vmatpush1.xpose.msra.mxu0 0.0
        %1150 = vmatprep.subr.mxu0 0.0
        %1151 = vmatpush1.xpose.msra.mxu0 0.0
        %1152 = vmatprep.subr.mxu0 0.0
        %1153 = vmatpush1.xpose.msra.mxu0 0.0
        %1154 = vmatprep.subr.mxu0 0.0
        %1155 = vmatpush1.xpose.msra.mxu0 0.0
        %1156 = vmatprep.subr.mxu0 0.0
        %1157 = vmatpush1.xpose.msra.mxu0 0.0
        %1158 = vmatprep.subr.mxu0 0.0
        %1159 = vmatpush1.xpose.msra.mxu0 0.0
        %1160 = vmatprep.subr.mxu0 0.0
        %1161 = vmatpush1.xpose.msra.mxu0 0.0
        %1162 = vmatprep.subr.mxu0 0.0
        %1163 = vmatpush1.xpose.msra.mxu0 0.0
        %1164 = vmatprep.subr.mxu0 0.0
        %1165 = vmatpush1.xpose.msra.mxu0 0.0
        %1166 = vmatprep.mubr.f32.mxu0 0.0
        %1167 = vmatmul.mubr.f32.gmra.mrb[0].mxu0 %v1094
        %v1168 = vpop.f32.mrb[0].mxu0
        %v1169 = vadd.f32 %v588, %v1168
        %v1170 = vpop.f32.mrb[0].mxu0
        %1171 = vmatprep.mubr.f32.mxu0 0.0
        %1172 = vmatmul.mubr.f32.gmra.mrb[0].mxu0 %v1096
        %v1173 = vpop.f32.mrb[0].mxu0
        %v1174 = vadd.f32 %v589, %v1173
        %v1175 = vpop.f32.mrb[0].mxu0
        %1176 = vdwg.mxu0
        %v1177 = vsel %vm1010, %v969, 0
        %v1179 = vsel %vm1010, %v971, 0
        %v1181 = vsel %vm1010, %v983, 0
        %v1183 = vsel %vm1010, %v985, 0
        %1185 = vmatprep.subr.mxu0 0.0
        %1186 = vmatpush1.xpose.msra.mxu0 %v1181
        %1187 = vmatprep.subr.mxu0 0.0
        %1188 = vmatpush1.xpose.msra.mxu0 %v1183
        %1189 = vmatprep.subr.mxu0 0.0
        %1190 = vmatpush1.xpose.msra.mxu0 0.0
        %1191 = vmatprep.subr.mxu0 0.0
        %1192 = vmatpush1.xpose.msra.mxu0 0.0
        %1193 = vmatprep.subr.mxu0 0.0
        %1194 = vmatpush1.xpose.msra.mxu0 0.0
        %1195 = vmatprep.subr.mxu0 0.0
        %1196 = vmatpush1.xpose.msra.mxu0 0.0
        %1197 = vmatprep.subr.mxu0 0.0
        %1198 = vmatpush1.xpose.msra.mxu0 0.0
        %1199 = vmatprep.subr.mxu0 0.0
        %1200 = vmatpush1.xpose.msra.mxu0 0.0
        %1201 = vmatprep.subr.mxu0 0.0
        %1202 = vmatpush1.xpose.msra.mxu0 0.0
        %1203 = vmatprep.subr.mxu0 0.0
        %1204 = vmatpush1.xpose.msra.mxu0 0.0
        %1205 = vmatprep.subr.mxu0 0.0
        %1206 = vmatpush1.xpose.msra.mxu0 0.0
        %1207 = vmatprep.subr.mxu0 0.0
        %1208 = vmatpush1.xpose.msra.mxu0 0.0
        %1209 = vmatprep.subr.mxu0 0.0
        %1210 = vmatpush1.xpose.msra.mxu0 0.0
        %1211 = vmatprep.subr.mxu0 0.0
        %1212 = vmatpush1.xpose.msra.mxu0 0.0
        %1213 = vmatprep.subr.mxu0 0.0
        %1214 = vmatpush1.xpose.msra.mxu0 0.0
        %1215 = vmatprep.subr.mxu0 0.0
        %1216 = vmatpush1.xpose.msra.mxu0 0.0
        %1217 = vmatprep.subr.mxu0 0.0
        %1218 = vmatpush1.xpose.msra.mxu0 0.0
        %1219 = vmatprep.subr.mxu0 0.0
        %1220 = vmatpush1.xpose.msra.mxu0 0.0
        %1221 = vmatprep.subr.mxu0 0.0
        %1222 = vmatpush1.xpose.msra.mxu0 0.0
        %1223 = vmatprep.subr.mxu0 0.0
        %1224 = vmatpush1.xpose.msra.mxu0 0.0
        %1225 = vmatprep.subr.mxu0 0.0
        %1226 = vmatpush1.xpose.msra.mxu0 0.0
        %1227 = vmatprep.subr.mxu0 0.0
        %1228 = vmatpush1.xpose.msra.mxu0 0.0
        %1229 = vmatprep.subr.mxu0 0.0
        %1230 = vmatpush1.xpose.msra.mxu0 0.0
        %1231 = vmatprep.subr.mxu0 0.0
        %1232 = vmatpush1.xpose.msra.mxu0 0.0
        %1233 = vmatprep.subr.mxu0 0.0
        %1234 = vmatpush1.xpose.msra.mxu0 0.0
        %1235 = vmatprep.subr.mxu0 0.0
        %1236 = vmatpush1.xpose.msra.mxu0 0.0
        %1237 = vmatprep.subr.mxu0 0.0
        %1238 = vmatpush1.xpose.msra.mxu0 0.0
        %1239 = vmatprep.subr.mxu0 0.0
        %1240 = vmatpush1.xpose.msra.mxu0 0.0
        %1241 = vmatprep.subr.mxu0 0.0
        %1242 = vmatpush1.xpose.msra.mxu0 0.0
        %1243 = vmatprep.subr.mxu0 0.0
        %1244 = vmatpush1.xpose.msra.mxu0 0.0
        %1245 = vmatprep.subr.mxu0 0.0
        %1246 = vmatpush1.xpose.msra.mxu0 0.0
        %1247 = vmatprep.subr.mxu0 0.0
        %1248 = vmatpush1.xpose.msra.mxu0 0.0
        %1249 = vmatprep.mubr.f32.mxu0 0.0
        %1250 = vmatmul.mubr.f32.gmra.mrb[0].mxu0 %v1177
        %v1251 = vpop.f32.mrb[0].mxu0
        %v1252 = vadd.f32 %v590, %v1251
        %v1253 = vpop.f32.mrb[0].mxu0
        %1254 = vmatprep.mubr.f32.mxu0 0.0
        %1255 = vmatmul.mubr.f32.gmra.mrb[0].mxu0 %v1179
        %v1256 = vpop.f32.mrb[0].mxu0
        %v1257 = vadd.f32 %v591, %v1256
        %v1258 = vpop.f32.mrb[0].mxu0
        %1259 = vdwg.mxu0
        %v1260 = vsel %vm1010, %v973, 0
        %v1262 = vsel %vm1010, %v975, 0
        %v1264 = vsel %vm1010, %v987, 0
        %v1266 = vsel %vm1010, %v989, 0
        %1268 = vmatprep.subr.mxu0 0.0
        %1269 = vmatpush1.xpose.msra.mxu0 %v1264
        %1270 = vmatprep.subr.mxu0 0.0
        %1271 = vmatpush1.xpose.msra.mxu0 %v1266
        %1272 = vmatprep.subr.mxu0 0.0
        %1273 = vmatpush1.xpose.msra.mxu0 0.0
        %1274 = vmatprep.subr.mxu0 0.0
        %1275 = vmatpush1.xpose.msra.mxu0 0.0
        %1276 = vmatprep.subr.mxu0 0.0
        %1277 = vmatpush1.xpose.msra.mxu0 0.0
        %1278 = vmatprep.subr.mxu0 0.0
        %1279 = vmatpush1.xpose.msra.mxu0 0.0
        %1280 = vmatprep.subr.mxu0 0.0
        %1281 = vmatpush1.xpose.msra.mxu0 0.0
        %1282 = vmatprep.subr.mxu0 0.0
        %1283 = vmatpush1.xpose.msra.mxu0 0.0
        %1284 = vmatprep.subr.mxu0 0.0
        %1285 = vmatpush1.xpose.msra.mxu0 0.0
        %1286 = vmatprep.subr.mxu0 0.0
        %1287 = vmatpush1.xpose.msra.mxu0 0.0
        %1288 = vmatprep.subr.mxu0 0.0
        %1289 = vmatpush1.xpose.msra.mxu0 0.0
        %1290 = vmatprep.subr.mxu0 0.0
        %1291 = vmatpush1.xpose.msra.mxu0 0.0
        %1292 = vmatprep.subr.mxu0 0.0
        %1293 = vmatpush1.xpose.msra.mxu0 0.0
        %1294 = vmatprep.subr.mxu0 0.0
        %1295 = vmatpush1.xpose.msra.mxu0 0.0
        %1296 = vmatprep.subr.mxu0 0.0
        %1297 = vmatpush1.xpose.msra.mxu0 0.0
        %1298 = vmatprep.subr.mxu0 0.0
        %1299 = vmatpush1.xpose.msra.mxu0 0.0
        %1300 = vmatprep.subr.mxu0 0.0
        %1301 = vmatpush1.xpose.msra.mxu0 0.0
        %1302 = vmatprep.subr.mxu0 0.0
        %1303 = vmatpush1.xpose.msra.mxu0 0.0
        %1304 = vmatprep.subr.mxu0 0.0
        %1305 = vmatpush1.xpose.msra.mxu0 0.0
        %1306 = vmatprep.subr.mxu0 0.0
        %1307 = vmatpush1.xpose.msra.mxu0 0.0
        %1308 = vmatprep.subr.mxu0 0.0
        %1309 = vmatpush1.xpose.msra.mxu0 0.0
        %1310 = vmatprep.subr.mxu0 0.0
        %1311 = vmatpush1.xpose.msra.mxu0 0.0
        %1312 = vmatprep.subr.mxu0 0.0
        %1313 = vmatpush1.xpose.msra.mxu0 0.0
        %1314 = vmatprep.subr.mxu0 0.0
        %1315 = vmatpush1.xpose.msra.mxu0 0.0
        %1316 = vmatprep.subr.mxu0 0.0
        %1317 = vmatpush1.xpose.msra.mxu0 0.0
        %1318 = vmatprep.subr.mxu0 0.0
        %1319 = vmatpush1.xpose.msra.mxu0 0.0
        %1320 = vmatprep.subr.mxu0 0.0
        %1321 = vmatpush1.xpose.msra.mxu0 0.0
        %1322 = vmatprep.subr.mxu0 0.0
        %1323 = vmatpush1.xpose.msra.mxu0 0.0
        %1324 = vmatprep.subr.mxu0 0.0
        %1325 = vmatpush1.xpose.msra.mxu0 0.0
        %1326 = vmatprep.subr.mxu0 0.0
        %1327 = vmatpush1.xpose.msra.mxu0 0.0
        %1328 = vmatprep.subr.mxu0 0.0
        %1329 = vmatpush1.xpose.msra.mxu0 0.0
        %1330 = vmatprep.subr.mxu0 0.0
        %1331 = vmatpush1.xpose.msra.mxu0 0.0
        %1332 = vmatprep.mubr.f32.mxu0 0.0
        %1333 = vmatmul.mubr.f32.gmra.mrb[0].mxu0 %v1260
        %v1334 = vpop.f32.mrb[0].mxu0
        %v1335 = vadd.f32 %v592, %v1334
        %v1336 = vpop.f32.mrb[0].mxu0
        %1337 = vmatprep.mubr.f32.mxu0 0.0
        %1338 = vmatmul.mubr.f32.gmra.mrb[0].mxu0 %v1262
        %v1339 = vpop.f32.mrb[0].mxu0
        %v1340 = vadd.f32 %v593, %v1339
        %v1341 = vpop.f32.mrb[0].mxu0
        %1342 = vdwg.mxu0
        %vm1343 = vcmask 130048
        %v1344 = vsel %vm1343, %v1086, -inf
        %1345 = vmax.xlane.f32.xlu0 %v1344
        %v1346 = vpop.xlane.xlu0 %1345
        %v1347 = vsel %vm1343, %v1091, -inf
        %1348 = vmax.xlane.f32.xlu0 %v1347
        %v1349 = vpop.xlane.xlu0 %1348
        %v1350 = vsel %vm1343, %v1169, -inf
        %1351 = vmax.xlane.f32.xlu0 %v1350
        %v1352 = vpop.xlane.xlu0 %1351
        %v1353 = vsel %vm1343, %v1174, -inf
        %1354 = vmax.xlane.f32.xlu0 %v1353
        %v1355 = vpop.xlane.xlu0 %1354
        %v1356 = vsel %vm1343, %v1252, -inf
        %1357 = vmax.xlane.f32.xlu0 %v1356
        %v1358 = vpop.xlane.xlu0 %1357
        %v1359 = vsel %vm1343, %v1257, -inf
        %1360 = vmax.xlane.f32.xlu0 %v1359
        %v1361 = vpop.xlane.xlu0 %1360
        %v1362 = vsel %vm1343, %v1335, -inf
        %1363 = vmax.xlane.f32.xlu0 %v1362
        %v1364 = vpop.xlane.xlu0 %1363
        %v1365 = vsel %vm1343, %v1340, -inf
        %1366 = vmax.xlane.f32.xlu0 %v1365
        %v1367 = vpop.xlane.xlu0 %1366
        %v1368 = vsub.f32 %v1086, %v1346
        %v1369 = vsub.f32 %v1091, %v1349
        %v1370 = vsub.f32 %v1169, %v1352
        %v1371 = vsub.f32 %v1174, %v1355
        %v1372 = vsub.f32 %v1252, %v1358
        %v1373 = vsub.f32 %v1257, %v1361
        %v1374 = vsub.f32 %v1335, %v1364
        %v1375 = vsub.f32 %v1340, %v1367
        %v1376 = vmul.f32 %v1368, 1.442695
        %v1377 = vpow.pop %v1376
        %v1378 = vmul.f32 %v1369, 1.442695
        %v1379 = vpow.pop %v1378
        %v1380 = vmul.f32 %v1370, 1.442695
        %v1381 = vpow.pop %v1380
        %v1382 = vmul.f32 %v1371, 1.442695
        %v1383 = vpow.pop %v1382
        %v1384 = vmul.f32 %v1372, 1.442695
        %v1385 = vpow.pop %v1384
        %v1386 = vmul.f32 %v1373, 1.442695
        %v1387 = vpow.pop %v1386
        %v1388 = vmul.f32 %v1374, 1.442695
        %v1389 = vpow.pop %v1388
        %v1390 = vmul.f32 %v1375, 1.442695
        %v1391 = vpow.pop %v1390
        %v1392 = vsel %vm1343, %v1377, 0.0
        %1393 = vadd.xlane.f32.xlu0 %v1392
        %v1394 = vpop.xlane.xlu0 %1393
        %v1395 = vsel %vm1343, %v1379, 0.0
        %1396 = vadd.xlane.f32.xlu0 %v1395
        %v1397 = vpop.xlane.xlu0 %1396
        %v1398 = vsel %vm1343, %v1381, 0.0
        %1399 = vadd.xlane.f32.xlu0 %v1398
        %v1400 = vpop.xlane.xlu0 %1399
        %v1401 = vsel %vm1343, %v1383, 0.0
        %1402 = vadd.xlane.f32.xlu0 %v1401
        %v1403 = vpop.xlane.xlu0 %1402
        %v1404 = vsel %vm1343, %v1385, 0.0
        %1405 = vadd.xlane.f32.xlu0 %v1404
        %v1406 = vpop.xlane.xlu0 %1405
        %v1407 = vsel %vm1343, %v1387, 0.0
        %1408 = vadd.xlane.f32.xlu0 %v1407
        %v1409 = vpop.xlane.xlu0 %1408
        %v1410 = vsel %vm1343, %v1389, 0.0
        %1411 = vadd.xlane.f32.xlu0 %v1410
        %v1412 = vpop.xlane.xlu0 %1411
        %v1413 = vsel %vm1343, %v1391, 0.0
        %1414 = vadd.xlane.f32.xlu0 %v1413
        %v1415 = vpop.xlane.xlu0 %1414
        %v1416 = vrcp.pop %v1394
        %v1417 = vmul.f32 %v1377, %v1416
        %v1418 = vrcp.pop %v1397
        %v1419 = vmul.f32 %v1379, %v1418
        %v1420 = vrcp.pop %v1400
        %v1421 = vmul.f32 %v1381, %v1420
        %v1422 = vrcp.pop %v1403
        %v1423 = vmul.f32 %v1383, %v1422
        %v1424 = vrcp.pop %v1406
        %v1425 = vmul.f32 %v1385, %v1424
        %v1426 = vrcp.pop %v1409
        %v1427 = vmul.f32 %v1387, %v1426
        %v1428 = vrcp.pop %v1412
        %v1429 = vmul.f32 %v1389, %v1428
        %v1430 = vrcp.pop %v1415
        %v1431 = vmul.f32 %v1391, %v1430
        %v1433 = vsel %vm1343, %v1417, 0
        %v1436 = vsel %vm1343, %v1419, 0
        %1438 = vmatprep.subr.mxu0 0.0
        %1439 = vmatpush1.msra.mxu0 %v954
        %1440 = vmatprep.subr.mxu0 0.0
        %1441 = vmatpush1.msra.mxu0 %v959
        %1442 = vmatprep.subr.mxu0 0.0
        %1443 = vmatpush1.msra.mxu0 0.0
        %1444 = vmatprep.subr.mxu0 0.0
        %1445 = vmatpush1.msra.mxu0 0.0
        %1446 = vmatprep.subr.mxu0 0.0
        %1447 = vmatpush1.msra.mxu0 0.0
        %1448 = vmatprep.subr.mxu0 0.0
        %1449 = vmatpush1.msra.mxu0 0.0
        %1450 = vmatprep.subr.mxu0 0.0
        %1451 = vmatpush1.msra.mxu0 0.0
        %1452 = vmatprep.subr.mxu0 0.0
        %1453 = vmatpush1.msra.mxu0 0.0
        %1454 = vmatprep.subr.mxu0 0.0
        %1455 = vmatpush1.msra.mxu0 0.0
        %1456 = vmatprep.subr.mxu0 0.0
        %1457 = vmatpush1.msra.mxu0 0.0
        %1458 = vmatprep.subr.mxu0 0.0
        %1459 = vmatpush1.msra.mxu0 0.0
        %1460 = vmatprep.subr.mxu0 0.0
        %1461 = vmatpush1.msra.mxu0 0.0
        %1462 = vmatprep.subr.mxu0 0.0
        %1463 = vmatpush1.msra.mxu0 0.0
        %1464 = vmatprep.subr.mxu0 0.0
        %1465 = vmatpush1.msra.mxu0 0.0
        %1466 = vmatprep.subr.mxu0 0.0
        %1467 = vmatpush1.msra.mxu0 0.0
        %1468 = vmatprep.subr.mxu0 0.0
        %1469 = vmatpush1.msra.mxu0 0.0
        %1470 = vmatprep.subr.mxu0 0.0
        %1471 = vmatpush1.msra.mxu0 0.0
        %1472 = vmatprep.subr.mxu0 0.0
        %1473 = vmatpush1.msra.mxu0 0.0
        %1474 = vmatprep.subr.mxu0 0.0
        %1475 = vmatpush1.msra.mxu0 0.0
        %1476 = vmatprep.subr.mxu0 0.0
        %1477 = vmatpush1.msra.mxu0 0.0
        %1478 = vmatprep.subr.mxu0 0.0
        %1479 = vmatpush1.msra.mxu0 0.0
        %1480 = vmatprep.subr.mxu0 0.0
        %1481 = vmatpush1.msra.mxu0 0.0
        %1482 = vmatprep.subr.mxu0 0.0
        %1483 = vmatpush1.msra.mxu0 0.0
        %1484 = vmatprep.subr.mxu0 0.0
        %1485 = vmatpush1.msra.mxu0 0.0
        %1486 = vmatprep.subr.mxu0 0.0
        %1487 = vmatpush1.msra.mxu0 0.0
        %1488 = vmatprep.subr.mxu0 0.0
        %1489 = vmatpush1.msra.mxu0 0.0
        %1490 = vmatprep.subr.mxu0 0.0
        %1491 = vmatpush1.msra.mxu0 0.0
        %1492 = vmatprep.subr.mxu0 0.0
        %1493 = vmatpush1.msra.mxu0 0.0
        %1494 = vmatprep.subr.mxu0 0.0
        %1495 = vmatpush1.msra.mxu0 0.0
        %1496 = vmatprep.subr.mxu0 0.0
        %1497 = vmatpush1.msra.mxu0 0.0
        %1498 = vmatprep.subr.mxu0 0.0
        %1499 = vmatpush1.msra.mxu0 0.0
        %1500 = vmatprep.subr.mxu0 0.0
        %1501 = vmatpush1.msra.mxu0 0.0
        %1502 = vmatprep.mubr.f32.mxu0 0.0
        %1503 = vmatmul.mubr.f32.gmra.mrb[0].mxu0 %v1433
        %v1504 = vpop.f32.mrb[0].mxu0
        %v1505 = vadd.f32 0.0, %v1504
        %v1506 = vpop.f32.mrb[0].mxu0
        %1507 = vmatprep.mubr.f32.mxu0 0.0
        %1508 = vmatmul.mubr.f32.gmra.mrb[0].mxu0 %v1436
        %v1509 = vpop.f32.mrb[0].mxu0
        %v1510 = vadd.f32 0.0, %v1509
        %v1511 = vpop.f32.mrb[0].mxu0
        %1512 = vdwg.mxu0
        %v1514 = vsel %vm1343, %v1421, 0
        %v1517 = vsel %vm1343, %v1423, 0
        %1519 = vmatprep.subr.mxu0 0.0
        %1520 = vmatpush1.msra.mxu0 %v993
        %1521 = vmatprep.subr.mxu0 0.0
        %1522 = vmatpush1.msra.mxu0 %v995
        %1523 = vmatprep.subr.mxu0 0.0
        %1524 = vmatpush1.msra.mxu0 0.0
        %1525 = vmatprep.subr.mxu0 0.0
        %1526 = vmatpush1.msra.mxu0 0.0
        %1527 = vmatprep.subr.mxu0 0.0
        %1528 = vmatpush1.msra.mxu0 0.0
        %1529 = vmatprep.subr.mxu0 0.0
        %1530 = vmatpush1.msra.mxu0 0.0
        %1531 = vmatprep.subr.mxu0 0.0
        %1532 = vmatpush1.msra.mxu0 0.0
        %1533 = vmatprep.subr.mxu0 0.0
        %1534 = vmatpush1.msra.mxu0 0.0
        %1535 = vmatprep.subr.mxu0 0.0
        %1536 = vmatpush1.msra.mxu0 0.0
        %1537 = vmatprep.subr.mxu0 0.0
        %1538 = vmatpush1.msra.mxu0 0.0
        %1539 = vmatprep.subr.mxu0 0.0
        %1540 = vmatpush1.msra.mxu0 0.0
        %1541 = vmatprep.subr.mxu0 0.0
        %1542 = vmatpush1.msra.mxu0 0.0
        %1543 = vmatprep.subr.mxu0 0.0
        %1544 = vmatpush1.msra.mxu0 0.0
        %1545 = vmatprep.subr.mxu0 0.0
        %1546 = vmatpush1.msra.mxu0 0.0
        %1547 = vmatprep.subr.mxu0 0.0
        %1548 = vmatpush1.msra.mxu0 0.0
        %1549 = vmatprep.subr.mxu0 0.0
        %1550 = vmatpush1.msra.mxu0 0.0
        %1551 = vmatprep.subr.mxu0 0.0
        %1552 = vmatpush1.msra.mxu0 0.0
        %1553 = vmatprep.subr.mxu0 0.0
        %1554 = vmatpush1.msra.mxu0 0.0
        %1555 = vmatprep.subr.mxu0 0.0
        %1556 = vmatpush1.msra.mxu0 0.0
        %1557 = vmatprep.subr.mxu0 0.0
        %1558 = vmatpush1.msra.mxu0 0.0
        %1559 = vmatprep.subr.mxu0 0.0
        %1560 = vmatpush1.msra.mxu0 0.0
        %1561 = vmatprep.subr.mxu0 0.0
        %1562 = vmatpush1.msra.mxu0 0.0
        %1563 = vmatprep.subr.mxu0 0.0
        %1564 = vmatpush1.msra.mxu0 0.0
        %1565 = vmatprep.subr.mxu0 0.0
        %1566 = vmatpush1.msra.mxu0 0.0
        %1567 = vmatprep.subr.mxu0 0.0
        %1568 = vmatpush1.msra.mxu0 0.0
        %1569 = vmatprep.subr.mxu0 0.0
        %1570 = vmatpush1.msra.mxu0 0.0
        %1571 = vmatprep.subr.mxu0 0.0
        %1572 = vmatpush1.msra.mxu0 0.0
        %1573 = vmatprep.subr.mxu0 0.0
        %1574 = vmatpush1.msra.mxu0 0.0
        %1575 = vmatprep.subr.mxu0 0.0
        %1576 = vmatpush1.msra.mxu0 0.0
        %1577 = vmatprep.subr.mxu0 0.0
        %1578 = vmatpush1.msra.mxu0 0.0
        %1579 = vmatprep.subr.mxu0 0.0
        %1580 = vmatpush1.msra.mxu0 0.0
        %1581 = vmatprep.subr.mxu0 0.0
        %1582 = vmatpush1.msra.mxu0 0.0
        %1583 = vmatprep.mubr.f32.mxu0 0.0
        %1584 = vmatmul.mubr.f32.gmra.mrb[0].mxu0 %v1514
        %v1585 = vpop.f32.mrb[0].mxu0
        %v1586 = vadd.f32 0.0, %v1585
        %v1587 = vpop.f32.mrb[0].mxu0
        %1588 = vmatprep.mubr.f32.mxu0 0.0
        %1589 = vmatmul.mubr.f32.gmra.mrb[0].mxu0 %v1517
        %v1590 = vpop.f32.mrb[0].mxu0
        %v1591 = vadd.f32 0.0, %v1590
        %v1592 = vpop.f32.mrb[0].mxu0
        %1593 = vdwg.mxu0
        %v1595 = vsel %vm1343, %v1425, 0
        %v1598 = vsel %vm1343, %v1427, 0
        %1600 = vmatprep.subr.mxu0 0.0
        %1601 = vmatpush1.msra.mxu0 %v999
        %1602 = vmatprep.subr.mxu0 0.0
        %1603 = vmatpush1.msra.mxu0 %v1001
        %1604 = vmatprep.subr.mxu0 0.0
        %1605 = vmatpush1.msra.mxu0 0.0
        %1606 = vmatprep.subr.mxu0 0.0
        %1607 = vmatpush1.msra.mxu0 0.0
        %1608 = vmatprep.subr.mxu0 0.0
        %1609 = vmatpush1.msra.mxu0 0.0
        %1610 = vmatprep.subr.mxu0 0.0
        %1611 = vmatpush1.msra.mxu0 0.0
        %1612 = vmatprep.subr.mxu0 0.0
        %1613 = vmatpush1.msra.mxu0 0.0
        %1614 = vmatprep.subr.mxu0 0.0
        %1615 = vmatpush1.msra.mxu0 0.0
        %1616 = vmatprep.subr.mxu0 0.0
        %1617 = vmatpush1.msra.mxu0 0.0
        %1618 = vmatprep.subr.mxu0 0.0
        %1619 = vmatpush1.msra.mxu0 0.0
        %1620 = vmatprep.subr.mxu0 0.0
        %1621 = vmatpush1.msra.mxu0 0.0
        %1622 = vmatprep.subr.mxu0 0.0
        %1623 = vmatpush1.msra.mxu0 0.0
        %1624 = vmatprep.subr.mxu0 0.0
        %1625 = vmatpush1.msra.mxu0 0.0
        %1626 = vmatprep.subr.mxu0 0.0
        %1627 = vmatpush1.msra.mxu0 0.0
        %1628 = vmatprep.subr.mxu0 0.0
        %1629 = vmatpush1.msra.mxu0 0.0
        %1630 = vmatprep.subr.mxu0 0.0
        %1631 = vmatpush1.msra.mxu0 0.0
        %1632 = vmatprep.subr.mxu0 0.0
        %1633 = vmatpush1.msra.mxu0 0.0
        %1634 = vmatprep.subr.mxu0 0.0
        %1635 = vmatpush1.msra.mxu0 0.0
        %1636 = vmatprep.subr.mxu0 0.0
        %1637 = vmatpush1.msra.mxu0 0.0
        %1638 = vmatprep.subr.mxu0 0.0
        %1639 = vmatpush1.msra.mxu0 0.0
        %1640 = vmatprep.subr.mxu0 0.0
        %1641 = vmatpush1.msra.mxu0 0.0
        %1642 = vmatprep.subr.mxu0 0.0
        %1643 = vmatpush1.msra.mxu0 0.0
        %1644 = vmatprep.subr.mxu0 0.0
        %1645 = vmatpush1.msra.mxu0 0.0
        %1646 = vmatprep.subr.mxu0 0.0
        %1647 = vmatpush1.msra.mxu0 0.0
        %1648 = vmatprep.subr.mxu0 0.0
        %1649 = vmatpush1.msra.mxu0 0.0
        %1650 = vmatprep.subr.mxu0 0.0
        %1651 = vmatpush1.msra.mxu0 0.0
        %1652 = vmatprep.subr.mxu0 0.0
        %1653 = vmatpush1.msra.mxu0 0.0
        %1654 = vmatprep.subr.mxu0 0.0
        %1655 = vmatpush1.msra.mxu0 0.0
        %1656 = vmatprep.subr.mxu0 0.0
        %1657 = vmatpush1.msra.mxu0 0.0
        %1658 = vmatprep.subr.mxu0 0.0
        %1659 = vmatpush1.msra.mxu0 0.0
        %1660 = vmatprep.subr.mxu0 0.0
        %1661 = vmatpush1.msra.mxu0 0.0
        %1662 = vmatprep.subr.mxu0 0.0
        %1663 = vmatpush1.msra.mxu0 0.0
        %1664 = vmatprep.mubr.f32.mxu0 0.0
        %1665 = vmatmul.mubr.f32.gmra.mrb[0].mxu0 %v1595
        %v1666 = vpop.f32.mrb[0].mxu0
        %v1667 = vadd.f32 0.0, %v1666
        %v1668 = vpop.f32.mrb[0].mxu0
        %1669 = vmatprep.mubr.f32.mxu0 0.0
        %1670 = vmatmul.mubr.f32.gmra.mrb[0].mxu0 %v1598
        %v1671 = vpop.f32.mrb[0].mxu0
        %v1672 = vadd.f32 0.0, %v1671
        %v1673 = vpop.f32.mrb[0].mxu0
        %1674 = vdwg.mxu0
        %v1676 = vsel %vm1343, %v1429, 0
        %v1679 = vsel %vm1343, %v1431, 0
        %1681 = vmatprep.subr.mxu0 0.0
        %1682 = vmatpush1.msra.mxu0 %v1005
        %1683 = vmatprep.subr.mxu0 0.0
        %1684 = vmatpush1.msra.mxu0 %v1007
        %1685 = vmatprep.subr.mxu0 0.0
        %1686 = vmatpush1.msra.mxu0 0.0
        %1687 = vmatprep.subr.mxu0 0.0
        %1688 = vmatpush1.msra.mxu0 0.0
        %1689 = vmatprep.subr.mxu0 0.0
        %1690 = vmatpush1.msra.mxu0 0.0
        %1691 = vmatprep.subr.mxu0 0.0
        %1692 = vmatpush1.msra.mxu0 0.0
        %1693 = vmatprep.subr.mxu0 0.0
        %1694 = vmatpush1.msra.mxu0 0.0
        %1695 = vmatprep.subr.mxu0 0.0
        %1696 = vmatpush1.msra.mxu0 0.0
        %1697 = vmatprep.subr.mxu0 0.0
        %1698 = vmatpush1.msra.mxu0 0.0
        %1699 = vmatprep.subr.mxu0 0.0
        %1700 = vmatpush1.msra.mxu0 0.0
        %1701 = vmatprep.subr.mxu0 0.0
        %1702 = vmatpush1.msra.mxu0 0.0
        %1703 = vmatprep.subr.mxu0 0.0
        %1704 = vmatpush1.msra.mxu0 0.0
        %1705 = vmatprep.subr.mxu0 0.0
        %1706 = vmatpush1.msra.mxu0 0.0
        %1707 = vmatprep.subr.mxu0 0.0
        %1708 = vmatpush1.msra.mxu0 0.0
        %1709 = vmatprep.subr.mxu0 0.0
        %1710 = vmatpush1.msra.mxu0 0.0
        %1711 = vmatprep.subr.mxu0 0.0
        %1712 = vmatpush1.msra.mxu0 0.0
        %1713 = vmatprep.subr.mxu0 0.0
        %1714 = vmatpush1.msra.mxu0 0.0
        %1715 = vmatprep.subr.mxu0 0.0
        %1716 = vmatpush1.msra.mxu0 0.0
        %1717 = vmatprep.subr.mxu0 0.0
        %1718 = vmatpush1.msra.mxu0 0.0
        %1719 = vmatprep.subr.mxu0 0.0
        %1720 = vmatpush1.msra.mxu0 0.0
        %1721 = vmatprep.subr.mxu0 0.0
        %1722 = vmatpush1.msra.mxu0 0.0
        %1723 = vmatprep.subr.mxu0 0.0
        %1724 = vmatpush1.msra.mxu0 0.0
        %1725 = vmatprep.subr.mxu0 0.0
        %1726 = vmatpush1.msra.mxu0 0.0
        %1727 = vmatprep.subr.mxu0 0.0
        %1728 = vmatpush1.msra.mxu0 0.0
        %1729 = vmatprep.subr.mxu0 0.0
        %1730 = vmatpush1.msra.mxu0 0.0
        %1731 = vmatprep.subr.mxu0 0.0
        %1732 = vmatpush1.msra.mxu0 0.0
        %1733 = vmatprep.subr.mxu0 0.0
        %1734 = vmatpush1.msra.mxu0 0.0
        %1735 = vmatprep.subr.mxu0 0.0
        %1736 = vmatpush1.msra.mxu0 0.0
        %1737 = vmatprep.subr.mxu0 0.0
        %1738 = vmatpush1.msra.mxu0 0.0
        %1739 = vmatprep.subr.mxu0 0.0
        %1740 = vmatpush1.msra.mxu0 0.0
        %1741 = vmatprep.subr.mxu0 0.0
        %1742 = vmatpush1.msra.mxu0 0.0
        %1743 = vmatprep.subr.mxu0 0.0
        %1744 = vmatpush1.msra.mxu0 0.0
        %1745 = vmatprep.mubr.f32.mxu0 0.0
        %1746 = vmatmul.mubr.f32.gmra.mrb[0].mxu0 %v1676
        %v1747 = vpop.f32.mrb[0].mxu0
        %v1748 = vadd.f32 0.0, %v1747
        %v1749 = vpop.f32.mrb[0].mxu0
        %1750 = vmatprep.mubr.f32.mxu0 0.0
        %1751 = vmatmul.mubr.f32.gmra.mrb[0].mxu0 %v1679
        %v1752 = vpop.f32.mrb[0].mxu0
        %v1753 = vadd.f32 0.0, %v1752
        %v1754 = vpop.f32.mrb[0].mxu0
        %1755 = vdwg.mxu0
        %1758 = vrot.lane.b32.xlu0 %v1586, 32
        %v1759 = vpop.permute.xlu0 %1758
        %1760 = vrot.lane.b32.xlu0 %v1591, 32
        %v1761 = vpop.permute.xlu0 %1760
        %1766 = vrot.lane.b32.xlu0 %v1667, 64
        %v1767 = vpop.permute.xlu0 %1766
        %1768 = vrot.lane.b32.xlu0 %v1672, 64
        %v1769 = vpop.permute.xlu0 %1768
        %1774 = vrot.lane.b32.xlu0 %v1748, 96
        %v1775 = vpop.permute.xlu0 %1774
        %1776 = vrot.lane.b32.xlu0 %v1753, 96
        %v1777 = vpop.permute.xlu0 %1776
        %v1780 = vsel %vm1010, %v1505, %v1759
        %v1781 = vsel %vm1010, %v1510, %v1761
        %vm1782 = vcmask 523264
        %v1783 = vsel %vm1782, %v1780, %v1767
        %v1784 = vsel %vm1782, %v1781, %v1769
        %vm1785 = vcmask 785408
        %v1786 = vsel %vm1785, %v1783, %v1775
        %v1787 = vsel %vm1785, %v1784, %v1777
        %v1789 = vlaneseq
        %v1790 = vshrl.u32 %v1789, 7
        %v1791 = vsub.s32 0, %v1790
        %v1792 = vrot.slane %v787, %v1791
        %1794 = vmatprep.subr.mxu0 0.0
        %1795 = vmatpush1.msra.mxu0 %v642
        %1796 = vmatprep.subr.mxu0 0.0
        %1797 = vmatpush1.msra.mxu0 %v643
        %1798 = vmatprep.subr.mxu0 0.0
        %1799 = vmatpush1.msra.mxu0 %v644
        %1800 = vmatprep.subr.mxu0 0.0
        %1801 = vmatpush1.msra.mxu0 %v645
        %1802 = vmatprep.subr.mxu0 0.0
        %1803 = vmatpush1.msra.mxu0 %v646
        %1804 = vmatprep.subr.mxu0 0.0
        %1805 = vmatpush1.msra.mxu0 %v647
        %1806 = vmatprep.subr.mxu0 0.0
        %1807 = vmatpush1.msra.mxu0 %v648
        %1808 = vmatprep.subr.mxu0 0.0
        %1809 = vmatpush1.msra.mxu0 %v649
        %1810 = vmatprep.subr.mxu0 0.0
        %1811 = vmatpush1.msra.mxu0 %v650
        %1812 = vmatprep.subr.mxu0 0.0
        %1813 = vmatpush1.msra.mxu0 %v651
        %1814 = vmatprep.subr.mxu0 0.0
        %1815 = vmatpush1.msra.mxu0 %v652
        %1816 = vmatprep.subr.mxu0 0.0
        %1817 = vmatpush1.msra.mxu0 %v653
        %1818 = vmatprep.subr.mxu0 0.0
        %1819 = vmatpush1.msra.mxu0 %v654
        %1820 = vmatprep.subr.mxu0 0.0
        %1821 = vmatpush1.msra.mxu0 %v655
        %1822 = vmatprep.subr.mxu0 0.0
        %1823 = vmatpush1.msra.mxu0 %v656
        %1824 = vmatprep.subr.mxu0 0.0
        %1825 = vmatpush1.msra.mxu0 %v657
        %1826 = vmatprep.subr.mxu0 0.0
        %1827 = vmatpush1.msra.mxu0 0.0
        %1828 = vmatprep.subr.mxu0 0.0
        %1829 = vmatpush1.msra.mxu0 0.0
        %1830 = vmatprep.subr.mxu0 0.0
        %1831 = vmatpush1.msra.mxu0 0.0
        %1832 = vmatprep.subr.mxu0 0.0
        %1833 = vmatpush1.msra.mxu0 0.0
        %1834 = vmatprep.subr.mxu0 0.0
        %1835 = vmatpush1.msra.mxu0 0.0
        %1836 = vmatprep.subr.mxu0 0.0
        %1837 = vmatpush1.msra.mxu0 0.0
        %1838 = vmatprep.subr.mxu0 0.0
        %1839 = vmatpush1.msra.mxu0 0.0
        %1840 = vmatprep.subr.mxu0 0.0
        %1841 = vmatpush1.msra.mxu0 0.0
        %1842 = vmatprep.subr.mxu0 0.0
        %1843 = vmatpush1.msra.mxu0 0.0
        %1844 = vmatprep.subr.mxu0 0.0
        %1845 = vmatpush1.msra.mxu0 0.0
        %1846 = vmatprep.subr.mxu0 0.0
        %1847 = vmatpush1.msra.mxu0 0.0
        %1848 = vmatprep.subr.mxu0 0.0
        %1849 = vmatpush1.msra.mxu0 0.0
        %1850 = vmatprep.subr.mxu0 0.0
        %1851 = vmatpush1.msra.mxu0 0.0
        %1852 = vmatprep.subr.mxu0 0.0
        %1853 = vmatpush1.msra.mxu0 0.0
        %1854 = vmatprep.subr.mxu0 0.0
        %1855 = vmatpush1.msra.mxu0 0.0
        %1856 = vmatprep.subr.mxu0 0.0
        %1857 = vmatpush1.msra.mxu0 0.0
        %1858 = vmatprep.mubr.f32.mxu0 0.0
        %1859 = vmatmul.mubr.f32.gmra.mrb[0].mxu0 %v1786
        %v1860 = vpop.f32.mrb[0].mxu0
        %v1861 = vadd.f32 %v1792, %v1860
        %v1862 = vpop.f32.mrb[0].mxu0
        %1863 = vmatprep.mubr.f32.mxu0 0.0
        %1864 = vmatmul.mubr.f32.gmra.mrb[0].mxu0 %v1787
        %v1865 = vpop.f32.mrb[0].mxu0
        %v1866 = vadd.f32 %v1792, %v1865
        %v1867 = vpop.f32.mrb[0].mxu0
        %1868 = vdwg.mxu0
        %v1869 = vadd.f32 %v584, %v1861
        %v1870 = vadd.f32 %v585, %v1866
        %1871 = vadd.xlane.f32.xlu0 %v1869
        %v1872 = vpop.xlane.xlu0 %1871
        %1873 = vadd.xlane.f32.xlu0 %v1870
        %v1874 = vpop.xlane.xlu0 %1873
        %v1875 = vrcp.pop 128.0
        %v1876 = vmul.f32 %v1872, %v1875
        %v1877 = vmul.f32 %v1874, %v1875
        %v1878 = vsub.f32 %v1869, %v1876
        %v1879 = vsub.f32 %v1870, %v1877
        %v1880 = vmul.f32 %v1878, %v1878
        %v1881 = vmul.f32 %v1879, %v1879
        %1882 = vadd.xlane.f32.xlu0 %v1880
        %v1883 = vpop.xlane.xlu0 %1882
        %1884 = vadd.xlane.f32.xlu0 %v1881
        %v1885 = vpop.xlane.xlu0 %1884
        %v1886 = vmul.f32 %v1883, %v1875
        %v1887 = vmul.f32 %v1885, %v1875
        %v1888 = vadd.f32 %v1886, 1e-05
        %v1889 = vadd.f32 %v1887, 1e-05
        %v1890 = vrsqrt.pop %v1888
        %v1891 = vrsqrt.pop %v1889
        %v1892 = vmul.f32 %v1878, %v1890
        %v1893 = vmul.f32 %v1879, %v1891
        %v1895 = vlaneseq
        %v1896 = vshrl.u32 %v1895, 7
        %v1897 = vsub.s32 0, %v1896
        %v1898 = vrot.slane %v790, %v1897
        %v1900 = vmul.f32 %v1892, %v1898
        %v1901 = vmul.f32 %v1893, %v1898
        %v1903 = vlaneseq
        %v1904 = vshrl.u32 %v1903, 7
        %v1905 = vsub.s32 0, %v1904
        %v1906 = vrot.slane %v791, %v1905
        %v1908 = vadd.f32 %v1900, %v1906
        %v1909 = vadd.f32 %v1901, %v1906
        %v1911 = vlaneseq
        %v1912 = vshrl.u32 %v1911, 7
        %v1913 = vsub.s32 0, %v1912
        %v1914 = vrot.slane %v788, %v1913
        %v1915 = vlaneseq
        %v1916 = vshrl.u32 %v1915, 7
        %v1917 = vsub.s32 1, %v1916
        %v1918 = vrot.slane %v788, %v1917
        %v1919 = vlaneseq
        %v1920 = vshrl.u32 %v1919, 7
        %v1921 = vsub.s32 2, %v1920
        %v1922 = vrot.slane %v788, %v1921
        %v1923 = vlaneseq
        %v1924 = vshrl.u32 %v1923, 7
        %v1925 = vsub.s32 3, %v1924
        %v1926 = vrot.slane %v788, %v1925
        %1931 = vmatprep.subr.mxu0 %v659
        %1932 = vmatpush1.msra.mxu0 %v658
        %1933 = vmatprep.subr.mxu0 %v663
        %1934 = vmatpush1.msra.mxu0 %v662
        %1935 = vmatprep.subr.mxu0 %v667
        %1936 = vmatpush1.msra.mxu0 %v666
        %1937 = vmatprep.subr.mxu0 %v671
        %1938 = vmatpush1.msra.mxu0 %v670
        %1939 = vmatprep.subr.mxu0 %v675
        %1940 = vmatpush1.msra.mxu0 %v674
        %1941 = vmatprep.subr.mxu0 %v679
        %1942 = vmatpush1.msra.mxu0 %v678
        %1943 = vmatprep.subr.mxu0 %v683
        %1944 = vmatpush1.msra.mxu0 %v682
        %1945 = vmatprep.subr.mxu0 %v687
        %1946 = vmatpush1.msra.mxu0 %v686
        %1947 = vmatprep.subr.mxu0 %v691
        %1948 = vmatpush1.msra.mxu0 %v690
        %1949 = vmatprep.subr.mxu0 %v695
        %1950 = vmatpush1.msra.mxu0 %v694
        %1951 = vmatprep.subr.mxu0 %v699
        %1952 = vmatpush1.msra.mxu0 %v698
        %1953 = vmatprep.subr.mxu0 %v703
        %1954 = vmatpush1.msra.mxu0 %v702
        %1955 = vmatprep.subr.mxu0 %v707
        %1956 = vmatpush1.msra.mxu0 %v706
        %1957 = vmatprep.subr.mxu0 %v711
        %1958 = vmatpush1.msra.mxu0 %v710
        %1959 = vmatprep.subr.mxu0 %v715
        %1960 = vmatpush1.msra.mxu0 %v714
        %1961 = vmatprep.subr.mxu0 %v719
        %1962 = vmatpush1.msra.mxu0 %v718
        %1963 = vmatprep.subr.mxu0 0.0
        %1964 = vmatpush1.msra.mxu0 0.0
        %1965 = vmatprep.subr.mxu0 0.0
        %1966 = vmatpush1.msra.mxu0 0.0
        %1967 = vmatprep.subr.mxu0 0.0
        %1968 = vmatpush1.msra.mxu0 0.0
        %1969 = vmatprep.subr.mxu0 0.0
        %1970 = vmatpush1.msra.mxu0 0.0
        %1971 = vmatprep.subr.mxu0 0.0
        %1972 = vmatpush1.msra.mxu0 0.0
        %1973 = vmatprep.subr.mxu0 0.0
        %1974 = vmatpush1.msra.mxu0 0.0
        %1975 = vmatprep.subr.mxu0 0.0
        %1976 = vmatpush1.msra.mxu0 0.0
        %1977 = vmatprep.subr.mxu0 0.0
        %1978 = vmatpush1.msra.mxu0 0.0
        %1979 = vmatprep.subr.mxu0 0.0
        %1980 = vmatpush1.msra.mxu0 0.0
        %1981 = vmatprep.subr.mxu0 0.0
        %1982 = vmatpush1.msra.mxu0 0.0
        %1983 = vmatprep.subr.mxu0 0.0
        %1984 = vmatpush1.msra.mxu0 0.0
        %1985 = vmatprep.subr.mxu0 0.0
        %1986 = vmatpush1.msra.mxu0 0.0
        %1987 = vmatprep.subr.mxu0 0.0
        %1988 = vmatpush1.msra.mxu0 0.0
        %1989 = vmatprep.subr.mxu0 0.0
        %1990 = vmatpush1.msra.mxu0 0.0
        %1991 = vmatprep.subr.mxu0 0.0
        %1992 = vmatpush1.msra.mxu0 0.0
        %1993 = vmatprep.subr.mxu0 0.0
        %1994 = vmatpush1.msra.mxu0 0.0
        %1995 = vmatprep.mubr.f32.mxu0 0.0
        %1996 = vmatmul.mubr.f32.gmra.mrb[0].mxu0 %v1908
        %v1997 = vpop.f32.mrb[0].mxu0
        %v1998 = vadd.f32 %v1914, %v1997
        %v1999 = vpop.f32.mrb[0].mxu0
        %v2000 = vadd.f32 %v1918, %v1999
        %2001 = vmatprep.mubr.f32.mxu0 0.0
        %2002 = vmatmul.mubr.f32.gmra.mrb[0].mxu0 %v1909
        %v2003 = vpop.f32.mrb[0].mxu0
        %v2004 = vadd.f32 %v1914, %v2003
        %v2005 = vpop.f32.mrb[0].mxu0
        %v2006 = vadd.f32 %v1918, %v2005
        %2007 = vdwg.mxu0
        %2008 = vmatprep.subr.mxu0 %v661
        %2009 = vmatpush1.msra.mxu0 %v660
        %2010 = vmatprep.subr.mxu0 %v665
        %2011 = vmatpush1.msra.mxu0 %v664
        %2012 = vmatprep.subr.mxu0 %v669
        %2013 = vmatpush1.msra.mxu0 %v668
        %2014 = vmatprep.subr.mxu0 %v673
        %2015 = vmatpush1.msra.mxu0 %v672
        %2016 = vmatprep.subr.mxu0 %v677
        %2017 = vmatpush1.msra.mxu0 %v676
        %2018 = vmatprep.subr.mxu0 %v681
        %2019 = vmatpush1.msra.mxu0 %v680
        %2020 = vmatprep.subr.mxu0 %v685
        %2021 = vmatpush1.msra.mxu0 %v684
        %2022 = vmatprep.subr.mxu0 %v689
        %2023 = vmatpush1.msra.mxu0 %v688
        %2024 = vmatprep.subr.mxu0 %v693
        %2025 = vmatpush1.msra.mxu0 %v692
        %2026 = vmatprep.subr.mxu0 %v697
        %2027 = vmatpush1.msra.mxu0 %v696
        %2028 = vmatprep.subr.mxu0 %v701
        %2029 = vmatpush1.msra.mxu0 %v700
        %2030 = vmatprep.subr.mxu0 %v705
        %2031 = vmatpush1.msra.mxu0 %v704
        %2032 = vmatprep.subr.mxu0 %v709
        %2033 = vmatpush1.msra.mxu0 %v708
        %2034 = vmatprep.subr.mxu0 %v713
        %2035 = vmatpush1.msra.mxu0 %v712
        %2036 = vmatprep.subr.mxu0 %v717
        %2037 = vmatpush1.msra.mxu0 %v716
        %2038 = vmatprep.subr.mxu0 %v721
        %2039 = vmatpush1.msra.mxu0 %v720
        %2040 = vmatprep.subr.mxu0 0.0
        %2041 = vmatpush1.msra.mxu0 0.0
        %2042 = vmatprep.subr.mxu0 0.0
        %2043 = vmatpush1.msra.mxu0 0.0
        %2044 = vmatprep.subr.mxu0 0.0
        %2045 = vmatpush1.msra.mxu0 0.0
        %2046 = vmatprep.subr.mxu0 0.0
        %2047 = vmatpush1.msra.mxu0 0.0
        %2048 = vmatprep.subr.mxu0 0.0
        %2049 = vmatpush1.msra.mxu0 0.0
        %2050 = vmatprep.subr.mxu0 0.0
        %2051 = vmatpush1.msra.mxu0 0.0
        %2052 = vmatprep.subr.mxu0 0.0
        %2053 = vmatpush1.msra.mxu0 0.0
        %2054 = vmatprep.subr.mxu0 0.0
        %2055 = vmatpush1.msra.mxu0 0.0
        %2056 = vmatprep.subr.mxu0 0.0
        %2057 = vmatpush1.msra.mxu0 0.0
        %2058 = vmatprep.subr.mxu0 0.0
        %2059 = vmatpush1.msra.mxu0 0.0
        %2060 = vmatprep.subr.mxu0 0.0
        %2061 = vmatpush1.msra.mxu0 0.0
        %2062 = vmatprep.subr.mxu0 0.0
        %2063 = vmatpush1.msra.mxu0 0.0
        %2064 = vmatprep.subr.mxu0 0.0
        %2065 = vmatpush1.msra.mxu0 0.0
        %2066 = vmatprep.subr.mxu0 0.0
        %2067 = vmatpush1.msra.mxu0 0.0
        %2068 = vmatprep.subr.mxu0 0.0
        %2069 = vmatpush1.msra.mxu0 0.0
        %2070 = vmatprep.subr.mxu0 0.0
        %2071 = vmatpush1.msra.mxu0 0.0
        %2072 = vmatprep.mubr.f32.mxu0 0.0
        %2073 = vmatmul.mubr.f32.gmra.mrb[0].mxu0 %v1908
        %v2074 = vpop.f32.mrb[0].mxu0
        %v2075 = vadd.f32 %v1922, %v2074
        %v2076 = vpop.f32.mrb[0].mxu0
        %v2077 = vadd.f32 %v1926, %v2076
        %2078 = vmatprep.mubr.f32.mxu0 0.0
        %2079 = vmatmul.mubr.f32.gmra.mrb[0].mxu0 %v1909
        %v2080 = vpop.f32.mrb[0].mxu0
        %v2081 = vadd.f32 %v1922, %v2080
        %v2082 = vpop.f32.mrb[0].mxu0
        %v2083 = vadd.f32 %v1926, %v2082
        %2084 = vdwg.mxu0
        %v2085 = vmax.f32 %v1998, 0.0
        %v2086 = vmax.f32 %v2000, 0.0
        %v2087 = vmax.f32 %v2075, 0.0
        %v2088 = vmax.f32 %v2077, 0.0
        %v2089 = vmax.f32 %v2004, 0.0
        %v2090 = vmax.f32 %v2006, 0.0
        %v2091 = vmax.f32 %v2081, 0.0
        %v2092 = vmax.f32 %v2083, 0.0
        %v2094 = vlaneseq
        %v2095 = vshrl.u32 %v2094, 7
        %v2096 = vsub.s32 0, %v2095
        %v2097 = vrot.slane %v789, %v2096
        %2099 = vmatprep.subr.mxu0 0.0
        %2100 = vmatpush1.msra.mxu0 %v722
        %2101 = vmatprep.subr.mxu0 0.0
        %2102 = vmatpush1.msra.mxu0 %v723
        %2103 = vmatprep.subr.mxu0 0.0
        %2104 = vmatpush1.msra.mxu0 %v724
        %2105 = vmatprep.subr.mxu0 0.0
        %2106 = vmatpush1.msra.mxu0 %v725
        %2107 = vmatprep.subr.mxu0 0.0
        %2108 = vmatpush1.msra.mxu0 %v726
        %2109 = vmatprep.subr.mxu0 0.0
        %2110 = vmatpush1.msra.mxu0 %v727
        %2111 = vmatprep.subr.mxu0 0.0
        %2112 = vmatpush1.msra.mxu0 %v728
        %2113 = vmatprep.subr.mxu0 0.0
        %2114 = vmatpush1.msra.mxu0 %v729
        %2115 = vmatprep.subr.mxu0 0.0
        %2116 = vmatpush1.msra.mxu0 %v730
        %2117 = vmatprep.subr.mxu0 0.0
        %2118 = vmatpush1.msra.mxu0 %v731
        %2119 = vmatprep.subr.mxu0 0.0
        %2120 = vmatpush1.msra.mxu0 %v732
        %2121 = vmatprep.subr.mxu0 0.0
        %2122 = vmatpush1.msra.mxu0 %v733
        %2123 = vmatprep.subr.mxu0 0.0
        %2124 = vmatpush1.msra.mxu0 %v734
        %2125 = vmatprep.subr.mxu0 0.0
        %2126 = vmatpush1.msra.mxu0 %v735
        %2127 = vmatprep.subr.mxu0 0.0
        %2128 = vmatpush1.msra.mxu0 %v736
        %2129 = vmatprep.subr.mxu0 0.0
        %2130 = vmatpush1.msra.mxu0 %v737
        %2131 = vmatprep.subr.mxu0 0.0
        %2132 = vmatpush1.msra.mxu0 %v738
        %2133 = vmatprep.subr.mxu0 0.0
        %2134 = vmatpush1.msra.mxu0 %v739
        %2135 = vmatprep.subr.mxu0 0.0
        %2136 = vmatpush1.msra.mxu0 %v740
        %2137 = vmatprep.subr.mxu0 0.0
        %2138 = vmatpush1.msra.mxu0 %v741
        %2139 = vmatprep.subr.mxu0 0.0
        %2140 = vmatpush1.msra.mxu0 %v742
        %2141 = vmatprep.subr.mxu0 0.0
        %2142 = vmatpush1.msra.mxu0 %v743
        %2143 = vmatprep.subr.mxu0 0.0
        %2144 = vmatpush1.msra.mxu0 %v744
        %2145 = vmatprep.subr.mxu0 0.0
        %2146 = vmatpush1.msra.mxu0 %v745
        %2147 = vmatprep.subr.mxu0 0.0
        %2148 = vmatpush1.msra.mxu0 %v746
        %2149 = vmatprep.subr.mxu0 0.0
        %2150 = vmatpush1.msra.mxu0 %v747
        %2151 = vmatprep.subr.mxu0 0.0
        %2152 = vmatpush1.msra.mxu0 %v748
        %2153 = vmatprep.subr.mxu0 0.0
        %2154 = vmatpush1.msra.mxu0 %v749
        %2155 = vmatprep.subr.mxu0 0.0
        %2156 = vmatpush1.msra.mxu0 %v750
        %2157 = vmatprep.subr.mxu0 0.0
        %2158 = vmatpush1.msra.mxu0 %v751
        %2159 = vmatprep.subr.mxu0 0.0
        %2160 = vmatpush1.msra.mxu0 %v752
        %2161 = vmatprep.subr.mxu0 0.0
        %2162 = vmatpush1.msra.mxu0 %v753
        %2163 = vmatprep.mubr.f32.mxu0 %v2086
        %2164 = vmatmul.mubr.f32.gmra.mrb[0].mxu0 %v2085
        %v2165 = vpop.f32.mrb[0].mxu0
        %v2166 = vadd.f32 %v2097, %v2165
        %v2167 = vpop.f32.mrb[0].mxu0
        %2168 = vmatprep.mubr.f32.mxu0 %v2090
        %2169 = vmatmul.mubr.f32.gmra.mrb[0].mxu0 %v2089
        %v2170 = vpop.f32.mrb[0].mxu0
        %v2171 = vadd.f32 %v2097, %v2170
        %v2172 = vpop.f32.mrb[0].mxu0
        %2173 = vdwg.mxu0
        %2174 = vmatprep.subr.mxu0 0.0
        %2175 = vmatpush1.msra.mxu0 %v754
        %2176 = vmatprep.subr.mxu0 0.0
        %2177 = vmatpush1.msra.mxu0 %v755
        %2178 = vmatprep.subr.mxu0 0.0
        %2179 = vmatpush1.msra.mxu0 %v756
        %2180 = vmatprep.subr.mxu0 0.0
        %2181 = vmatpush1.msra.mxu0 %v757
        %2182 = vmatprep.subr.mxu0 0.0
        %2183 = vmatpush1.msra.mxu0 %v758
        %2184 = vmatprep.subr.mxu0 0.0
        %2185 = vmatpush1.msra.mxu0 %v759
        %2186 = vmatprep.subr.mxu0 0.0
        %2187 = vmatpush1.msra.mxu0 %v760
        %2188 = vmatprep.subr.mxu0 0.0
        %2189 = vmatpush1.msra.mxu0 %v761
        %2190 = vmatprep.subr.mxu0 0.0
        %2191 = vmatpush1.msra.mxu0 %v762
        %2192 = vmatprep.subr.mxu0 0.0
        %2193 = vmatpush1.msra.mxu0 %v763
        %2194 = vmatprep.subr.mxu0 0.0
        %2195 = vmatpush1.msra.mxu0 %v764
        %2196 = vmatprep.subr.mxu0 0.0
        %2197 = vmatpush1.msra.mxu0 %v765
        %2198 = vmatprep.subr.mxu0 0.0
        %2199 = vmatpush1.msra.mxu0 %v766
        %2200 = vmatprep.subr.mxu0 0.0
        %2201 = vmatpush1.msra.mxu0 %v767
        %2202 = vmatprep.subr.mxu0 0.0
        %2203 = vmatpush1.msra.mxu0 %v768
        %2204 = vmatprep.subr.mxu0 0.0
        %2205 = vmatpush1.msra.mxu0 %v769
        %2206 = vmatprep.subr.mxu0 0.0
        %2207 = vmatpush1.msra.mxu0 %v770
        %2208 = vmatprep.subr.mxu0 0.0
        %2209 = vmatpush1.msra.mxu0 %v771
        %2210 = vmatprep.subr.mxu0 0.0
        %2211 = vmatpush1.msra.mxu0 %v772
        %2212 = vmatprep.subr.mxu0 0.0
        %2213 = vmatpush1.msra.mxu0 %v773
        %2214 = vmatprep.subr.mxu0 0.0
        %2215 = vmatpush1.msra.mxu0 %v774
        %2216 = vmatprep.subr.mxu0 0.0
        %2217 = vmatpush1.msra.mxu0 %v775
        %2218 = vmatprep.subr.mxu0 0.0
        %2219 = vmatpush1.msra.mxu0 %v776
        %2220 = vmatprep.subr.mxu0 0.0
        %2221 = vmatpush1.msra.mxu0 %v777
        %2222 = vmatprep.subr.mxu0 0.0
        %2223 = vmatpush1.msra.mxu0 %v778
        %2224 = vmatprep.subr.mxu0 0.0
        %2225 = vmatpush1.msra.mxu0 %v779
        %2226 = vmatprep.subr.mxu0 0.0
        %2227 = vmatpush1.msra.mxu0 %v780
        %2228 = vmatprep.subr.mxu0 0.0
        %2229 = vmatpush1.msra.mxu0 %v781
        %2230 = vmatprep.subr.mxu0 0.0
        %2231 = vmatpush1.msra.mxu0 %v782
        %2232 = vmatprep.subr.mxu0 0.0
        %2233 = vmatpush1.msra.mxu0 %v783
        %2234 = vmatprep.subr.mxu0 0.0
        %2235 = vmatpush1.msra.mxu0 %v784
        %2236 = vmatprep.subr.mxu0 0.0
        %2237 = vmatpush1.msra.mxu0 %v785
        %2238 = vmatprep.mubr.f32.mxu0 %v2088
        %2239 = vmatmul.mubr.f32.gmra.mrb[0].mxu0 %v2087
        %v2240 = vpop.f32.mrb[0].mxu0
        %v2241 = vadd.f32 %v2166, %v2240
        %v2242 = vpop.f32.mrb[0].mxu0
        %2243 = vmatprep.mubr.f32.mxu0 %v2092
        %2244 = vmatmul.mubr.f32.gmra.mrb[0].mxu0 %v2091
        %v2245 = vpop.f32.mrb[0].mxu0
        %v2246 = vadd.f32 %v2171, %v2245
        %v2247 = vpop.f32.mrb[0].mxu0
        %2248 = vdwg.mxu0
        %v2249 = vadd.f32 %v1908, %v2241
        %v2250 = vadd.f32 %v1909, %v2246
        %2251 = vadd.xlane.f32.xlu0 %v2249
        %v2252 = vpop.xlane.xlu0 %2251
        %2253 = vadd.xlane.f32.xlu0 %v2250
        %v2254 = vpop.xlane.xlu0 %2253
        %v2255 = vmul.f32 %v2252, %v1875
        %v2256 = vmul.f32 %v2254, %v1875
        %v2257 = vsub.f32 %v2249, %v2255
        %v2258 = vsub.f32 %v2250, %v2256
        %v2259 = vmul.f32 %v2257, %v2257
        %v2260 = vmul.f32 %v2258, %v2258
        %2261 = vadd.xlane.f32.xlu0 %v2259
        %v2262 = vpop.xlane.xlu0 %2261
        %2263 = vadd.xlane.f32.xlu0 %v2260
        %v2264 = vpop.xlane.xlu0 %2263
        %v2265 = vmul.f32 %v2262, %v1875
        %v2266 = vmul.f32 %v2264, %v1875
        %v2267 = vadd.f32 %v2265, 1e-05
        %v2268 = vadd.f32 %v2266, 1e-05
        %v2269 = vrsqrt.pop %v2267
        %v2270 = vrsqrt.pop %v2268
        %v2271 = vmul.f32 %v2257, %v2269
        %v2272 = vmul.f32 %v2258, %v2270
        %v2274 = vlaneseq
        %v2275 = vshrl.u32 %v2274, 7
        %v2276 = vsub.s32 0, %v2275
        %v2277 = vrot.slane %v792, %v2276
        %v2279 = vmul.f32 %v2271, %v2277
        %v2280 = vmul.f32 %v2272, %v2277
        %v2282 = vlaneseq
        %v2283 = vshrl.u32 %v2282, 7
        %v2284 = vsub.s32 0, %v2283
        %v2285 = vrot.slane %v793, %v2284
        %v2287 = vadd.f32 %v2279, %v2285
        %v2288 = vadd.f32 %v2280, %v2285
        %2289 = vst [vmem:[%s583] sm:$0xff] %v2287
        %2290 = vst [vmem:[%s583 + $0x8] sm:$0xff] %v2288
        %s2291 = sand.u32 %s348, 1
        %s2292 = scalar_lea.sflag [#allocation4], %s2291
        %s2293 = sand.u32 %s348, 1
        %s2294 = smul.addr %s2293, 16
        %s2295 = scalar_lea.vmem [#allocation13], %s2294
        // Predicated region
        $region101: #{tpu_custom_call.1} parent=75 // pred_check
          %p2296 = pneg %p358
        $region102: #{tpu_custom_call.1} parent=75 // pred_check_branch
          %2298 = sbr.rel (%p2296) target = $region104
        $region103: #{tpu_custom_call.1} parent=75 // pred_region
          %s2300 = ssub.s32 256, 256
          %2301 = vsyncadd %s2292, %s2300
          %s2302 = smul.addr %s36, 2
          %s2303 = smul.addr %s2302, 128
          %s2304 = scalar_lea.hbm %s14, %s2303
          %s2305 = sshll.u32 %s2295, 4
          %s2306 = int_to_ptr.vmem [resolvable:$true] %s2305
          %2311 = dma.vmem_to_hbm [thread:$0]  %s2306, 256, %s2304, %s2292, 128, 128, 8
        $region104: #{tpu_custom_call.1} parent=75 // pred_fallthru
          _
      $region76: #{tpu_custom_call.1} parent=5 // pred_fallthru
        _
      %p2312 = scmp.le.s32.totalorder 2, %s31
      // Predicated region
      $region105: #{tpu_custom_call.1} parent=5 // pred_check
        %p2313 = pneg %p2312
      $region106: #{tpu_custom_call.1} parent=5 // pred_check_branch
        %2315 = sbr.rel (%p2313) target = $region108
      $region107: #{tpu_custom_call.1} parent=5 // pred_region
        %s2316 = ssub.s32 %s31, 2
        // Predicated region
        $region109: #{tpu_custom_call.1} parent=107 // pred_check
          %p2317 = pneg %p364
        $region110: #{tpu_custom_call.1} parent=107 // pred_check_branch
          %2319 = sbr.rel (%p2317) target = $region112
        $region111: #{tpu_custom_call.1} parent=107 // pred_region
          %s2320 = sand.u32 %s349, 1
          %s2321 = scalar_lea.sflag [#allocation4], %s2320
          %s2322 = sand.u32 %s349, 1
          %s2323 = smul.addr %s2322, 16
          %s2324 = scalar_lea.vmem [#allocation13], %s2323
          %2325 = dma.done %s2321, 256
        $region112: #{tpu_custom_call.1} parent=107 // pred_fallthru
          _
      $region108: #{tpu_custom_call.1} parent=5 // pred_fallthru
        _
    $region6: #{tpu_custom_call.1} parent=1 // loop_footer
      %s35 = sadd.s32 1, %s31
    $region7: #{tpu_custom_call.1} parent=1 // loop_footer_branch
      %30 = sbr.rel target = $region3
    $region8: #{tpu_custom_call.1} parent=1 // loop_exit
      _
    %2326 = vsyncpa [#allocation3], 1
    %s2327 = scalar_lea.sflag [#allocation3], 1
    %2328 = vsyncpa %s2327, 1
    %2329 = vsyncpa [#allocation6], 1
    %s2330 = scalar_lea.sflag [#allocation6], 1
    %2331 = vsyncpa %s2330, 1
    %2332 = vsyncpa [#allocation9], 1
    %2333 = vsyncpa [#allocation12], 1
    %2334 = vsyncpa [#allocation4], 1
    %s2335 = scalar_lea.sflag [#allocation4], 1
    %2336 = vsyncpa %s2335, 1

</llo_original>
